<compile_context>
chip_gen: v7x
topology: tpu7x:2x2x1
jax: 0.10.0
libtpu: 0.0.40
codegen_flags: <defaults>
</compile_context>

<pallas_src>
import jax
import jax.numpy as jnp
import numpy as np
from jax.experimental import pallas as pl
from jax.experimental.pallas import tpu as pltpu


# ------------------------------- fused kernel ------------------------------- #

def _bottleneck_kernel(x_ref, w1_ref, b1_ref, w2_ref, b2_ref, w3_ref, b3_ref,
                       o_ref, a1m_ref):
    # x_ref  : (1, H, W, Cin)      full image (constant block across row tiles)
    # w1_ref : (Cin, C1)           bn1 scale folded in
    # w2_ref : (3, 3*C1, C2)       3x3 conv, kx taps merged into contraction dim
    # w3_ref : (C2, Cout)          bn3 scale folded in
    # b*_ref : (1, C)              folded bn biases (f32)
    # o_ref  : (1, TH, W, Cout)    output row tile (compute dtype)
    # a1m_ref: (TH+2, W, 3*C1)     kx-merged conv1 activation for this tile
    #                              (row 0 / TH+1 are the ky halo rows).
    # Every grid step fully rewrites everything it reads from a1m_ref, so both
    # grid axes are safe to run in parallel / in any order.
    j = pl.program_id(1)
    nj = pl.num_programs(1)
    _, H, W, Cin = x_ref.shape
    _, TH, _, Cout = o_ref.shape
    C1 = w1_ref.shape[1]
    K2 = 3 * C1
    cdt = a1m_ref.dtype  # MXU-input (compute) dtype, e.g. bf16

    r0 = pl.multiple_of(j * TH, TH)        # first output row of this tile

    def conv1(x2d):  # (M, Cin) -> (M, C1), bn1 + relu applied, f32
        v = jnp.dot(x2d, w1_ref[...], preferred_element_type=jnp.float32)
        return jnp.maximum(v + b1_ref[...], 0.0)

    def write_taps(row0, v):
        # v: (R, W, C1) f32 conv1 rows; store the 3 kx taps at channel offsets
        # 0 / C1 / 2*C1 with the +-1 column shift baked in (zero columns come
        # from the strip init below).
        vc = v.astype(cdt)
        R = v.shape[0]
        a1m_ref[row0:row0 + R, :, C1:2 * C1] = vc                       # kx = 1
        a1m_ref[row0:row0 + R, 1:W, 0:C1] = vc[:, :W - 1, :]            # kx = 0
        a1m_ref[row0:row0 + R, 0:W - 1, 2 * C1:3 * C1] = vc[:, 1:, :]   # kx = 2

    # ---- stage 1: conv1 (1x1) + bn1 + relu, written kx-merged w/ row halos ----
    # zero only the column halo strips of the shifted taps (cheap)
    zcol = jnp.zeros((TH + 2, 1, C1), cdt)
    a1m_ref[:, 0:1, 0:C1] = zcol
    a1m_ref[:, W - 1:W, 2 * C1:3 * C1] = zcol

    x_main = x_ref[:, pl.ds(r0, TH), :, :].reshape(TH * W, Cin)   # (TH*W, Cin)
    a1_main = conv1(x_main)
    write_taps(1, a1_main.reshape(TH, W, C1))

    zrow = jnp.zeros((1, W, 3 * C1), cdt)

    @pl.when(j == 0)
    def _():                                   # image top border: zero padding
        a1m_ref[0:1, :, :] = zrow

    @pl.when(j > 0)
    def _():                                   # recompute 1 halo row above
        xt = x_ref[:, pl.ds(r0 - 1, 1), :, :].reshape(W, Cin)
        write_taps(0, conv1(xt).reshape(1, W, C1))

    @pl.when(j == nj - 1)
    def _():                                   # image bottom border: zero padding
        a1m_ref[TH + 1:TH + 2, :, :] = zrow

    @pl.when(j < nj - 1)
    def _():                                   # recompute 1 halo row below
        xb = x_ref[:, pl.ds(r0 + TH, 1), :, :].reshape(W, Cin)
        write_taps(TH + 1, conv1(xb).reshape(1, W, C1))

    # ---- stage 2: conv2 (3x3, pad=1) + bn2 + relu — 3 aligned dots ----------
    acc = jnp.dot(a1m_ref[0:TH].reshape(TH * W, K2), w2_ref[0],
                  preferred_element_type=jnp.float32)
    acc += jnp.dot(a1m_ref[1:TH + 1].reshape(TH * W, K2), w2_ref[1],
                   preferred_element_type=jnp.float32)
    acc += jnp.dot(a1m_ref[2:TH + 2].reshape(TH * W, K2), w2_ref[2],
                   preferred_element_type=jnp.float32)
    a2 = jnp.maximum(acc + b2_ref[...], 0.0).astype(cdt)          # (TH*W, C2)

    # ---- stage 3: conv3 (1x1) + bn3 + residual add + relu -------------------
    y = jnp.dot(a2, w3_ref[...], preferred_element_type=jnp.float32)
    y = y + b3_ref[...] + x_main.astype(jnp.float32)              # identity residual
    o_ref[...] = jnp.maximum(y, 0.0).reshape(1, TH, W, Cout).astype(o_ref.dtype)


# --------------------------------- wrappers ---------------------------------- #

def _pick_row_tile(h, w, target_m=512):
    """Largest divisor of h with tile*w <= ~target_m (keeps the MXU M dim big)."""
    want = max(1, min(h, -(-target_m // w)))   # ceil(target_m / w), clamped to h
    best = 1
    for t in range(1, h + 1):
        if h % t == 0 and t <= want:
            best = t
    return best  # NOTE: prime h can give a degenerate tile of 1 (correct, slow)


def bottleneck_forward_nhwc(x_nhwc, params, *, stride=1,
                            compute_dtype=jnp.bfloat16, row_tile=None):
    """NHWC, compute-dtype in/out — chain consecutive blocks without transposes."""
    assert stride == 1, "identity residual requires stride=1 (downsample is None)"
    x = x_nhwc.astype(compute_dtype)
    N, H, W, Cin = x.shape
    C1 = params["w1"].shape[1]
    C2 = params["w2"].shape[-1]
    Cout = params["w3"].shape[1]
    assert Cout == Cin, "identity residual requires inplanes == 4*planes"

    # Fold BN scale into the conv weights; only the bias add stays in the kernel.
    w1 = (params["w1"] * params["s1"][None, :]).astype(compute_dtype)
    w2 = (params["w2"] * params["s2"][None, None, None, :]).astype(compute_dtype)
    w2 = w2.reshape(3, 3 * C1, C2)     # merge (kx, cin) into the contraction dim
    w3 = (params["w3"] * params["s3"][None, :]).astype(compute_dtype)
    b1 = params["b1"].reshape(1, C1).astype(jnp.float32)
    b2 = params["b2"].reshape(1, C2).astype(jnp.float32)
    b3 = params["b3"].reshape(1, Cout).astype(jnp.float32)

    th = _pick_row_tile(H, W) if row_tile is None else row_tile
    assert H % th == 0

    out = pl.pallas_call(
        _bottleneck_kernel,
        out_shape=jax.ShapeDtypeStruct((N, H, W, Cout), compute_dtype),
        grid=(N, H // th),
        in_specs=[
            pl.BlockSpec((1, H, W, Cin), lambda n, j: (n, 0, 0, 0)),
            pl.BlockSpec((Cin, C1), lambda n, j: (0, 0)),
            pl.BlockSpec((1, C1), lambda n, j: (0, 0)),
            pl.BlockSpec((3, 3 * C1, C2), lambda n, j: (0, 0, 0)),
            pl.BlockSpec((1, C2), lambda n, j: (0, 0)),
            pl.BlockSpec((C2, Cout), lambda n, j: (0, 0)),
            pl.BlockSpec((1, Cout), lambda n, j: (0, 0)),
        ],
        out_specs=pl.BlockSpec((1, th, W, Cout), lambda n, j: (n, j, 0, 0)),
        scratch_shapes=[pltpu.VMEM((th + 2, W, 3 * C1), compute_dtype)],
        compiler_params=pltpu.CompilerParams(
            # every row tile is independent (1-row halo recompute), so both the
            # batch axis and the row-tile axis can be sharded across TensorCores
            dimension_semantics=("parallel", "parallel")),
    )(x, w1, b1, w2, b2, w3, b3)
    return out


def bottleneck_forward(x_nchw, params, **kw):
    """PyTorch-interface wrapper (NCHW in / NCHW out). For chained blocks prefer
    bottleneck_forward_nhwc to avoid the layout transposes."""
    x = jnp.transpose(x_nchw, (0, 2, 3, 1))
    out = bottleneck_forward_nhwc(x, params, **kw)
    return jnp.transpose(out, (0, 3, 1, 2))


# --------------------------- parameter construction ------------------------- #

def init_params(key, inplanes, planes, eps=1e-5):
    k1, k2, k3 = jax.random.split(key, 3)
    # conv weights (no bias, as in the PyTorch module), stored channels-last:
    #   1x1 convs as (Cin, Cout); 3x3 conv as (3, 3, Cin, Cout)  [HWIO]
    w1 = 0.1 * jax.random.normal(k1, (inplanes, planes), jnp.float32)
    w2 = 0.1 * jax.random.normal(k2, (3, 3, planes, planes), jnp.float32)
    w3 = 0.1 * jax.random.normal(k3, (planes, planes * 4), jnp.float32)

    def fold_bn(c):
        gamma = jnp.ones((c,), jnp.float32)
        beta = jnp.zeros((c,), jnp.float32)
        running_mean = jnp.zeros((c,), jnp.float32)
        running_var = jnp.ones((c,), jnp.float32)
        scale = gamma / jnp.sqrt(running_var + eps)
        bias = beta - running_mean * scale
        return scale, bias

    s1, b1 = fold_bn(planes)
    s2, b2 = fold_bn(planes)
    s3, b3 = fold_bn(planes * 4)
    return dict(w1=w1, w2=w2, w3=w3, s1=s1, b1=b1, s2=s2, b2=b2, s3=s3, b3=b3)


# ------------------------------ pure-JAX reference -------------------------- #

def reference_forward(x_nchw, params, *, compute_dtype=jnp.bfloat16):
    # Mirrors the kernel's bf16 quantization points (weights/activations quantized
    # to compute_dtype, math in f32) so the comparison is tight.
    def q(v):
        return v.astype(compute_dtype).astype(jnp.float32)

    x = q(jnp.transpose(x_nchw, (0, 2, 3, 1)))
    dn = ("NHWC", "HWIO", "NHWC")
    w1 = q(params["w1"] * params["s1"][None, :]).reshape(1, 1, *params["w1"].shape)
    w2 = q(params["w2"] * params["s2"][None, None, None, :])
    w3 = q(params["w3"] * params["s3"][None, :]).reshape(1, 1, *params["w3"].shape)

    def conv(v, w, pad):
        return jax.lax.conv_general_dilated(v, w, (1, 1), pad,
                                            dimension_numbers=dn)

    out = q(jnp.maximum(conv(x, w1, "VALID") + params["b1"], 0.0))
    out = q(jnp.maximum(conv(out, w2, "SAME") + params["b2"], 0.0))
    out = jnp.maximum(conv(out, w3, "VALID") + params["b3"] + x, 0.0)
    return jnp.transpose(out, (0, 3, 1, 2))


# ------------------------------------ main ----------------------------------- #

if __name__ == "__main__":
    key = jax.random.PRNGKey(0)
    k_x, k_p = jax.random.split(key)

    # Small, lane-dense shapes consistent with the module: planes=32 gives
    # 4*planes = 128 output channels (full 128-lane stores); inplanes = 4*planes
    # so the identity residual applies (downsample=None). spatial=32 gives two
    # row tiles (halo paths exercised) with M = TH*W = 512 per MXU pass.
    batch, planes, spatial = 2, 32, 32
    inplanes = 4 * planes
    x = jax.random.normal(k_x, (batch, inplanes, spatial, spatial), jnp.float32)
    params = init_params(k_p, inplanes, planes)

    out = jax.block_until_ready(bottleneck_forward(x, params))
    ref = jax.block_until_ready(reference_forward(x, params))

    np.testing.assert_allclose(
        np.asarray(out, dtype=np.float32),
        np.asarray(ref.astype(jnp.bfloat16), dtype=np.float32),
        rtol=2e-2, atol=2e-2)
    assert out.shape == (batch, 4 * planes, spatial, spatial)

    print("KERNEL_OK")
</pallas_src>

<mosaic_0001>
module attributes {stable_mosaic.version = 11 : i64} {
  func.func @_bottleneck_kernel(%arg0: i32, %arg1: i32, %arg2: memref<1x32x32x128xbf16, #tpu.memory_space<vmem>>, %arg3: memref<128x32xbf16, #tpu.memory_space<vmem>>, %arg4: memref<1x32xf32, #tpu.memory_space<vmem>>, %arg5: memref<3x96x32xbf16, #tpu.memory_space<vmem>>, %arg6: memref<1x32xf32, #tpu.memory_space<vmem>>, %arg7: memref<32x128xbf16, #tpu.memory_space<vmem>>, %arg8: memref<1x128xf32, #tpu.memory_space<vmem>>, %arg9: memref<1x16x32x128xbf16, #tpu.memory_space<vmem>>, %arg10: memref<18x32x96xbf16, #tpu.memory_space<vmem>>) attributes {dimension_semantics = [#tpu.dimension_semantics<parallel>, #tpu.dimension_semantics<parallel>], iteration_bounds = array<i64: 2, 2>, scalar_prefetch = 0 : i64, scratch_operands = 1 : i64, tpu.core_type = #tpu.core_type<tc>, window_params = [{transform_indices = @transform_0, window_bounds = array<i64: 1, 32, 32, 128>}, {pipeline_mode = #tpu.pipeline_mode<synchronous>, transform_indices = @transform_1, window_bounds = array<i64: 128, 32>}, {pipeline_mode = #tpu.pipeline_mode<synchronous>, transform_indices = @transform_2, window_bounds = array<i64: 1, 32>}, {pipeline_mode = #tpu.pipeline_mode<synchronous>, transform_indices = @transform_3, window_bounds = array<i64: 3, 96, 32>}, {pipeline_mode = #tpu.pipeline_mode<synchronous>, transform_indices = @transform_4, window_bounds = array<i64: 1, 32>}, {pipeline_mode = #tpu.pipeline_mode<synchronous>, transform_indices = @transform_5, window_bounds = array<i64: 32, 128>}, {pipeline_mode = #tpu.pipeline_mode<synchronous>, transform_indices = @transform_6, window_bounds = array<i64: 1, 128>}, {transform_indices = @transform_7, window_bounds = array<i64: 1, 16, 32, 128>}]} {
    %c16_i32 = arith.constant 16 : i32
    %0 = arith.muli %arg1, %c16_i32 : i32
    %1 = tpu.assume_multiple %0, 16 : i32
    %cst = arith.constant 0.000000e+00 : bf16
    %2 = vector.broadcast %cst : bf16 to vector<18x1x32xbf16>
    %c0 = arith.constant 0 : index
    %c0_0 = arith.constant 0 : index
    %c0_1 = arith.constant 0 : index
    %3 = vector.load %arg10[%c0, %c0_0, %c0_1] : memref<18x32x96xbf16, #tpu.memory_space<vmem>>, vector<18x1x32xbf16>
    tpu.vector_store %arg10[%c0, %c0_0, %c0_1], %2 {strides = array<i32>} : memref<18x32x96xbf16, #tpu.memory_space<vmem>>, vector<18x1x32xbf16>,
    %c0_2 = arith.constant 0 : index
    %c31 = arith.constant 31 : index
    %c64 = arith.constant 64 : index
    %4 = vector.load %arg10[%c0_2, %c31, %c64] : memref<18x32x96xbf16, #tpu.memory_space<vmem>>, vector<18x1x32xbf16>
    tpu.vector_store %arg10[%c0_2, %c31, %c64], %2 {strides = array<i32>} : memref<18x32x96xbf16, #tpu.memory_space<vmem>>, vector<18x1x32xbf16>,
    %c0_3 = arith.constant 0 : index
    %5 = arith.index_cast %1 : i32 to index
    %c0_4 = arith.constant 0 : index
    %c0_5 = arith.constant 0 : index
    %6 = vector.load %arg2[%c0_3, %5, %c0_4, %c0_5] : memref<1x32x32x128xbf16, #tpu.memory_space<vmem>>, vector<1x16x32x128xbf16>
    %7 = vector.shape_cast %6 : vector<1x16x32x128xbf16> to vector<512x128xbf16>
    %c0_6 = arith.constant 0 : index
    %c0_7 = arith.constant 0 : index
    %8 = vector.load %arg3[%c0_6, %c0_7] : memref<128x32xbf16, #tpu.memory_space<vmem>>, vector<128x32xbf16>
    %cst_8 = arith.constant dense<0.000000e+00> : vector<512x32xf32>
    %9 = tpu.matmul %7, %8, %cst_8 {dimension_numbers = #tpu.dot_dimension_numbers<[1], [0], [0], [1], [0, 0, 1, 1], [], []>} : vector<512x128xbf16>, vector<128x32xbf16>, vector<512x32xf32> -> vector<512x32xf32>
    %c0_9 = arith.constant 0 : index
    %c0_10 = arith.constant 0 : index
    %10 = vector.load %arg4[%c0_9, %c0_10] : memref<1x32xf32, #tpu.memory_space<vmem>>, vector<1x32xf32>
    %11 = vector.broadcast %10 : vector<1x32xf32> to vector<512x32xf32>
    %12 = arith.addf %9, %11 : vector<512x32xf32>
    %cst_11 = arith.constant 0.000000e+00 : f32
    %13 = vector.broadcast %cst_11 : f32 to vector<512x32xf32>
    %14 = arith.maximumf %12, %13 : vector<512x32xf32>
    %15 = vector.shape_cast %14 : vector<512x32xf32> to vector<16x32x32xf32>
    %16 = arith.truncf %15 : vector<16x32x32xf32> to vector<16x32x32xbf16>
    %c1 = arith.constant 1 : index
    %c0_12 = arith.constant 0 : index
    %c32 = arith.constant 32 : index
    %17 = vector.load %arg10[%c1, %c0_12, %c32] : memref<18x32x96xbf16, #tpu.memory_space<vmem>>, vector<16x32x32xbf16>
    tpu.vector_store %arg10[%c1, %c0_12, %c32], %16 {strides = array<i32>} : memref<18x32x96xbf16, #tpu.memory_space<vmem>>, vector<16x32x32xbf16>,
    %18 = vector.extract_strided_slice %16 {offsets = [0, 0, 0], sizes = [16, 31, 32], strides = [1, 1, 1]} : vector<16x32x32xbf16> to vector<16x31x32xbf16>
    %c1_13 = arith.constant 1 : index
    %c1_14 = arith.constant 1 : index
    %c0_15 = arith.constant 0 : index
    %19 = vector.load %arg10[%c1_13, %c1_14, %c0_15] : memref<18x32x96xbf16, #tpu.memory_space<vmem>>, vector<16x31x32xbf16>
    tpu.vector_store %arg10[%c1_13, %c1_14, %c0_15], %18 {strides = array<i32>} : memref<18x32x96xbf16, #tpu.memory_space<vmem>>, vector<16x31x32xbf16>,
    %20 = vector.extract_strided_slice %16 {offsets = [0, 1, 0], sizes = [16, 31, 32], strides = [1, 1, 1]} : vector<16x32x32xbf16> to vector<16x31x32xbf16>
    %c1_16 = arith.constant 1 : index
    %c0_17 = arith.constant 0 : index
    %c64_18 = arith.constant 64 : index
    %21 = vector.load %arg10[%c1_16, %c0_17, %c64_18] : memref<18x32x96xbf16, #tpu.memory_space<vmem>>, vector<16x31x32xbf16>
    tpu.vector_store %arg10[%c1_16, %c0_17, %c64_18], %20 {strides = array<i32>} : memref<18x32x96xbf16, #tpu.memory_space<vmem>>, vector<16x31x32xbf16>,
    %cst_19 = arith.constant 0.000000e+00 : bf16
    %22 = vector.broadcast %cst_19 : bf16 to vector<1x32x96xbf16>
    %c0_i32 = arith.constant 0 : i32
    %23 = arith.cmpi eq, %arg1, %c0_i32 : i32
    %24 = arith.extui %23 : i1 to i32
    %c0_i32_20 = arith.constant 0 : i32
    %25 = arith.cmpi ne, %24, %c0_i32_20 : i32
    scf.if %25 {
      %c0_59 = arith.constant 0 : index
      %c0_60 = arith.constant 0 : index
      %c0_61 = arith.constant 0 : index
      %70 = vector.load %arg10[%c0_59, %c0_60, %c0_61] : memref<18x32x96xbf16, #tpu.memory_space<vmem>>, vector<1x32x96xbf16>
      tpu.vector_store %arg10[%c0_59, %c0_60, %c0_61], %22 {strides = array<i32>} : memref<18x32x96xbf16, #tpu.memory_space<vmem>>, vector<1x32x96xbf16>,
    } else {
    }
    %c0_i32_21 = arith.constant 0 : i32
    %26 = arith.cmpi sgt, %arg1, %c0_i32_21 : i32
    %27 = arith.extui %26 : i1 to i32
    %c0_i32_22 = arith.constant 0 : i32
    %28 = arith.cmpi ne, %27, %c0_i32_22 : i32
    scf.if %28 {
      %c1_i32_59 = arith.constant 1 : i32
      %70 = arith.subi %1, %c1_i32_59 : i32
      %c0_60 = arith.constant 0 : index
      %71 = arith.index_cast %70 : i32 to index
      %c0_61 = arith.constant 0 : index
      %c0_62 = arith.constant 0 : index
      %72 = vector.load %arg2[%c0_60, %71, %c0_61, %c0_62] : memref<1x32x32x128xbf16, #tpu.memory_space<vmem>>, vector<1x1x32x128xbf16>
      %73 = vector.shape_cast %72 : vector<1x1x32x128xbf16> to vector<32x128xbf16>
      %c0_63 = arith.constant 0 : index
      %c0_64 = arith.constant 0 : index
      %74 = vector.load %arg3[%c0_63, %c0_64] : memref<128x32xbf16, #tpu.memory_space<vmem>>, vector<128x32xbf16>
      %cst_65 = arith.constant dense<0.000000e+00> : vector<32x32xf32>
      %75 = tpu.matmul %73, %74, %cst_65 {dimension_numbers = #tpu.dot_dimension_numbers<[1], [0], [0], [1], [0, 0, 1, 1], [], []>} : vector<32x128xbf16>, vector<128x32xbf16>, vector<32x32xf32> -> vector<32x32xf32>
      %c0_66 = arith.constant 0 : index
      %c0_67 = arith.constant 0 : index
      %76 = vector.load %arg4[%c0_66, %c0_67] : memref<1x32xf32, #tpu.memory_space<vmem>>, vector<1x32xf32>
      %77 = vector.broadcast %76 : vector<1x32xf32> to vector<32x32xf32>
      %78 = arith.addf %75, %77 : vector<32x32xf32>
      %cst_68 = arith.constant 0.000000e+00 : f32
      %79 = vector.broadcast %cst_68 : f32 to vector<32x32xf32>
      %80 = arith.maximumf %78, %79 : vector<32x32xf32>
      %81 = vector.shape_cast %80 : vector<32x32xf32> to vector<1x32x32xf32>
      %82 = arith.truncf %81 : vector<1x32x32xf32> to vector<1x32x32xbf16>
      %c0_69 = arith.constant 0 : index
      %c0_70 = arith.constant 0 : index
      %c32_71 = arith.constant 32 : index
      %83 = vector.load %arg10[%c0_69, %c0_70, %c32_71] : memref<18x32x96xbf16, #tpu.memory_space<vmem>>, vector<1x32x32xbf16>
      tpu.vector_store %arg10[%c0_69, %c0_70, %c32_71], %82 {strides = array<i32>} : memref<18x32x96xbf16, #tpu.memory_space<vmem>>, vector<1x32x32xbf16>,
      %84 = vector.extract_strided_slice %82 {offsets = [0, 0, 0], sizes = [1, 31, 32], strides = [1, 1, 1]} : vector<1x32x32xbf16> to vector<1x31x32xbf16>
      %c0_72 = arith.constant 0 : index
      %c1_73 = arith.constant 1 : index
      %c0_74 = arith.constant 0 : index
      %85 = vector.load %arg10[%c0_72, %c1_73, %c0_74] : memref<18x32x96xbf16, #tpu.memory_space<vmem>>, vector<1x31x32xbf16>
      tpu.vector_store %arg10[%c0_72, %c1_73, %c0_74], %84 {strides = array<i32>} : memref<18x32x96xbf16, #tpu.memory_space<vmem>>, vector<1x31x32xbf16>,
      %86 = vector.extract_strided_slice %82 {offsets = [0, 1, 0], sizes = [1, 31, 32], strides = [1, 1, 1]} : vector<1x32x32xbf16> to vector<1x31x32xbf16>
      %c0_75 = arith.constant 0 : index
      %c0_76 = arith.constant 0 : index
      %c64_77 = arith.constant 64 : index
      %87 = vector.load %arg10[%c0_75, %c0_76, %c64_77] : memref<18x32x96xbf16, #tpu.memory_space<vmem>>, vector<1x31x32xbf16>
      tpu.vector_store %arg10[%c0_75, %c0_76, %c64_77], %86 {strides = array<i32>} : memref<18x32x96xbf16, #tpu.memory_space<vmem>>, vector<1x31x32xbf16>,
    } else {
    }
    %c1_i32 = arith.constant 1 : i32
    %29 = arith.cmpi eq, %arg1, %c1_i32 : i32
    %30 = arith.extui %29 : i1 to i32
    %c0_i32_23 = arith.constant 0 : i32
    %31 = arith.cmpi ne, %30, %c0_i32_23 : i32
    scf.if %31 {
      %c17 = arith.constant 17 : index
      %c0_59 = arith.constant 0 : index
      %c0_60 = arith.constant 0 : index
      %70 = vector.load %arg10[%c17, %c0_59, %c0_60] : memref<18x32x96xbf16, #tpu.memory_space<vmem>>, vector<1x32x96xbf16>
      tpu.vector_store %arg10[%c17, %c0_59, %c0_60], %22 {strides = array<i32>} : memref<18x32x96xbf16, #tpu.memory_space<vmem>>, vector<1x32x96xbf16>,
    } else {
    }
    %c1_i32_24 = arith.constant 1 : i32
    %32 = arith.cmpi slt, %arg1, %c1_i32_24 : i32
    %33 = arith.extui %32 : i1 to i32
    %c0_i32_25 = arith.constant 0 : i32
    %34 = arith.cmpi ne, %33, %c0_i32_25 : i32
    scf.if %34 {
      %c16_i32_59 = arith.constant 16 : i32
      %70 = arith.addi %1, %c16_i32_59 : i32
      %c0_60 = arith.constant 0 : index
      %71 = arith.index_cast %70 : i32 to index
      %c0_61 = arith.constant 0 : index
      %c0_62 = arith.constant 0 : index
      %72 = vector.load %arg2[%c0_60, %71, %c0_61, %c0_62] : memref<1x32x32x128xbf16, #tpu.memory_space<vmem>>, vector<1x1x32x128xbf16>
      %73 = vector.shape_cast %72 : vector<1x1x32x128xbf16> to vector<32x128xbf16>
      %c0_63 = arith.constant 0 : index
      %c0_64 = arith.constant 0 : index
      %74 = vector.load %arg3[%c0_63, %c0_64] : memref<128x32xbf16, #tpu.memory_space<vmem>>, vector<128x32xbf16>
      %cst_65 = arith.constant dense<0.000000e+00> : vector<32x32xf32>
      %75 = tpu.matmul %73, %74, %cst_65 {dimension_numbers = #tpu.dot_dimension_numbers<[1], [0], [0], [1], [0, 0, 1, 1], [], []>} : vector<32x128xbf16>, vector<128x32xbf16>, vector<32x32xf32> -> vector<32x32xf32>
      %c0_66 = arith.constant 0 : index
      %c0_67 = arith.constant 0 : index
      %76 = vector.load %arg4[%c0_66, %c0_67] : memref<1x32xf32, #tpu.memory_space<vmem>>, vector<1x32xf32>
      %77 = vector.broadcast %76 : vector<1x32xf32> to vector<32x32xf32>
      %78 = arith.addf %75, %77 : vector<32x32xf32>
      %cst_68 = arith.constant 0.000000e+00 : f32
      %79 = vector.broadcast %cst_68 : f32 to vector<32x32xf32>
      %80 = arith.maximumf %78, %79 : vector<32x32xf32>
      %81 = vector.shape_cast %80 : vector<32x32xf32> to vector<1x32x32xf32>
      %82 = arith.truncf %81 : vector<1x32x32xf32> to vector<1x32x32xbf16>
      %c17 = arith.constant 17 : index
      %c0_69 = arith.constant 0 : index
      %c32_70 = arith.constant 32 : index
      %83 = vector.load %arg10[%c17, %c0_69, %c32_70] : memref<18x32x96xbf16, #tpu.memory_space<vmem>>, vector<1x32x32xbf16>
      tpu.vector_store %arg10[%c17, %c0_69, %c32_70], %82 {strides = array<i32>} : memref<18x32x96xbf16, #tpu.memory_space<vmem>>, vector<1x32x32xbf16>,
      %84 = vector.extract_strided_slice %82 {offsets = [0, 0, 0], sizes = [1, 31, 32], strides = [1, 1, 1]} : vector<1x32x32xbf16> to vector<1x31x32xbf16>
      %c17_71 = arith.constant 17 : index
      %c1_72 = arith.constant 1 : index
      %c0_73 = arith.constant 0 : index
      %85 = vector.load %arg10[%c17_71, %c1_72, %c0_73] : memref<18x32x96xbf16, #tpu.memory_space<vmem>>, vector<1x31x32xbf16>
      tpu.vector_store %arg10[%c17_71, %c1_72, %c0_73], %84 {strides = array<i32>} : memref<18x32x96xbf16, #tpu.memory_space<vmem>>, vector<1x31x32xbf16>,
      %86 = vector.extract_strided_slice %82 {offsets = [0, 1, 0], sizes = [1, 31, 32], strides = [1, 1, 1]} : vector<1x32x32xbf16> to vector<1x31x32xbf16>
      %c17_74 = arith.constant 17 : index
      %c0_75 = arith.constant 0 : index
      %c64_76 = arith.constant 64 : index
      %87 = vector.load %arg10[%c17_74, %c0_75, %c64_76] : memref<18x32x96xbf16, #tpu.memory_space<vmem>>, vector<1x31x32xbf16>
      tpu.vector_store %arg10[%c17_74, %c0_75, %c64_76], %86 {strides = array<i32>} : memref<18x32x96xbf16, #tpu.memory_space<vmem>>, vector<1x31x32xbf16>,
    } else {
    }
    %c0_26 = arith.constant 0 : index
    %c0_27 = arith.constant 0 : index
    %c0_28 = arith.constant 0 : index
    %35 = vector.load %arg10[%c0_26, %c0_27, %c0_28] : memref<18x32x96xbf16, #tpu.memory_space<vmem>>, vector<16x32x96xbf16>
    %36 = vector.shape_cast %35 : vector<16x32x96xbf16> to vector<512x96xbf16>
    %c0_29 = arith.constant 0 : index
    %c0_30 = arith.constant 0 : index
    %c0_31 = arith.constant 0 : index
    %37 = vector.load %arg5[%c0_29, %c0_30, %c0_31] : memref<3x96x32xbf16, #tpu.memory_space<vmem>>, vector<1x96x32xbf16>
    %38 = vector.shape_cast %37 : vector<1x96x32xbf16> to vector<96x32xbf16>
    %cst_32 = arith.constant dense<0.000000e+00> : vector<512x32xf32>
    %39 = tpu.matmul %36, %38, %cst_32 {dimension_numbers = #tpu.dot_dimension_numbers<[1], [0], [0], [1], [0, 0, 1, 1], [], []>} : vector<512x96xbf16>, vector<96x32xbf16>, vector<512x32xf32> -> vector<512x32xf32>
    %c1_33 = arith.constant 1 : index
    %c0_34 = arith.constant 0 : index
    %c0_35 = arith.constant 0 : index
    %40 = vector.load %arg10[%c1_33, %c0_34, %c0_35] : memref<18x32x96xbf16, #tpu.memory_space<vmem>>, vector<16x32x96xbf16>
    %41 = vector.shape_cast %40 : vector<16x32x96xbf16> to vector<512x96xbf16>
    %c1_36 = arith.constant 1 : index
    %c0_37 = arith.constant 0 : index
    %c0_38 = arith.constant 0 : index
    %42 = vector.load %arg5[%c1_36, %c0_37, %c0_38] : memref<3x96x32xbf16, #tpu.memory_space<vmem>>, vector<1x96x32xbf16>
    %43 = vector.shape_cast %42 : vector<1x96x32xbf16> to vector<96x32xbf16>
    %cst_39 = arith.constant dense<0.000000e+00> : vector<512x32xf32>
    %44 = tpu.matmul %41, %43, %cst_39 {dimension_numbers = #tpu.dot_dimension_numbers<[1], [0], [0], [1], [0, 0, 1, 1], [], []>} : vector<512x96xbf16>, vector<96x32xbf16>, vector<512x32xf32> -> vector<512x32xf32>
    %45 = arith.addf %39, %44 : vector<512x32xf32>
    %c2 = arith.constant 2 : index
    %c0_40 = arith.constant 0 : index
    %c0_41 = arith.constant 0 : index
    %46 = vector.load %arg10[%c2, %c0_40, %c0_41] : memref<18x32x96xbf16, #tpu.memory_space<vmem>>, vector<16x32x96xbf16>
    %47 = vector.shape_cast %46 : vector<16x32x96xbf16> to vector<512x96xbf16>
    %c2_42 = arith.constant 2 : index
    %c0_43 = arith.constant 0 : index
    %c0_44 = arith.constant 0 : index
    %48 = vector.load %arg5[%c2_42, %c0_43, %c0_44] : memref<3x96x32xbf16, #tpu.memory_space<vmem>>, vector<1x96x32xbf16>
    %49 = vector.shape_cast %48 : vector<1x96x32xbf16> to vector<96x32xbf16>
    %cst_45 = arith.constant dense<0.000000e+00> : vector<512x32xf32>
    %50 = tpu.matmul %47, %49, %cst_45 {dimension_numbers = #tpu.dot_dimension_numbers<[1], [0], [0], [1], [0, 0, 1, 1], [], []>} : vector<512x96xbf16>, vector<96x32xbf16>, vector<512x32xf32> -> vector<512x32xf32>
    %51 = arith.addf %45, %50 : vector<512x32xf32>
    %c0_46 = arith.constant 0 : index
    %c0_47 = arith.constant 0 : index
    %52 = vector.load %arg6[%c0_46, %c0_47] : memref<1x32xf32, #tpu.memory_space<vmem>>, vector<1x32xf32>
    %53 = vector.broadcast %52 : vector<1x32xf32> to vector<512x32xf32>
    %54 = arith.addf %51, %53 : vector<512x32xf32>
    %cst_48 = arith.constant 0.000000e+00 : f32
    %55 = vector.broadcast %cst_48 : f32 to vector<512x32xf32>
    %56 = arith.maximumf %54, %55 : vector<512x32xf32>
    %57 = arith.truncf %56 : vector<512x32xf32> to vector<512x32xbf16>
    %c0_49 = arith.constant 0 : index
    %c0_50 = arith.constant 0 : index
    %58 = vector.load %arg7[%c0_49, %c0_50] : memref<32x128xbf16, #tpu.memory_space<vmem>>, vector<32x128xbf16>
    %cst_51 = arith.constant dense<0.000000e+00> : vector<512x128xf32>
    %59 = tpu.matmul %57, %58, %cst_51 {dimension_numbers = #tpu.dot_dimension_numbers<[1], [0], [0], [1], [0, 0, 1, 1], [], []>} : vector<512x32xbf16>, vector<32x128xbf16>, vector<512x128xf32> -> vector<512x128xf32>
    %c0_52 = arith.constant 0 : index
    %c0_53 = arith.constant 0 : index
    %60 = vector.load %arg8[%c0_52, %c0_53] : memref<1x128xf32, #tpu.memory_space<vmem>>, vector<1x128xf32>
    %61 = vector.broadcast %60 : vector<1x128xf32> to vector<512x128xf32>
    %62 = arith.addf %59, %61 : vector<512x128xf32>
    %63 = arith.extf %7 : vector<512x128xbf16> to vector<512x128xf32>
    %64 = arith.addf %62, %63 : vector<512x128xf32>
    %cst_54 = arith.constant 0.000000e+00 : f32
    %65 = vector.broadcast %cst_54 : f32 to vector<512x128xf32>
    %66 = arith.maximumf %64, %65 : vector<512x128xf32>
    %67 = vector.shape_cast %66 : vector<512x128xf32> to vector<1x16x32x128xf32>
    %68 = arith.truncf %67 : vector<1x16x32x128xf32> to vector<1x16x32x128xbf16>
    %c0_55 = arith.constant 0 : index
    %c0_56 = arith.constant 0 : index
    %c0_57 = arith.constant 0 : index
    %c0_58 = arith.constant 0 : index
    %69 = vector.load %arg9[%c0_55, %c0_56, %c0_57, %c0_58] : memref<1x16x32x128xbf16, #tpu.memory_space<vmem>>, vector<1x16x32x128xbf16>
    tpu.vector_store %arg9[%c0_55, %c0_56, %c0_57, %c0_58], %68 {strides = array<i32>} : memref<1x16x32x128xbf16, #tpu.memory_space<vmem>>, vector<1x16x32x128xbf16>,
    return
  }
  func.func @transform_0(%arg0: i32, %arg1: i32) -> (i32, i32, i32, i32) {
    %c0_i32 = arith.constant 0 : i32
    %c0_i32_0 = arith.constant 0 : i32
    %c0_i32_1 = arith.constant 0 : i32
    %c0_i32_2 = arith.constant 0 : i32
    return %arg0, %c0_i32, %c0_i32_0, %c0_i32_1 : i32, i32, i32, i32
  }
  func.func @transform_1(%arg0: i32, %arg1: i32) -> (i32, i32) {
    %c0_i32 = arith.constant 0 : i32
    %c0_i32_0 = arith.constant 0 : i32
    %c0_i32_1 = arith.constant 0 : i32
    return %c0_i32, %c0_i32_0 : i32, i32
  }
  func.func @transform_2(%arg0: i32, %arg1: i32) -> (i32, i32) {
    %c0_i32 = arith.constant 0 : i32
    %c0_i32_0 = arith.constant 0 : i32
    %c0_i32_1 = arith.constant 0 : i32
    return %c0_i32, %c0_i32_0 : i32, i32
  }
  func.func @transform_3(%arg0: i32, %arg1: i32) -> (i32, i32, i32) {
    %c0_i32 = arith.constant 0 : i32
    %c0_i32_0 = arith.constant 0 : i32
    %c0_i32_1 = arith.constant 0 : i32
    %c0_i32_2 = arith.constant 0 : i32
    return %c0_i32, %c0_i32_0, %c0_i32_1 : i32, i32, i32
  }
  func.func @transform_4(%arg0: i32, %arg1: i32) -> (i32, i32) {
    %c0_i32 = arith.constant 0 : i32
    %c0_i32_0 = arith.constant 0 : i32
    %c0_i32_1 = arith.constant 0 : i32
    return %c0_i32, %c0_i32_0 : i32, i32
  }
  func.func @transform_5(%arg0: i32, %arg1: i32) -> (i32, i32) {
    %c0_i32 = arith.constant 0 : i32
    %c0_i32_0 = arith.constant 0 : i32
    %c0_i32_1 = arith.constant 0 : i32
    return %c0_i32, %c0_i32_0 : i32, i32
  }
  func.func @transform_6(%arg0: i32, %arg1: i32) -> (i32, i32) {
    %c0_i32 = arith.constant 0 : i32
    %c0_i32_0 = arith.constant 0 : i32
    %c0_i32_1 = arith.constant 0 : i32
    return %c0_i32, %c0_i32_0 : i32, i32
  }
  func.func @transform_7(%arg0: i32, %arg1: i32) -> (i32, i32, i32, i32) {
    %c0_i32 = arith.constant 0 : i32
    %c0_i32_0 = arith.constant 0 : i32
    %c0_i32_1 = arith.constant 0 : i32
    return %arg0, %arg1, %c0_i32, %c0_i32_0 : i32, i32, i32, i32
  }
}

</mosaic_0001>

<llo_original>
// kernel: tpu_custom_call.1
$region0: #{tpu_custom_call.1}
  #allocation0 [shape = 'u32[]', space=smem, size = 0x4, offset = 0x4, fixed_abs, tag = 'smem constant byte address 0x4 - core index']
  #allocation1 [shape = 'u32[144,128]{1,0:T(1,128)}', space=vmem, size = 0x12000, scoped, tag = 'internal scratch']
  #allocation2 [shape = 'bf16[18,32,96]{2,1,0:T(16,128)(2,1)}', space=vmem, size = 0x24000, scoped, tag = 'scratch operand']
  %s0 = inlined_call_operand.hbm [shape: bf16[2,32,32,128], index: 0, kind: input, shape index: {}]
  %s1 = inlined_call_operand.vmem [shape: bf16[128,32], index: 1, kind: input, shape index: {}]
  %s2 = inlined_call_operand.vmem [shape: f32[1,32], index: 2, kind: input, shape index: {}]
  %s3 = inlined_call_operand.vmem [shape: bf16[3,96,32], index: 3, kind: input, shape index: {}]
  %s4 = inlined_call_operand.vmem [shape: f32[1,32], index: 4, kind: input, shape index: {}]
  %s5 = inlined_call_operand.vmem [shape: bf16[32,128], index: 5, kind: input, shape index: {}]
  %s6 = inlined_call_operand.vmem [shape: f32[1,128], index: 6, kind: input, shape index: {}]
  %s7 = inlined_call_operand.hbm [shape: bf16[2,32,32,128], index: 7, kind: output, shape index: {}]
  %s8 = sld [smem:[#allocation0]]
  $region81: #{tpu_custom_call.1} parent=0
    _
  %s10 = ssub.s32 1, %s8
  %s11 = scalar_select 0, %s10, %s8
  $region1: #{tpu_custom_call.1} parent=0
    #allocation3 [shape = 'u8[524288]{0}', space=vmem, size = 0x80000, scoped, tag = 'input window, operand 0']
    #allocation4 [shape = 's32[2]{0}', space=sflag, size = 0x8, scoped, tag = 'scoped memory for tpu_custom_call.1']
    #allocation5 [shape = 's32[2]{0}', space=sflag, size = 0x8, scoped, tag = 'scoped memory for tpu_custom_call.1']
    #allocation6 [shape = 'u8[262144]{0}', space=vmem, size = 0x40000, scoped, tag = 'output window, operand 0']
    %12 = vsyncpa [#allocation4], 0
    %s13 = scalar_lea.sflag [#allocation4], 1
    %14 = vsyncpa %s13, 0
    %15 = vsyncpa [#allocation5], 0
    %s16 = scalar_lea.sflag [#allocation5], 1
    %17 = vsyncpa %s16, 0
    loop: start=0, step=1, limit=6
    $region2: #{tpu_custom_call.1} parent=1 // loop_pre_header
      _
    $region3: #{tpu_custom_call.1} parent=1 // loop_header
      %s19 = sphi 0, %s23
      %p20 = scmp.ge.s32.totalorder %s19, 6
      %s26 = sphi 0, %s38
      %s27 = sphi 0, %s34
      %s28 = sphi 0, %s26
      %s29 = sphi 0, %s27
      %s30 = sphi 0, %s28
      %s31 = sphi 0, %s29
      %s41 = sphi 0, %s43
      %s44 = sphi 0, %s41
      %s45 = sphi 0, %s44
      %s61 = sphi 0, %s45
      %s65 = sphi 0, %s65
      %s67 = sphi 0, %s65
      %s68 = sphi 0, %s67
      %s82 = sphi 0, %s68
      %s86 = sphi 0, %s86
      %s88 = sphi 0, %s86
      %s89 = sphi 0, %s88
      %s103 = sphi 0, %s89
      %s107 = sphi 0, %s107
      %s109 = sphi 0, %s107
      %s110 = sphi 0, %s109
      %s124 = sphi 0, %s110
      %s128 = sphi 0, %s128
      %s130 = sphi 0, %s128
      %s131 = sphi 0, %s130
      %s145 = sphi 0, %s131
      %s149 = sphi 0, %s149
      %s151 = sphi 0, %s149
      %s152 = sphi 0, %s151
      %s166 = sphi 0, %s152
      %s170 = sphi 0, %s170
      %s172 = sphi 0, %s170
      %s173 = sphi 0, %s172
      %s187 = sphi 0, %s173
      %s195 = sphi 0, %s197
      %s198 = sphi 0, %s195
      %s199 = sphi 0, %s198
      %s215 = sphi 0, %s199
    $region4: #{tpu_custom_call.1} parent=1 // loop_header_branch
      %22 = sbr.rel (%p20) target = $region8
    $region5: #{tpu_custom_call.1} parent=1 // loop_body
      %s24 = ssub.s32 %s19, 1
      %s25 = ssub.s32 %s19, 2
      %s32 = sadd.s32 1, %s27
      %p33 = scmp.ge.s32.totalorder %s32, 2
      %s34 = scalar_select %p33, 0, %s32
      %s35 = sadd.s32 1, %s26
      %s36 = scalar_select %p33, %s35, %s26
      %p37 = scmp.ge.s32.totalorder %s36, 2
      %s38 = scalar_select %p37, 0, %s36
      %s39 = ssub.s32 %s26, %s38
      %p40 = scmp.eq.s32.totalorder %s39, 0
      %s42 = sadd.s32 %s41, 1
      %s43 = scalar_select %p40, %s41, %s42
      %p46 = pneg %p40
      %p47 = scmp.eq.s32.totalorder %s19, 3
      %p48 = por %p46, %p47
      %p49 = scmp.ne.s32.totalorder %s41, %s44
      %p50 = scmp.eq.s32.totalorder %s19, 0
      %p51 = por %p49, %p50
      %p52 = scmp.ne.s32.totalorder %s41, %s44
      %p53 = scmp.eq.s32.totalorder %s24, 3
      %p54 = por %p52, %p53
      %p55 = scmp.ne.s32.totalorder %s44, %s45
      %p56 = scmp.eq.s32.totalorder %s24, 0
      %p57 = por %p55, %p56
      %p58 = scmp.ne.s32.totalorder %s44, %s45
      %p59 = scmp.eq.s32.totalorder %s25, 3
      %p60 = por %p58, %p59
      %p62 = scmp.ne.s32.totalorder %s45, %s61
      %p63 = scmp.eq.s32.totalorder %s25, 0
      %p64 = por %p62, %p63
      %s66 = sadd.s32 %s65, 1
      %p69 = scmp.eq.s32.totalorder %s19, 3
      %p70 = scmp.ne.s32.totalorder %s65, %s67
      %p71 = scmp.eq.s32.totalorder %s19, 0
      %p72 = por %p70, %p71
      %p73 = scmp.ne.s32.totalorder %s65, %s67
      %p74 = scmp.eq.s32.totalorder %s24, 3
      %p75 = por %p73, %p74
      %p76 = scmp.ne.s32.totalorder %s67, %s68
      %p77 = scmp.eq.s32.totalorder %s24, 0
      %p78 = por %p76, %p77
      %p79 = scmp.ne.s32.totalorder %s67, %s68
      %p80 = scmp.eq.s32.totalorder %s25, 3
      %p81 = por %p79, %p80
      %p83 = scmp.ne.s32.totalorder %s68, %s82
      %p84 = scmp.eq.s32.totalorder %s25, 0
      %p85 = por %p83, %p84
      %s87 = sadd.s32 %s86, 1
      %p90 = scmp.eq.s32.totalorder %s19, 3
      %p91 = scmp.ne.s32.totalorder %s86, %s88
      %p92 = scmp.eq.s32.totalorder %s19, 0
      %p93 = por %p91, %p92
      %p94 = scmp.ne.s32.totalorder %s86, %s88
      %p95 = scmp.eq.s32.totalorder %s24, 3
      %p96 = por %p94, %p95
      %p97 = scmp.ne.s32.totalorder %s88, %s89
      %p98 = scmp.eq.s32.totalorder %s24, 0
      %p99 = por %p97, %p98
      %p100 = scmp.ne.s32.totalorder %s88, %s89
      %p101 = scmp.eq.s32.totalorder %s25, 3
      %p102 = por %p100, %p101
      %p104 = scmp.ne.s32.totalorder %s89, %s103
      %p105 = scmp.eq.s32.totalorder %s25, 0
      %p106 = por %p104, %p105
      %s108 = sadd.s32 %s107, 1
      %p111 = scmp.eq.s32.totalorder %s19, 3
      %p112 = scmp.ne.s32.totalorder %s107, %s109
      %p113 = scmp.eq.s32.totalorder %s19, 0
      %p114 = por %p112, %p113
      %p115 = scmp.ne.s32.totalorder %s107, %s109
      %p116 = scmp.eq.s32.totalorder %s24, 3
      %p117 = por %p115, %p116
      %p118 = scmp.ne.s32.totalorder %s109, %s110
      %p119 = scmp.eq.s32.totalorder %s24, 0
      %p120 = por %p118, %p119
      %p121 = scmp.ne.s32.totalorder %s109, %s110
      %p122 = scmp.eq.s32.totalorder %s25, 3
      %p123 = por %p121, %p122
      %p125 = scmp.ne.s32.totalorder %s110, %s124
      %p126 = scmp.eq.s32.totalorder %s25, 0
      %p127 = por %p125, %p126
      %s129 = sadd.s32 %s128, 1
      %p132 = scmp.eq.s32.totalorder %s19, 3
      %p133 = scmp.ne.s32.totalorder %s128, %s130
      %p134 = scmp.eq.s32.totalorder %s19, 0
      %p135 = por %p133, %p134
      %p136 = scmp.ne.s32.totalorder %s128, %s130
      %p137 = scmp.eq.s32.totalorder %s24, 3
      %p138 = por %p136, %p137
      %p139 = scmp.ne.s32.totalorder %s130, %s131
      %p140 = scmp.eq.s32.totalorder %s24, 0
      %p141 = por %p139, %p140
      %p142 = scmp.ne.s32.totalorder %s130, %s131
      %p143 = scmp.eq.s32.totalorder %s25, 3
      %p144 = por %p142, %p143
      %p146 = scmp.ne.s32.totalorder %s131, %s145
      %p147 = scmp.eq.s32.totalorder %s25, 0
      %p148 = por %p146, %p147
      %s150 = sadd.s32 %s149, 1
      %p153 = scmp.eq.s32.totalorder %s19, 3
      %p154 = scmp.ne.s32.totalorder %s149, %s151
      %p155 = scmp.eq.s32.totalorder %s19, 0
      %p156 = por %p154, %p155
      %p157 = scmp.ne.s32.totalorder %s149, %s151
      %p158 = scmp.eq.s32.totalorder %s24, 3
      %p159 = por %p157, %p158
      %p160 = scmp.ne.s32.totalorder %s151, %s152
      %p161 = scmp.eq.s32.totalorder %s24, 0
      %p162 = por %p160, %p161
      %p163 = scmp.ne.s32.totalorder %s151, %s152
      %p164 = scmp.eq.s32.totalorder %s25, 3
      %p165 = por %p163, %p164
      %p167 = scmp.ne.s32.totalorder %s152, %s166
      %p168 = scmp.eq.s32.totalorder %s25, 0
      %p169 = por %p167, %p168
      %s171 = sadd.s32 %s170, 1
      %p174 = scmp.eq.s32.totalorder %s19, 3
      %p175 = scmp.ne.s32.totalorder %s170, %s172
      %p176 = scmp.eq.s32.totalorder %s19, 0
      %p177 = por %p175, %p176
      %p178 = scmp.ne.s32.totalorder %s170, %s172
      %p179 = scmp.eq.s32.totalorder %s24, 3
      %p180 = por %p178, %p179
      %p181 = scmp.ne.s32.totalorder %s172, %s173
      %p182 = scmp.eq.s32.totalorder %s24, 0
      %p183 = por %p181, %p182
      %p184 = scmp.ne.s32.totalorder %s172, %s173
      %p185 = scmp.eq.s32.totalorder %s25, 3
      %p186 = por %p184, %p185
      %p188 = scmp.ne.s32.totalorder %s173, %s187
      %p189 = scmp.eq.s32.totalorder %s25, 0
      %p190 = por %p188, %p189
      %s191 = ssub.s32 %s26, %s38
      %s192 = ssub.s32 %s27, %s34
      %s193 = sor.u32 %s191, %s192
      %p194 = scmp.eq.s32.totalorder %s193, 0
      %s196 = sadd.s32 %s195, 1
      %s197 = scalar_select %p194, %s195, %s196
      %p200 = pneg %p194
      %p201 = scmp.eq.s32.totalorder %s19, 3
      %p202 = por %p200, %p201
      %p203 = scmp.ne.s32.totalorder %s195, %s198
      %p204 = scmp.eq.s32.totalorder %s19, 0
      %p205 = por %p203, %p204
      %p206 = scmp.ne.s32.totalorder %s195, %s198
      %p207 = scmp.eq.s32.totalorder %s24, 3
      %p208 = por %p206, %p207
      %p209 = scmp.ne.s32.totalorder %s198, %s199
      %p210 = scmp.eq.s32.totalorder %s24, 0
      %p211 = por %p209, %p210
      %p212 = scmp.ne.s32.totalorder %s198, %s199
      %p213 = scmp.eq.s32.totalorder %s25, 3
      %p214 = por %p212, %p213
      %p216 = scmp.ne.s32.totalorder %s199, %s215
      %p217 = scmp.eq.s32.totalorder %s25, 0
      %p218 = por %p216, %p217
      %p219 = scmp.le.s32.totalorder 1, %s19
      %p220 = scmp.lt.s32.totalorder %s19, 5
      %p221 = pnand %p219, %p220
      %p222 = pneg %p221
      // Predicated region
      $region9: #{tpu_custom_call.1} parent=5 // pred_check
        _
      $region10: #{tpu_custom_call.1} parent=5 // pred_check_branch
        %224 = sbr.rel (%p221) target = $region12
      $region11: #{tpu_custom_call.1} parent=5 // pred_region
        %s225 = ssub.s32 %s19, 1
        // Predicated region
        $region13: #{tpu_custom_call.1} parent=11 // pred_check
          %p226 = pneg %p78
        $region14: #{tpu_custom_call.1} parent=11 // pred_check_branch
          %228 = sbr.rel (%p226) target = $region16
        $region15: #{tpu_custom_call.1} parent=11 // pred_region
          _
        $region16: #{tpu_custom_call.1} parent=11 // pred_fallthru
          _
        // Predicated region
        $region17: #{tpu_custom_call.1} parent=11 // pred_check
          %p229 = pneg %p99
        $region18: #{tpu_custom_call.1} parent=11 // pred_check_branch
          %231 = sbr.rel (%p229) target = $region20
        $region19: #{tpu_custom_call.1} parent=11 // pred_region
          _
        $region20: #{tpu_custom_call.1} parent=11 // pred_fallthru
          _
        // Predicated region
        $region21: #{tpu_custom_call.1} parent=11 // pred_check
          %p232 = pneg %p120
        $region22: #{tpu_custom_call.1} parent=11 // pred_check_branch
          %234 = sbr.rel (%p232) target = $region24
        $region23: #{tpu_custom_call.1} parent=11 // pred_region
          _
        $region24: #{tpu_custom_call.1} parent=11 // pred_fallthru
          _
        // Predicated region
        $region25: #{tpu_custom_call.1} parent=11 // pred_check
          %p235 = pneg %p141
        $region26: #{tpu_custom_call.1} parent=11 // pred_check_branch
          %237 = sbr.rel (%p235) target = $region28
        $region27: #{tpu_custom_call.1} parent=11 // pred_region
          _
        $region28: #{tpu_custom_call.1} parent=11 // pred_fallthru
          _
        // Predicated region
        $region29: #{tpu_custom_call.1} parent=11 // pred_check
          %p238 = pneg %p162
        $region30: #{tpu_custom_call.1} parent=11 // pred_check_branch
          %240 = sbr.rel (%p238) target = $region32
        $region31: #{tpu_custom_call.1} parent=11 // pred_region
          _
        $region32: #{tpu_custom_call.1} parent=11 // pred_fallthru
          _
        // Predicated region
        $region33: #{tpu_custom_call.1} parent=11 // pred_check
          %p241 = pneg %p183
        $region34: #{tpu_custom_call.1} parent=11 // pred_check_branch
          %243 = sbr.rel (%p241) target = $region36
        $region35: #{tpu_custom_call.1} parent=11 // pred_region
          _
        $region36: #{tpu_custom_call.1} parent=11 // pred_fallthru
          _
      $region12: #{tpu_custom_call.1} parent=5 // pred_fallthru
        _
      %p244 = scmp.lt.s32.totalorder %s19, 4
      // Predicated region
      $region37: #{tpu_custom_call.1} parent=5 // pred_check
        %p245 = pneg %p244
      $region38: #{tpu_custom_call.1} parent=5 // pred_check_branch
        %247 = sbr.rel (%p245) target = $region40
      $region39: #{tpu_custom_call.1} parent=5 // pred_region
        // Predicated region
        $region41: #{tpu_custom_call.1} parent=39 // pred_check
          %p248 = pneg %p51
        $region42: #{tpu_custom_call.1} parent=39 // pred_check_branch
          %250 = sbr.rel (%p248) target = $region44
        $region43: #{tpu_custom_call.1} parent=39 // pred_region
          %s251 = sand.u32 %s41, 1
          %s252 = scalar_lea.sflag [#allocation4], %s251
          %s253 = sand.u32 %s41, 1
          %s254 = smul.addr %s253, 512
          %s255 = scalar_lea.vmem [#allocation3], %s254
          %s257 = ssub.s32 8192, 8192
          %258 = vsyncadd %s252, %s257
          %s259 = smul.addr %s26, 128
          %s260 = smul.addr %s259, 64
          %s261 = scalar_lea.hbm %s0, %s260
          %s262 = sshll.u32 %s255, 4
          %s263 = int_to_ptr.vmem [resolvable:$true] %s262
          %268 = dma.hbm_to_vmem [thread:$0]  %s261, 8192, %s263, %s252, 64, 64, 4
        $region44: #{tpu_custom_call.1} parent=39 // pred_fallthru
          _
      $region40: #{tpu_custom_call.1} parent=5 // pred_fallthru
        _
      %p269 = scmp.le.s32.totalorder 1, %s19
      %p270 = scmp.lt.s32.totalorder %s19, 5
      %p271 = pnand %p269, %p270
      %p272 = pneg %p271
      // Predicated region
      $region45: #{tpu_custom_call.1} parent=5 // pred_check
        _
      $region46: #{tpu_custom_call.1} parent=5 // pred_check_branch
        %274 = sbr.rel (%p271) target = $region48
      $region47: #{tpu_custom_call.1} parent=5 // pred_region
        %s275 = ssub.s32 %s19, 1
        %s276 = sand.u32 %s44, 1
        %s277 = scalar_lea.sflag [#allocation4], %s276
        %s278 = sand.u32 %s44, 1
        %s279 = smul.addr %s278, 512
        %s280 = scalar_lea.vmem [#allocation3], %s279
        // Predicated region
        $region49: #{tpu_custom_call.1} parent=47 // pred_check
          %p281 = pneg %p57
        $region50: #{tpu_custom_call.1} parent=47 // pred_check_branch
          %283 = sbr.rel (%p281) target = $region52
        $region51: #{tpu_custom_call.1} parent=47 // pred_region
          %284 = dma.done %s277, 8192
        $region52: #{tpu_custom_call.1} parent=47 // pred_fallthru
          _
        %s285 = sand.u32 %s44, 1
        %s286 = scalar_lea.sflag [#allocation4], %s285
        %s287 = sand.u32 %s44, 1
        %s288 = smul.addr %s287, 512
        %s289 = scalar_lea.vmem [#allocation3], %s288
        %p290 = pneg %p57
        %p291 = pneg %p54
        %p292 = pneg %p78
        %p293 = pneg %p75
        %p294 = pneg %p99
        %p295 = pneg %p96
        %p296 = pneg %p120
        %p297 = pneg %p117
        %p298 = pneg %p141
        %p299 = pneg %p138
        %p300 = pneg %p162
        %p301 = pneg %p159
        %p302 = pneg %p183
        %p303 = pneg %p180
        %p304 = pneg %p211
        %p305 = pneg %p208
        %s306 = sand.u32 %s198, 1
        %s307 = scalar_lea.sflag [#allocation5], %s306
        %s308 = sand.u32 %s198, 1
        %s309 = smul.addr %s308, 256
        %s310 = scalar_lea.vmem [#allocation6], %s309
        %s311 = smul.u32 16, %s29
        %s313 = smul.u32 %s29, 16
        %vm314 = vcmask 253952
        %vm315 = vsmask.f32 256
        %vm316 = vmand %vm314, %vm315
        %v317 = vld [vmem:[#allocation2] sm:$0x1]
        %v318 = vsel %vm316, 0, %v317
        %319 = vst [vmem:[#allocation2] sm:$0x1] %v318
        %v320 = vld [vmem:[#allocation2 + $0x10] sm:$0x1]
        %v321 = vsel %vm316, 0, %v320
        %322 = vst [vmem:[#allocation2 + $0x10] sm:$0x1] %v321
        %v323 = vld [vmem:[#allocation2 + $0x20] sm:$0x1]
        %v324 = vsel %vm316, 0, %v323
        %325 = vst [vmem:[#allocation2 + $0x20] sm:$0x1] %v324
        %v326 = vld [vmem:[#allocation2 + $0x30] sm:$0x1]
        %v327 = vsel %vm316, 0, %v326
        %328 = vst [vmem:[#allocation2 + $0x30] sm:$0x1] %v327
        %v329 = vld [vmem:[#allocation2 + $0x40] sm:$0x1]
        %v330 = vsel %vm316, 0, %v329
        %331 = vst [vmem:[#allocation2 + $0x40] sm:$0x1] %v330
        %v332 = vld [vmem:[#allocation2 + $0x50] sm:$0x1]
        %v333 = vsel %vm316, 0, %v332
        %334 = vst [vmem:[#allocation2 + $0x50] sm:$0x1] %v333
        %v335 = vld [vmem:[#allocation2 + $0x60] sm:$0x1]
        %v336 = vsel %vm316, 0, %v335
        %337 = vst [vmem:[#allocation2 + $0x60] sm:$0x1] %v336
        %v338 = vld [vmem:[#allocation2 + $0x70] sm:$0x1]
        %v339 = vsel %vm316, 0, %v338
        %340 = vst [vmem:[#allocation2 + $0x70] sm:$0x1] %v339
        %v341 = vld [vmem:[#allocation2 + $0x80] sm:$0x1]
        %v342 = vsel %vm316, 0, %v341
        %343 = vst [vmem:[#allocation2 + $0x80] sm:$0x1] %v342
        %v344 = vld [vmem:[#allocation2 + $0x90] sm:$0x1]
        %v345 = vsel %vm316, 0, %v344
        %346 = vst [vmem:[#allocation2 + $0x90] sm:$0x1] %v345
        %v347 = vld [vmem:[#allocation2 + $0xa0] sm:$0x1]
        %v348 = vsel %vm316, 0, %v347
        %349 = vst [vmem:[#allocation2 + $0xa0] sm:$0x1] %v348
        %v350 = vld [vmem:[#allocation2 + $0xb0] sm:$0x1]
        %v351 = vsel %vm316, 0, %v350
        %352 = vst [vmem:[#allocation2 + $0xb0] sm:$0x1] %v351
        %v353 = vld [vmem:[#allocation2 + $0xc0] sm:$0x1]
        %v354 = vsel %vm316, 0, %v353
        %355 = vst [vmem:[#allocation2 + $0xc0] sm:$0x1] %v354
        %v356 = vld [vmem:[#allocation2 + $0xd0] sm:$0x1]
        %v357 = vsel %vm316, 0, %v356
        %358 = vst [vmem:[#allocation2 + $0xd0] sm:$0x1] %v357
        %v359 = vld [vmem:[#allocation2 + $0xe0] sm:$0x1]
        %v360 = vsel %vm316, 0, %v359
        %361 = vst [vmem:[#allocation2 + $0xe0] sm:$0x1] %v360
        %v362 = vld [vmem:[#allocation2 + $0xf0] sm:$0x1]
        %v363 = vsel %vm316, 0, %v362
        %364 = vst [vmem:[#allocation2 + $0xf0] sm:$0x1] %v363
        %v365 = vld [vmem:[#allocation2 + $0x100] sm:$0x1]
        %v366 = vsel %vm316, 0, %v365
        %367 = vst [vmem:[#allocation2 + $0x100] sm:$0x1] %v366
        %v368 = vld [vmem:[#allocation2 + $0x110] sm:$0x1]
        %v369 = vsel %vm316, 0, %v368
        %370 = vst [vmem:[#allocation2 + $0x110] sm:$0x1] %v369
        %vm371 = vcmask 785927
        %vm372 = vsmask.f32 7966
        %vm373 = vmand %vm371, %vm372
        %v374 = vld [vmem:[#allocation2 + $0x8] sm:$0x80]
        %v375 = vsel %vm373, 0, %v374
        %376 = vst [vmem:[#allocation2 + $0x8] sm:$0x80] %v375
        %v377 = vld [vmem:[#allocation2 + $0x18] sm:$0x80]
        %v378 = vsel %vm373, 0, %v377
        %379 = vst [vmem:[#allocation2 + $0x18] sm:$0x80] %v378
        %v380 = vld [vmem:[#allocation2 + $0x28] sm:$0x80]
        %v381 = vsel %vm373, 0, %v380
        %382 = vst [vmem:[#allocation2 + $0x28] sm:$0x80] %v381
        %v383 = vld [vmem:[#allocation2 + $0x38] sm:$0x80]
        %v384 = vsel %vm373, 0, %v383
        %385 = vst [vmem:[#allocation2 + $0x38] sm:$0x80] %v384
        %v386 = vld [vmem:[#allocation2 + $0x48] sm:$0x80]
        %v387 = vsel %vm373, 0, %v386
        %388 = vst [vmem:[#allocation2 + $0x48] sm:$0x80] %v387
        %v389 = vld [vmem:[#allocation2 + $0x58] sm:$0x80]
        %v390 = vsel %vm373, 0, %v389
        %391 = vst [vmem:[#allocation2 + $0x58] sm:$0x80] %v390
        %v392 = vld [vmem:[#allocation2 + $0x68] sm:$0x80]
        %v393 = vsel %vm373, 0, %v392
        %394 = vst [vmem:[#allocation2 + $0x68] sm:$0x80] %v393
        %v395 = vld [vmem:[#allocation2 + $0x78] sm:$0x80]
        %v396 = vsel %vm373, 0, %v395
        %397 = vst [vmem:[#allocation2 + $0x78] sm:$0x80] %v396
        %v398 = vld [vmem:[#allocation2 + $0x88] sm:$0x80]
        %v399 = vsel %vm373, 0, %v398
        %400 = vst [vmem:[#allocation2 + $0x88] sm:$0x80] %v399
        %v401 = vld [vmem:[#allocation2 + $0x98] sm:$0x80]
        %v402 = vsel %vm373, 0, %v401
        %403 = vst [vmem:[#allocation2 + $0x98] sm:$0x80] %v402
        %v404 = vld [vmem:[#allocation2 + $0xa8] sm:$0x80]
        %v405 = vsel %vm373, 0, %v404
        %406 = vst [vmem:[#allocation2 + $0xa8] sm:$0x80] %v405
        %v407 = vld [vmem:[#allocation2 + $0xb8] sm:$0x80]
        %v408 = vsel %vm373, 0, %v407
        %409 = vst [vmem:[#allocation2 + $0xb8] sm:$0x80] %v408
        %v410 = vld [vmem:[#allocation2 + $0xc8] sm:$0x80]
        %v411 = vsel %vm373, 0, %v410
        %412 = vst [vmem:[#allocation2 + $0xc8] sm:$0x80] %v411
        %v413 = vld [vmem:[#allocation2 + $0xd8] sm:$0x80]
        %v414 = vsel %vm373, 0, %v413
        %415 = vst [vmem:[#allocation2 + $0xd8] sm:$0x80] %v414
        %v416 = vld [vmem:[#allocation2 + $0xe8] sm:$0x80]
        %v417 = vsel %vm373, 0, %v416
        %418 = vst [vmem:[#allocation2 + $0xe8] sm:$0x80] %v417
        %v419 = vld [vmem:[#allocation2 + $0xf8] sm:$0x80]
        %v420 = vsel %vm373, 0, %v419
        %421 = vst [vmem:[#allocation2 + $0xf8] sm:$0x80] %v420
        %v422 = vld [vmem:[#allocation2 + $0x108] sm:$0x80]
        %v423 = vsel %vm373, 0, %v422
        %424 = vst [vmem:[#allocation2 + $0x108] sm:$0x80] %v423
        %v425 = vld [vmem:[#allocation2 + $0x118] sm:$0x80]
        %v426 = vsel %vm373, 0, %v425
        %427 = vst [vmem:[#allocation2 + $0x118] sm:$0x80] %v426
        %s428 = smul.u32 %s313, 4
        %s429 = smul.addr %s428, 4
        %s430 = scalar_lea.vmem %s280, %s429 [#allocation3]
        %v431 = vld [vmem:[%s430] sm:$0xf]
        %v432 = vld [vmem:[%s430 + $0x4] sm:$0xf]
        %v433 = vld [vmem:[%s430 + $0x8] sm:$0xf]
        %v434 = vld [vmem:[%s430 + $0xc] sm:$0xf]
        %v435 = vld [vmem:[%s430 + $0x10] sm:$0xf]
        %v436 = vld [vmem:[%s430 + $0x14] sm:$0xf]
        %v437 = vld [vmem:[%s430 + $0x18] sm:$0xf]
        %v438 = vld [vmem:[%s430 + $0x1c] sm:$0xf]
        %v439 = vld [vmem:[%s430 + $0x20] sm:$0xf]
        %v440 = vld [vmem:[%s430 + $0x24] sm:$0xf]
        %v441 = vld [vmem:[%s430 + $0x28] sm:$0xf]
        %v442 = vld [vmem:[%s430 + $0x2c] sm:$0xf]
        %v443 = vld [vmem:[%s430 + $0x30] sm:$0xf]
        %v444 = vld [vmem:[%s430 + $0x34] sm:$0xf]
        %v445 = vld [vmem:[%s430 + $0x38] sm:$0xf]
        %v446 = vld [vmem:[%s430 + $0x3c] sm:$0xf]
        %v447 = vld [vmem:[%s430 + $0x40] sm:$0xf]
        %v448 = vld [vmem:[%s430 + $0x44] sm:$0xf]
        %v449 = vld [vmem:[%s430 + $0x48] sm:$0xf]
        %v450 = vld [vmem:[%s430 + $0x4c] sm:$0xf]
        %v451 = vld [vmem:[%s430 + $0x50] sm:$0xf]
        %v452 = vld [vmem:[%s430 + $0x54] sm:$0xf]
        %v453 = vld [vmem:[%s430 + $0x58] sm:$0xf]
        %v454 = vld [vmem:[%s430 + $0x5c] sm:$0xf]
        %v455 = vld [vmem:[%s430 + $0x60] sm:$0xf]
        %v456 = vld [vmem:[%s430 + $0x64] sm:$0xf]
        %v457 = vld [vmem:[%s430 + $0x68] sm:$0xf]
        %v458 = vld [vmem:[%s430 + $0x6c] sm:$0xf]
        %v459 = vld [vmem:[%s430 + $0x70] sm:$0xf]
        %v460 = vld [vmem:[%s430 + $0x74] sm:$0xf]
        %v461 = vld [vmem:[%s430 + $0x78] sm:$0xf]
        %v462 = vld [vmem:[%s430 + $0x7c] sm:$0xf]
        %v463 = vld [vmem:[%s430 + $0x80] sm:$0xf]
        %v464 = vld [vmem:[%s430 + $0x84] sm:$0xf]
        %v465 = vld [vmem:[%s430 + $0x88] sm:$0xf]
        %v466 = vld [vmem:[%s430 + $0x8c] sm:$0xf]
        %v467 = vld [vmem:[%s430 + $0x90] sm:$0xf]
        %v468 = vld [vmem:[%s430 + $0x94] sm:$0xf]
        %v469 = vld [vmem:[%s430 + $0x98] sm:$0xf]
        %v470 = vld [vmem:[%s430 + $0x9c] sm:$0xf]
        %v471 = vld [vmem:[%s430 + $0xa0] sm:$0xf]
        %v472 = vld [vmem:[%s430 + $0xa4] sm:$0xf]
        %v473 = vld [vmem:[%s430 + $0xa8] sm:$0xf]
        %v474 = vld [vmem:[%s430 + $0xac] sm:$0xf]
        %v475 = vld [vmem:[%s430 + $0xb0] sm:$0xf]
        %v476 = vld [vmem:[%s430 + $0xb4] sm:$0xf]
        %v477 = vld [vmem:[%s430 + $0xb8] sm:$0xf]
        %v478 = vld [vmem:[%s430 + $0xbc] sm:$0xf]
        %v479 = vld [vmem:[%s430 + $0xc0] sm:$0xf]
        %v480 = vld [vmem:[%s430 + $0xc4] sm:$0xf]
        %v481 = vld [vmem:[%s430 + $0xc8] sm:$0xf]
        %v482 = vld [vmem:[%s430 + $0xcc] sm:$0xf]
        %v483 = vld [vmem:[%s430 + $0xd0] sm:$0xf]
        %v484 = vld [vmem:[%s430 + $0xd4] sm:$0xf]
        %v485 = vld [vmem:[%s430 + $0xd8] sm:$0xf]
        %v486 = vld [vmem:[%s430 + $0xdc] sm:$0xf]
        %v487 = vld [vmem:[%s430 + $0xe0] sm:$0xf]
        %v488 = vld [vmem:[%s430 + $0xe4] sm:$0xf]
        %v489 = vld [vmem:[%s430 + $0xe8] sm:$0xf]
        %v490 = vld [vmem:[%s430 + $0xec] sm:$0xf]
        %v491 = vld [vmem:[%s430 + $0xf0] sm:$0xf]
        %v492 = vld [vmem:[%s430 + $0xf4] sm:$0xf]
        %v493 = vld [vmem:[%s430 + $0xf8] sm:$0xf]
        %v494 = vld [vmem:[%s430 + $0xfc] sm:$0xf]
        %v495 = vld [vmem:[%s1] sm:$0xf]
        %v496 = vld [vmem:[%s1 + $0x4] sm:$0xf]
        %v497 = vld [vmem:[%s1 + $0x8] sm:$0xf]
        %v498 = vld [vmem:[%s1 + $0xc] sm:$0xf]
        %v499 = vld [vmem:[%s1 + $0x10] sm:$0xf]
        %v500 = vld [vmem:[%s1 + $0x14] sm:$0xf]
        %v501 = vld [vmem:[%s1 + $0x18] sm:$0xf]
        %v502 = vld [vmem:[%s1 + $0x1c] sm:$0xf]
        %v503 = vld [vmem:[%s1 + $0x20] sm:$0xf]
        %v504 = vld [vmem:[%s1 + $0x24] sm:$0xf]
        %v505 = vld [vmem:[%s1 + $0x28] sm:$0xf]
        %v506 = vld [vmem:[%s1 + $0x2c] sm:$0xf]
        %v507 = vld [vmem:[%s1 + $0x30] sm:$0xf]
        %v508 = vld [vmem:[%s1 + $0x34] sm:$0xf]
        %v509 = vld [vmem:[%s1 + $0x38] sm:$0xf]
        %v510 = vld [vmem:[%s1 + $0x3c] sm:$0xf]
        %v511 = vld [vmem:[%s2] sm:$0x1]
        %v513 = vlaneseq
        %v514 = vshrl.u32 %v513, 7
        %v515 = vsub.s32 0, %v514
        %v516 = vrot.slane %v511, %v515
        %v582 = vunpack.c.l.b16 %v431
        %v583 = vunpack.c.l.b16 %v432
        %v584 = vunpack.c.l.b16 %v433
        %v585 = vunpack.c.l.b16 %v434
        %v586 = vunpack.c.l.b16 %v435
        %v587 = vunpack.c.l.b16 %v436
        %v588 = vunpack.c.l.b16 %v437
        %v589 = vunpack.c.l.b16 %v438
        %v590 = vunpack.c.l.b16 %v439
        %v591 = vunpack.c.l.b16 %v440
        %v592 = vunpack.c.l.b16 %v441
        %v593 = vunpack.c.l.b16 %v442
        %v594 = vunpack.c.l.b16 %v443
        %v595 = vunpack.c.l.b16 %v444
        %v596 = vunpack.c.l.b16 %v445
        %v597 = vunpack.c.l.b16 %v446
        %v598 = vunpack.c.l.b16 %v447
        %v599 = vunpack.c.l.b16 %v448
        %v600 = vunpack.c.l.b16 %v449
        %v601 = vunpack.c.l.b16 %v450
        %v602 = vunpack.c.l.b16 %v451
        %v603 = vunpack.c.l.b16 %v452
        %v604 = vunpack.c.l.b16 %v453
        %v605 = vunpack.c.l.b16 %v454
        %v606 = vunpack.c.l.b16 %v455
        %v607 = vunpack.c.l.b16 %v456
        %v608 = vunpack.c.l.b16 %v457
        %v609 = vunpack.c.l.b16 %v458
        %v610 = vunpack.c.l.b16 %v459
        %v611 = vunpack.c.l.b16 %v460
        %v612 = vunpack.c.l.b16 %v461
        %v613 = vunpack.c.l.b16 %v462
        %v614 = vunpack.c.l.b16 %v463
        %v615 = vunpack.c.l.b16 %v464
        %v616 = vunpack.c.l.b16 %v465
        %v617 = vunpack.c.l.b16 %v466
        %v618 = vunpack.c.l.b16 %v467
        %v619 = vunpack.c.l.b16 %v468
        %v620 = vunpack.c.l.b16 %v469
        %v621 = vunpack.c.l.b16 %v470
        %v622 = vunpack.c.l.b16 %v471
        %v623 = vunpack.c.l.b16 %v472
        %v624 = vunpack.c.l.b16 %v473
        %v625 = vunpack.c.l.b16 %v474
        %v626 = vunpack.c.l.b16 %v475
        %v627 = vunpack.c.l.b16 %v476
        %v628 = vunpack.c.l.b16 %v477
        %v629 = vunpack.c.l.b16 %v478
        %v630 = vunpack.c.l.b16 %v479
        %v631 = vunpack.c.l.b16 %v480
        %v632 = vunpack.c.l.b16 %v481
        %v633 = vunpack.c.l.b16 %v482
        %v634 = vunpack.c.l.b16 %v483
        %v635 = vunpack.c.l.b16 %v484
        %v636 = vunpack.c.l.b16 %v485
        %v637 = vunpack.c.l.b16 %v486
        %v638 = vunpack.c.l.b16 %v487
        %v639 = vunpack.c.l.b16 %v488
        %v640 = vunpack.c.l.b16 %v489
        %v641 = vunpack.c.l.b16 %v490
        %v642 = vunpack.c.l.b16 %v491
        %v643 = vunpack.c.l.b16 %v492
        %v644 = vunpack.c.l.b16 %v493
        %v645 = vunpack.c.l.b16 %v494
        %v646 = vpack.c.b16 %v583, %v582
        %v647 = vpack.c.b16 %v585, %v584
        %v648 = vpack.c.b16 %v587, %v586
        %v649 = vpack.c.b16 %v589, %v588
        %v650 = vpack.c.b16 %v591, %v590
        %v651 = vpack.c.b16 %v593, %v592
        %v652 = vpack.c.b16 %v595, %v594
        %v653 = vpack.c.b16 %v597, %v596
        %v654 = vpack.c.b16 %v599, %v598
        %v655 = vpack.c.b16 %v601, %v600
        %v656 = vpack.c.b16 %v603, %v602
        %v657 = vpack.c.b16 %v605, %v604
        %v658 = vpack.c.b16 %v607, %v606
        %v659 = vpack.c.b16 %v609, %v608
        %v660 = vpack.c.b16 %v611, %v610
        %v661 = vpack.c.b16 %v613, %v612
        %v662 = vpack.c.b16 %v615, %v614
        %v663 = vpack.c.b16 %v617, %v616
        %v664 = vpack.c.b16 %v619, %v618
        %v665 = vpack.c.b16 %v621, %v620
        %v666 = vpack.c.b16 %v623, %v622
        %v667 = vpack.c.b16 %v625, %v624
        %v668 = vpack.c.b16 %v627, %v626
        %v669 = vpack.c.b16 %v629, %v628
        %v670 = vpack.c.b16 %v631, %v630
        %v671 = vpack.c.b16 %v633, %v632
        %v672 = vpack.c.b16 %v635, %v634
        %v673 = vpack.c.b16 %v637, %v636
        %v674 = vpack.c.b16 %v639, %v638
        %v675 = vpack.c.b16 %v641, %v640
        %v676 = vpack.c.b16 %v643, %v642
        %v677 = vpack.c.b16 %v645, %v644
        %v726 = vunpack.c.l.b16 %v495
        %v727 = vunpack.c.l.b16 %v496
        %v728 = vunpack.c.l.b16 %v497
        %v729 = vunpack.c.l.b16 %v498
        %v730 = vunpack.c.l.b16 %v499
        %v731 = vunpack.c.l.b16 %v500
        %v732 = vunpack.c.l.b16 %v501
        %v733 = vunpack.c.l.b16 %v502
        %v734 = vunpack.c.l.b16 %v503
        %v735 = vunpack.c.l.b16 %v504
        %v736 = vunpack.c.l.b16 %v505
        %v737 = vunpack.c.l.b16 %v506
        %v738 = vunpack.c.l.b16 %v507
        %v739 = vunpack.c.l.b16 %v508
        %v740 = vunpack.c.l.b16 %v509
        %v741 = vunpack.c.l.b16 %v510
        %v742 = vpack.c.b16 %v727, %v726
        %v743 = vpack.c.b16 %v729, %v728
        %v744 = vpack.c.b16 %v731, %v730
        %v745 = vpack.c.b16 %v733, %v732
        %v746 = vpack.c.b16 %v735, %v734
        %v747 = vpack.c.b16 %v737, %v736
        %v748 = vpack.c.b16 %v739, %v738
        %v749 = vpack.c.b16 %v741, %v740
        %758 = vmatprep.subr.bf16.mxu0 0
        %759 = vmatpush1.bf16.msra.mxu0 %v742
        %760 = vmatprep.subr.bf16.mxu0 0
        %761 = vmatpush1.bf16.msra.mxu0 %v743
        %762 = vmatprep.subr.bf16.mxu0 0
        %763 = vmatpush1.bf16.msra.mxu0 %v744
        %764 = vmatprep.subr.bf16.mxu0 0
        %765 = vmatpush1.bf16.msra.mxu0 %v745
        %766 = vmatprep.subr.bf16.mxu0 0
        %767 = vmatpush1.bf16.msra.mxu0 %v746
        %768 = vmatprep.subr.bf16.mxu0 0
        %769 = vmatpush1.bf16.msra.mxu0 %v747
        %770 = vmatprep.subr.bf16.mxu0 0
        %771 = vmatpush1.bf16.msra.mxu0 %v748
        %772 = vmatprep.subr.bf16.mxu0 0
        %773 = vmatpush1.bf16.msra.mxu0 %v749
        %774 = vmatprep.subr.bf16.mxu0 0
        %775 = vmatpush1.bf16.msra.mxu0 0
        %776 = vmatprep.subr.bf16.mxu0 0
        %777 = vmatpush1.bf16.msra.mxu0 0
        %778 = vmatprep.subr.bf16.mxu0 0
        %779 = vmatpush1.bf16.msra.mxu0 0
        %780 = vmatprep.subr.bf16.mxu0 0
        %781 = vmatpush1.bf16.msra.mxu0 0
        %782 = vmatprep.subr.bf16.mxu0 0
        %783 = vmatpush1.bf16.msra.mxu0 0
        %784 = vmatprep.subr.bf16.mxu0 0
        %785 = vmatpush1.bf16.msra.mxu0 0
        %786 = vmatprep.subr.bf16.mxu0 0
        %787 = vmatpush1.bf16.msra.mxu0 0
        %788 = vmatprep.subr.bf16.mxu0 0
        %789 = vmatpush1.bf16.msra.mxu0 0
        %790 = vmatprep.mubr.bf16.mxu0 0
        %791 = vmatmul.mubr.bf16.gmra.mrb[0].mxu0 %v646
        %v792 = vpop.f32.mrb[0].mxu0
        %v793 = vadd.f32 %v516, %v792
        %v794 = vpop.f32.mrb[0].mxu0
        %v795 = vpop.f32.mrb[0].mxu0
        %v796 = vadd.f32 %v516, %v795
        %v797 = vpop.f32.mrb[0].mxu0
        %798 = vmatprep.mubr.bf16.mxu0 0
        %799 = vmatmul.mubr.bf16.gmra.mrb[0].mxu0 %v647
        %v800 = vpop.f32.mrb[0].mxu0
        %v801 = vadd.f32 %v516, %v800
        %v802 = vpop.f32.mrb[0].mxu0
        %v803 = vpop.f32.mrb[0].mxu0
        %v804 = vadd.f32 %v516, %v803
        %v805 = vpop.f32.mrb[0].mxu0
        %806 = vmatprep.mubr.bf16.mxu0 0
        %807 = vmatmul.mubr.bf16.gmra.mrb[0].mxu0 %v648
        %v808 = vpop.f32.mrb[0].mxu0
        %v809 = vadd.f32 %v516, %v808
        %v810 = vpop.f32.mrb[0].mxu0
        %v811 = vpop.f32.mrb[0].mxu0
        %v812 = vadd.f32 %v516, %v811
        %v813 = vpop.f32.mrb[0].mxu0
        %814 = vmatprep.mubr.bf16.mxu0 0
        %815 = vmatmul.mubr.bf16.gmra.mrb[0].mxu0 %v649
        %v816 = vpop.f32.mrb[0].mxu0
        %v817 = vadd.f32 %v516, %v816
        %v818 = vpop.f32.mrb[0].mxu0
        %v819 = vpop.f32.mrb[0].mxu0
        %v820 = vadd.f32 %v516, %v819
        %v821 = vpop.f32.mrb[0].mxu0
        %822 = vmatprep.mubr.bf16.mxu0 0
        %823 = vmatmul.mubr.bf16.gmra.mrb[0].mxu0 %v650
        %v824 = vpop.f32.mrb[0].mxu0
        %v825 = vadd.f32 %v516, %v824
        %v826 = vpop.f32.mrb[0].mxu0
        %v827 = vpop.f32.mrb[0].mxu0
        %v828 = vadd.f32 %v516, %v827
        %v829 = vpop.f32.mrb[0].mxu0
        %830 = vmatprep.mubr.bf16.mxu0 0
        %831 = vmatmul.mubr.bf16.gmra.mrb[0].mxu0 %v651
        %v832 = vpop.f32.mrb[0].mxu0
        %v833 = vadd.f32 %v516, %v832
        %v834 = vpop.f32.mrb[0].mxu0
        %v835 = vpop.f32.mrb[0].mxu0
        %v836 = vadd.f32 %v516, %v835
        %v837 = vpop.f32.mrb[0].mxu0
        %838 = vmatprep.mubr.bf16.mxu0 0
        %839 = vmatmul.mubr.bf16.gmra.mrb[0].mxu0 %v652
        %v840 = vpop.f32.mrb[0].mxu0
        %v841 = vadd.f32 %v516, %v840
        %v842 = vpop.f32.mrb[0].mxu0
        %v843 = vpop.f32.mrb[0].mxu0
        %v844 = vadd.f32 %v516, %v843
        %v845 = vpop.f32.mrb[0].mxu0
        %846 = vmatprep.mubr.bf16.mxu0 0
        %847 = vmatmul.mubr.bf16.gmra.mrb[0].mxu0 %v653
        %v848 = vpop.f32.mrb[0].mxu0
        %v849 = vadd.f32 %v516, %v848
        %v850 = vpop.f32.mrb[0].mxu0
        %v851 = vpop.f32.mrb[0].mxu0
        %v852 = vadd.f32 %v516, %v851
        %v853 = vpop.f32.mrb[0].mxu0
        %854 = vmatprep.mubr.bf16.mxu0 0
        %855 = vmatmul.mubr.bf16.gmra.mrb[0].mxu0 %v654
        %v856 = vpop.f32.mrb[0].mxu0
        %v857 = vadd.f32 %v516, %v856
        %v858 = vpop.f32.mrb[0].mxu0
        %v859 = vpop.f32.mrb[0].mxu0
        %v860 = vadd.f32 %v516, %v859
        %v861 = vpop.f32.mrb[0].mxu0
        %862 = vmatprep.mubr.bf16.mxu0 0
        %863 = vmatmul.mubr.bf16.gmra.mrb[0].mxu0 %v655
        %v864 = vpop.f32.mrb[0].mxu0
        %v865 = vadd.f32 %v516, %v864
        %v866 = vpop.f32.mrb[0].mxu0
        %v867 = vpop.f32.mrb[0].mxu0
        %v868 = vadd.f32 %v516, %v867
        %v869 = vpop.f32.mrb[0].mxu0
        %870 = vmatprep.mubr.bf16.mxu0 0
        %871 = vmatmul.mubr.bf16.gmra.mrb[0].mxu0 %v656
        %v872 = vpop.f32.mrb[0].mxu0
        %v873 = vadd.f32 %v516, %v872
        %v874 = vpop.f32.mrb[0].mxu0
        %v875 = vpop.f32.mrb[0].mxu0
        %v876 = vadd.f32 %v516, %v875
        %v877 = vpop.f32.mrb[0].mxu0
        %878 = vmatprep.mubr.bf16.mxu0 0
        %879 = vmatmul.mubr.bf16.gmra.mrb[0].mxu0 %v657
        %v880 = vpop.f32.mrb[0].mxu0
        %v881 = vadd.f32 %v516, %v880
        %v882 = vpop.f32.mrb[0].mxu0
        %v883 = vpop.f32.mrb[0].mxu0
        %v884 = vadd.f32 %v516, %v883
        %v885 = vpop.f32.mrb[0].mxu0
        %886 = vmatprep.mubr.bf16.mxu0 0
        %887 = vmatmul.mubr.bf16.gmra.mrb[0].mxu0 %v658
        %v888 = vpop.f32.mrb[0].mxu0
        %v889 = vadd.f32 %v516, %v888
        %v890 = vpop.f32.mrb[0].mxu0
        %v891 = vpop.f32.mrb[0].mxu0
        %v892 = vadd.f32 %v516, %v891
        %v893 = vpop.f32.mrb[0].mxu0
        %894 = vmatprep.mubr.bf16.mxu0 0
        %895 = vmatmul.mubr.bf16.gmra.mrb[0].mxu0 %v659
        %v896 = vpop.f32.mrb[0].mxu0
        %v897 = vadd.f32 %v516, %v896
        %v898 = vpop.f32.mrb[0].mxu0
        %v899 = vpop.f32.mrb[0].mxu0
        %v900 = vadd.f32 %v516, %v899
        %v901 = vpop.f32.mrb[0].mxu0
        %902 = vmatprep.mubr.bf16.mxu0 0
        %903 = vmatmul.mubr.bf16.gmra.mrb[0].mxu0 %v660
        %v904 = vpop.f32.mrb[0].mxu0
        %v905 = vadd.f32 %v516, %v904
        %v906 = vpop.f32.mrb[0].mxu0
        %v907 = vpop.f32.mrb[0].mxu0
        %v908 = vadd.f32 %v516, %v907
        %v909 = vpop.f32.mrb[0].mxu0
        %910 = vmatprep.mubr.bf16.mxu0 0
        %911 = vmatmul.mubr.bf16.gmra.mrb[0].mxu0 %v661
        %v912 = vpop.f32.mrb[0].mxu0
        %v913 = vadd.f32 %v516, %v912
        %v914 = vpop.f32.mrb[0].mxu0
        %v915 = vpop.f32.mrb[0].mxu0
        %v916 = vadd.f32 %v516, %v915
        %v917 = vpop.f32.mrb[0].mxu0
        %918 = vmatprep.mubr.bf16.mxu0 0
        %919 = vmatmul.mubr.bf16.gmra.mrb[0].mxu0 %v662
        %v920 = vpop.f32.mrb[0].mxu0
        %v921 = vadd.f32 %v516, %v920
        %v922 = vpop.f32.mrb[0].mxu0
        %v923 = vpop.f32.mrb[0].mxu0
        %v924 = vadd.f32 %v516, %v923
        %v925 = vpop.f32.mrb[0].mxu0
        %926 = vmatprep.mubr.bf16.mxu0 0
        %927 = vmatmul.mubr.bf16.gmra.mrb[0].mxu0 %v663
        %v928 = vpop.f32.mrb[0].mxu0
        %v929 = vadd.f32 %v516, %v928
        %v930 = vpop.f32.mrb[0].mxu0
        %v931 = vpop.f32.mrb[0].mxu0
        %v932 = vadd.f32 %v516, %v931
        %v933 = vpop.f32.mrb[0].mxu0
        %934 = vmatprep.mubr.bf16.mxu0 0
        %935 = vmatmul.mubr.bf16.gmra.mrb[0].mxu0 %v664
        %v936 = vpop.f32.mrb[0].mxu0
        %v937 = vadd.f32 %v516, %v936
        %v938 = vpop.f32.mrb[0].mxu0
        %v939 = vpop.f32.mrb[0].mxu0
        %v940 = vadd.f32 %v516, %v939
        %v941 = vpop.f32.mrb[0].mxu0
        %942 = vmatprep.mubr.bf16.mxu0 0
        %943 = vmatmul.mubr.bf16.gmra.mrb[0].mxu0 %v665
        %v944 = vpop.f32.mrb[0].mxu0
        %v945 = vadd.f32 %v516, %v944
        %v946 = vpop.f32.mrb[0].mxu0
        %v947 = vpop.f32.mrb[0].mxu0
        %v948 = vadd.f32 %v516, %v947
        %v949 = vpop.f32.mrb[0].mxu0
        %950 = vmatprep.mubr.bf16.mxu0 0
        %951 = vmatmul.mubr.bf16.gmra.mrb[0].mxu0 %v666
        %v952 = vpop.f32.mrb[0].mxu0
        %v953 = vadd.f32 %v516, %v952
        %v954 = vpop.f32.mrb[0].mxu0
        %v955 = vpop.f32.mrb[0].mxu0
        %v956 = vadd.f32 %v516, %v955
        %v957 = vpop.f32.mrb[0].mxu0
        %958 = vmatprep.mubr.bf16.mxu0 0
        %959 = vmatmul.mubr.bf16.gmra.mrb[0].mxu0 %v667
        %v960 = vpop.f32.mrb[0].mxu0
        %v961 = vadd.f32 %v516, %v960
        %v962 = vpop.f32.mrb[0].mxu0
        %v963 = vpop.f32.mrb[0].mxu0
        %v964 = vadd.f32 %v516, %v963
        %v965 = vpop.f32.mrb[0].mxu0
        %966 = vmatprep.mubr.bf16.mxu0 0
        %967 = vmatmul.mubr.bf16.gmra.mrb[0].mxu0 %v668
        %v968 = vpop.f32.mrb[0].mxu0
        %v969 = vadd.f32 %v516, %v968
        %v970 = vpop.f32.mrb[0].mxu0
        %v971 = vpop.f32.mrb[0].mxu0
        %v972 = vadd.f32 %v516, %v971
        %v973 = vpop.f32.mrb[0].mxu0
        %974 = vmatprep.mubr.bf16.mxu0 0
        %975 = vmatmul.mubr.bf16.gmra.mrb[0].mxu0 %v669
        %v976 = vpop.f32.mrb[0].mxu0
        %v977 = vadd.f32 %v516, %v976
        %v978 = vpop.f32.mrb[0].mxu0
        %v979 = vpop.f32.mrb[0].mxu0
        %v980 = vadd.f32 %v516, %v979
        %v981 = vpop.f32.mrb[0].mxu0
        %982 = vmatprep.mubr.bf16.mxu0 0
        %983 = vmatmul.mubr.bf16.gmra.mrb[0].mxu0 %v670
        %v984 = vpop.f32.mrb[0].mxu0
        %v985 = vadd.f32 %v516, %v984
        %v986 = vpop.f32.mrb[0].mxu0
        %v987 = vpop.f32.mrb[0].mxu0
        %v988 = vadd.f32 %v516, %v987
        %v989 = vpop.f32.mrb[0].mxu0
        %990 = vmatprep.mubr.bf16.mxu0 0
        %991 = vmatmul.mubr.bf16.gmra.mrb[0].mxu0 %v671
        %v992 = vpop.f32.mrb[0].mxu0
        %v993 = vadd.f32 %v516, %v992
        %v994 = vpop.f32.mrb[0].mxu0
        %v995 = vpop.f32.mrb[0].mxu0
        %v996 = vadd.f32 %v516, %v995
        %v997 = vpop.f32.mrb[0].mxu0
        %998 = vmatprep.mubr.bf16.mxu0 0
        %999 = vmatmul.mubr.bf16.gmra.mrb[0].mxu0 %v672
        %v1000 = vpop.f32.mrb[0].mxu0
        %v1001 = vadd.f32 %v516, %v1000
        %v1002 = vpop.f32.mrb[0].mxu0
        %v1003 = vpop.f32.mrb[0].mxu0
        %v1004 = vadd.f32 %v516, %v1003
        %v1005 = vpop.f32.mrb[0].mxu0
        %1006 = vmatprep.mubr.bf16.mxu0 0
        %1007 = vmatmul.mubr.bf16.gmra.mrb[0].mxu0 %v673
        %v1008 = vpop.f32.mrb[0].mxu0
        %v1009 = vadd.f32 %v516, %v1008
        %v1010 = vpop.f32.mrb[0].mxu0
        %v1011 = vpop.f32.mrb[0].mxu0
        %v1012 = vadd.f32 %v516, %v1011
        %v1013 = vpop.f32.mrb[0].mxu0
        %1014 = vmatprep.mubr.bf16.mxu0 0
        %1015 = vmatmul.mubr.bf16.gmra.mrb[0].mxu0 %v674
        %v1016 = vpop.f32.mrb[0].mxu0
        %v1017 = vadd.f32 %v516, %v1016
        %v1018 = vpop.f32.mrb[0].mxu0
        %v1019 = vpop.f32.mrb[0].mxu0
        %v1020 = vadd.f32 %v516, %v1019
        %v1021 = vpop.f32.mrb[0].mxu0
        %1022 = vmatprep.mubr.bf16.mxu0 0
        %1023 = vmatmul.mubr.bf16.gmra.mrb[0].mxu0 %v675
        %v1024 = vpop.f32.mrb[0].mxu0
        %v1025 = vadd.f32 %v516, %v1024
        %v1026 = vpop.f32.mrb[0].mxu0
        %v1027 = vpop.f32.mrb[0].mxu0
        %v1028 = vadd.f32 %v516, %v1027
        %v1029 = vpop.f32.mrb[0].mxu0
        %1030 = vmatprep.mubr.bf16.mxu0 0
        %1031 = vmatmul.mubr.bf16.gmra.mrb[0].mxu0 %v676
        %v1032 = vpop.f32.mrb[0].mxu0
        %v1033 = vadd.f32 %v516, %v1032
        %v1034 = vpop.f32.mrb[0].mxu0
        %v1035 = vpop.f32.mrb[0].mxu0
        %v1036 = vadd.f32 %v516, %v1035
        %v1037 = vpop.f32.mrb[0].mxu0
        %1038 = vmatprep.mubr.bf16.mxu0 0
        %1039 = vmatmul.mubr.bf16.gmra.mrb[0].mxu0 %v677
        %v1040 = vpop.f32.mrb[0].mxu0
        %v1041 = vadd.f32 %v516, %v1040
        %v1042 = vpop.f32.mrb[0].mxu0
        %v1043 = vpop.f32.mrb[0].mxu0
        %v1044 = vadd.f32 %v516, %v1043
        %v1045 = vpop.f32.mrb[0].mxu0
        %1046 = vdwg.mxu0
        %v1047 = vmax.f32 %v793, 0.0
        %v1048 = vmax.f32 %v796, 0.0
        %v1049 = vmax.f32 %v801, 0.0
        %v1050 = vmax.f32 %v804, 0.0
        %v1051 = vmax.f32 %v809, 0.0
        %v1052 = vmax.f32 %v812, 0.0
        %v1053 = vmax.f32 %v817, 0.0
        %v1054 = vmax.f32 %v820, 0.0
        %v1055 = vmax.f32 %v825, 0.0
        %v1056 = vmax.f32 %v828, 0.0
        %v1057 = vmax.f32 %v833, 0.0
        %v1058 = vmax.f32 %v836, 0.0
        %v1059 = vmax.f32 %v841, 0.0
        %v1060 = vmax.f32 %v844, 0.0
        %v1061 = vmax.f32 %v849, 0.0
        %v1062 = vmax.f32 %v852, 0.0
        %v1063 = vmax.f32 %v857, 0.0
        %v1064 = vmax.f32 %v860, 0.0
        %v1065 = vmax.f32 %v865, 0.0
        %v1066 = vmax.f32 %v868, 0.0
        %v1067 = vmax.f32 %v873, 0.0
        %v1068 = vmax.f32 %v876, 0.0
        %v1069 = vmax.f32 %v881, 0.0
        %v1070 = vmax.f32 %v884, 0.0
        %v1071 = vmax.f32 %v889, 0.0
        %v1072 = vmax.f32 %v892, 0.0
        %v1073 = vmax.f32 %v897, 0.0
        %v1074 = vmax.f32 %v900, 0.0
        %v1075 = vmax.f32 %v905, 0.0
        %v1076 = vmax.f32 %v908, 0.0
        %v1077 = vmax.f32 %v913, 0.0
        %v1078 = vmax.f32 %v916, 0.0
        %v1079 = vmax.f32 %v921, 0.0
        %v1080 = vmax.f32 %v924, 0.0
        %v1081 = vmax.f32 %v929, 0.0
        %v1082 = vmax.f32 %v932, 0.0
        %v1083 = vmax.f32 %v937, 0.0
        %v1084 = vmax.f32 %v940, 0.0
        %v1085 = vmax.f32 %v945, 0.0
        %v1086 = vmax.f32 %v948, 0.0
        %v1087 = vmax.f32 %v953, 0.0
        %v1088 = vmax.f32 %v956, 0.0
        %v1089 = vmax.f32 %v961, 0.0
        %v1090 = vmax.f32 %v964, 0.0
        %v1091 = vmax.f32 %v969, 0.0
        %v1092 = vmax.f32 %v972, 0.0
        %v1093 = vmax.f32 %v977, 0.0
        %v1094 = vmax.f32 %v980, 0.0
        %v1095 = vmax.f32 %v985, 0.0
        %v1096 = vmax.f32 %v988, 0.0
        %v1097 = vmax.f32 %v993, 0.0
        %v1098 = vmax.f32 %v996, 0.0
        %v1099 = vmax.f32 %v1001, 0.0
        %v1100 = vmax.f32 %v1004, 0.0
        %v1101 = vmax.f32 %v1009, 0.0
        %v1102 = vmax.f32 %v1012, 0.0
        %v1103 = vmax.f32 %v1017, 0.0
        %v1104 = vmax.f32 %v1020, 0.0
        %v1105 = vmax.f32 %v1025, 0.0
        %v1106 = vmax.f32 %v1028, 0.0
        %v1107 = vmax.f32 %v1033, 0.0
        %v1108 = vmax.f32 %v1036, 0.0
        %v1109 = vmax.f32 %v1041, 0.0
        %v1110 = vmax.f32 %v1044, 0.0
        %v1111 = vpack.c.bf16 %v1048, %v1047
        %v1112 = vpack.c.bf16 %v1050, %v1049
        %v1113 = vpack.c.bf16 %v1052, %v1051
        %v1114 = vpack.c.bf16 %v1054, %v1053
        %v1115 = vpack.c.bf16 %v1056, %v1055
        %v1116 = vpack.c.bf16 %v1058, %v1057
        %v1117 = vpack.c.bf16 %v1060, %v1059
        %v1118 = vpack.c.bf16 %v1062, %v1061
        %v1119 = vpack.c.bf16 %v1064, %v1063
        %v1120 = vpack.c.bf16 %v1066, %v1065
        %v1121 = vpack.c.bf16 %v1068, %v1067
        %v1122 = vpack.c.bf16 %v1070, %v1069
        %v1123 = vpack.c.bf16 %v1072, %v1071
        %v1124 = vpack.c.bf16 %v1074, %v1073
        %v1125 = vpack.c.bf16 %v1076, %v1075
        %v1126 = vpack.c.bf16 %v1078, %v1077
        %v1127 = vpack.c.bf16 %v1080, %v1079
        %v1128 = vpack.c.bf16 %v1082, %v1081
        %v1129 = vpack.c.bf16 %v1084, %v1083
        %v1130 = vpack.c.bf16 %v1086, %v1085
        %v1131 = vpack.c.bf16 %v1088, %v1087
        %v1132 = vpack.c.bf16 %v1090, %v1089
        %v1133 = vpack.c.bf16 %v1092, %v1091
        %v1134 = vpack.c.bf16 %v1094, %v1093
        %v1135 = vpack.c.bf16 %v1096, %v1095
        %v1136 = vpack.c.bf16 %v1098, %v1097
        %v1137 = vpack.c.bf16 %v1100, %v1099
        %v1138 = vpack.c.bf16 %v1102, %v1101
        %v1139 = vpack.c.bf16 %v1104, %v1103
        %v1140 = vpack.c.bf16 %v1106, %v1105
        %v1141 = vpack.c.bf16 %v1108, %v1107
        %v1142 = vpack.c.bf16 %v1110, %v1109
        %1175 = vrot.lane.b32.xlu0 %v1111, 32
        %v1176 = vpop.permute.xlu0 %1175
        %1177 = vrot.lane.b32.xlu0 %v1112, 32
        %v1178 = vpop.permute.xlu0 %1177
        %1179 = vrot.lane.b32.xlu0 %v1113, 32
        %v1180 = vpop.permute.xlu0 %1179
        %1181 = vrot.lane.b32.xlu0 %v1114, 32
        %v1182 = vpop.permute.xlu0 %1181
        %1183 = vrot.lane.b32.xlu0 %v1115, 32
        %v1184 = vpop.permute.xlu0 %1183
        %1185 = vrot.lane.b32.xlu0 %v1116, 32
        %v1186 = vpop.permute.xlu0 %1185
        %1187 = vrot.lane.b32.xlu0 %v1117, 32
        %v1188 = vpop.permute.xlu0 %1187
        %1189 = vrot.lane.b32.xlu0 %v1118, 32
        %v1190 = vpop.permute.xlu0 %1189
        %1191 = vrot.lane.b32.xlu0 %v1119, 32
        %v1192 = vpop.permute.xlu0 %1191
        %1193 = vrot.lane.b32.xlu0 %v1120, 32
        %v1194 = vpop.permute.xlu0 %1193
        %1195 = vrot.lane.b32.xlu0 %v1121, 32
        %v1196 = vpop.permute.xlu0 %1195
        %1197 = vrot.lane.b32.xlu0 %v1122, 32
        %v1198 = vpop.permute.xlu0 %1197
        %1199 = vrot.lane.b32.xlu0 %v1123, 32
        %v1200 = vpop.permute.xlu0 %1199
        %1201 = vrot.lane.b32.xlu0 %v1124, 32
        %v1202 = vpop.permute.xlu0 %1201
        %1203 = vrot.lane.b32.xlu0 %v1125, 32
        %v1204 = vpop.permute.xlu0 %1203
        %1205 = vrot.lane.b32.xlu0 %v1126, 32
        %v1206 = vpop.permute.xlu0 %1205
        %1207 = vrot.lane.b32.xlu0 %v1127, 32
        %v1208 = vpop.permute.xlu0 %1207
        %1209 = vrot.lane.b32.xlu0 %v1128, 32
        %v1210 = vpop.permute.xlu0 %1209
        %1211 = vrot.lane.b32.xlu0 %v1129, 32
        %v1212 = vpop.permute.xlu0 %1211
        %1213 = vrot.lane.b32.xlu0 %v1130, 32
        %v1214 = vpop.permute.xlu0 %1213
        %1215 = vrot.lane.b32.xlu0 %v1131, 32
        %v1216 = vpop.permute.xlu0 %1215
        %1217 = vrot.lane.b32.xlu0 %v1132, 32
        %v1218 = vpop.permute.xlu0 %1217
        %1219 = vrot.lane.b32.xlu0 %v1133, 32
        %v1220 = vpop.permute.xlu0 %1219
        %1221 = vrot.lane.b32.xlu0 %v1134, 32
        %v1222 = vpop.permute.xlu0 %1221
        %1223 = vrot.lane.b32.xlu0 %v1135, 32
        %v1224 = vpop.permute.xlu0 %1223
        %1225 = vrot.lane.b32.xlu0 %v1136, 32
        %v1226 = vpop.permute.xlu0 %1225
        %1227 = vrot.lane.b32.xlu0 %v1137, 32
        %v1228 = vpop.permute.xlu0 %1227
        %1229 = vrot.lane.b32.xlu0 %v1138, 32
        %v1230 = vpop.permute.xlu0 %1229
        %1231 = vrot.lane.b32.xlu0 %v1139, 32
        %v1232 = vpop.permute.xlu0 %1231
        %1233 = vrot.lane.b32.xlu0 %v1140, 32
        %v1234 = vpop.permute.xlu0 %1233
        %1235 = vrot.lane.b32.xlu0 %v1141, 32
        %v1236 = vpop.permute.xlu0 %1235
        %1237 = vrot.lane.b32.xlu0 %v1142, 32
        %v1238 = vpop.permute.xlu0 %1237
        %s1271 = scalar_lea.vmem [#allocation2], 16
        %vm1272 = vcmask 523520
        %1273 = vst.msk [vmem:[%s1271] sm:$0xff] %vm1272, %v1176
        %1274 = vst.msk [vmem:[%s1271 + $0x8] sm:$0xff] %vm1272, %v1178
        %1275 = vst.msk [vmem:[%s1271 + $0x10] sm:$0xff] %vm1272, %v1180
        %1276 = vst.msk [vmem:[%s1271 + $0x18] sm:$0xff] %vm1272, %v1182
        %1277 = vst.msk [vmem:[%s1271 + $0x20] sm:$0xff] %vm1272, %v1184
        %1278 = vst.msk [vmem:[%s1271 + $0x28] sm:$0xff] %vm1272, %v1186
        %1279 = vst.msk [vmem:[%s1271 + $0x30] sm:$0xff] %vm1272, %v1188
        %1280 = vst.msk [vmem:[%s1271 + $0x38] sm:$0xff] %vm1272, %v1190
        %1281 = vst.msk [vmem:[%s1271 + $0x40] sm:$0xff] %vm1272, %v1192
        %1282 = vst.msk [vmem:[%s1271 + $0x48] sm:$0xff] %vm1272, %v1194
        %1283 = vst.msk [vmem:[%s1271 + $0x50] sm:$0xff] %vm1272, %v1196
        %1284 = vst.msk [vmem:[%s1271 + $0x58] sm:$0xff] %vm1272, %v1198
        %1285 = vst.msk [vmem:[%s1271 + $0x60] sm:$0xff] %vm1272, %v1200
        %1286 = vst.msk [vmem:[%s1271 + $0x68] sm:$0xff] %vm1272, %v1202
        %1287 = vst.msk [vmem:[%s1271 + $0x70] sm:$0xff] %vm1272, %v1204
        %1288 = vst.msk [vmem:[%s1271 + $0x78] sm:$0xff] %vm1272, %v1206
        %1289 = vst.msk [vmem:[%s1271 + $0x80] sm:$0xff] %vm1272, %v1208
        %1290 = vst.msk [vmem:[%s1271 + $0x88] sm:$0xff] %vm1272, %v1210
        %1291 = vst.msk [vmem:[%s1271 + $0x90] sm:$0xff] %vm1272, %v1212
        %1292 = vst.msk [vmem:[%s1271 + $0x98] sm:$0xff] %vm1272, %v1214
        %1293 = vst.msk [vmem:[%s1271 + $0xa0] sm:$0xff] %vm1272, %v1216
        %1294 = vst.msk [vmem:[%s1271 + $0xa8] sm:$0xff] %vm1272, %v1218
        %1295 = vst.msk [vmem:[%s1271 + $0xb0] sm:$0xff] %vm1272, %v1220
        %1296 = vst.msk [vmem:[%s1271 + $0xb8] sm:$0xff] %vm1272, %v1222
        %1297 = vst.msk [vmem:[%s1271 + $0xc0] sm:$0xff] %vm1272, %v1224
        %1298 = vst.msk [vmem:[%s1271 + $0xc8] sm:$0xff] %vm1272, %v1226
        %1299 = vst.msk [vmem:[%s1271 + $0xd0] sm:$0xff] %vm1272, %v1228
        %1300 = vst.msk [vmem:[%s1271 + $0xd8] sm:$0xff] %vm1272, %v1230
        %1301 = vst.msk [vmem:[%s1271 + $0xe0] sm:$0xff] %vm1272, %v1232
        %1302 = vst.msk [vmem:[%s1271 + $0xe8] sm:$0xff] %vm1272, %v1234
        %1303 = vst.msk [vmem:[%s1271 + $0xf0] sm:$0xff] %vm1272, %v1236
        %1304 = vst.msk [vmem:[%s1271 + $0xf8] sm:$0xff] %vm1272, %v1238
        %v1306 = vshrl.u32 %v1111, 16
        %v1308 = vrot.slane %v1306, 7
        %v1309 = vshll.u32 %v1111, 16
        %v1311 = vor.u32 %v1308, %v1309
        %v1313 = vshrl.u32 %v1112, 16
        %v1315 = vrot.slane %v1313, 7
        %v1316 = vshll.u32 %v1112, 16
        %v1318 = vor.u32 %v1315, %v1316
        %v1319 = vsel %vm315, %v1308, %v1318
        %v1321 = vshrl.u32 %v1113, 16
        %v1323 = vrot.slane %v1321, 7
        %v1324 = vshll.u32 %v1113, 16
        %v1326 = vor.u32 %v1323, %v1324
        %v1328 = vshrl.u32 %v1114, 16
        %v1330 = vrot.slane %v1328, 7
        %v1331 = vshll.u32 %v1114, 16
        %v1333 = vor.u32 %v1330, %v1331
        %v1334 = vsel %vm315, %v1323, %v1333
        %v1336 = vshrl.u32 %v1115, 16
        %v1338 = vrot.slane %v1336, 7
        %v1339 = vshll.u32 %v1115, 16
        %v1341 = vor.u32 %v1338, %v1339
        %v1343 = vshrl.u32 %v1116, 16
        %v1345 = vrot.slane %v1343, 7
        %v1346 = vshll.u32 %v1116, 16
        %v1348 = vor.u32 %v1345, %v1346
        %v1349 = vsel %vm315, %v1338, %v1348
        %v1351 = vshrl.u32 %v1117, 16
        %v1353 = vrot.slane %v1351, 7
        %v1354 = vshll.u32 %v1117, 16
        %v1356 = vor.u32 %v1353, %v1354
        %v1358 = vshrl.u32 %v1118, 16
        %v1360 = vrot.slane %v1358, 7
        %v1361 = vshll.u32 %v1118, 16
        %v1363 = vor.u32 %v1360, %v1361
        %v1364 = vsel %vm315, %v1353, %v1363
        %v1366 = vshrl.u32 %v1119, 16
        %v1368 = vrot.slane %v1366, 7
        %v1369 = vshll.u32 %v1119, 16
        %v1371 = vor.u32 %v1368, %v1369
        %v1373 = vshrl.u32 %v1120, 16
        %v1375 = vrot.slane %v1373, 7
        %v1376 = vshll.u32 %v1120, 16
        %v1378 = vor.u32 %v1375, %v1376
        %v1379 = vsel %vm315, %v1368, %v1378
        %v1381 = vshrl.u32 %v1121, 16
        %v1383 = vrot.slane %v1381, 7
        %v1384 = vshll.u32 %v1121, 16
        %v1386 = vor.u32 %v1383, %v1384
        %v1388 = vshrl.u32 %v1122, 16
        %v1390 = vrot.slane %v1388, 7
        %v1391 = vshll.u32 %v1122, 16
        %v1393 = vor.u32 %v1390, %v1391
        %v1394 = vsel %vm315, %v1383, %v1393
        %v1396 = vshrl.u32 %v1123, 16
        %v1398 = vrot.slane %v1396, 7
        %v1399 = vshll.u32 %v1123, 16
        %v1401 = vor.u32 %v1398, %v1399
        %v1403 = vshrl.u32 %v1124, 16
        %v1405 = vrot.slane %v1403, 7
        %v1406 = vshll.u32 %v1124, 16
        %v1408 = vor.u32 %v1405, %v1406
        %v1409 = vsel %vm315, %v1398, %v1408
        %v1411 = vshrl.u32 %v1125, 16
        %v1413 = vrot.slane %v1411, 7
        %v1414 = vshll.u32 %v1125, 16
        %v1416 = vor.u32 %v1413, %v1414
        %v1418 = vshrl.u32 %v1126, 16
        %v1420 = vrot.slane %v1418, 7
        %v1421 = vshll.u32 %v1126, 16
        %v1423 = vor.u32 %v1420, %v1421
        %v1424 = vsel %vm315, %v1413, %v1423
        %v1426 = vshrl.u32 %v1127, 16
        %v1428 = vrot.slane %v1426, 7
        %v1429 = vshll.u32 %v1127, 16
        %v1431 = vor.u32 %v1428, %v1429
        %v1433 = vshrl.u32 %v1128, 16
        %v1435 = vrot.slane %v1433, 7
        %v1436 = vshll.u32 %v1128, 16
        %v1438 = vor.u32 %v1435, %v1436
        %v1439 = vsel %vm315, %v1428, %v1438
        %v1441 = vshrl.u32 %v1129, 16
        %v1443 = vrot.slane %v1441, 7
        %v1444 = vshll.u32 %v1129, 16
        %v1446 = vor.u32 %v1443, %v1444
        %v1448 = vshrl.u32 %v1130, 16
        %v1450 = vrot.slane %v1448, 7
        %v1451 = vshll.u32 %v1130, 16
        %v1453 = vor.u32 %v1450, %v1451
        %v1454 = vsel %vm315, %v1443, %v1453
        %v1456 = vshrl.u32 %v1131, 16
        %v1458 = vrot.slane %v1456, 7
        %v1459 = vshll.u32 %v1131, 16
        %v1461 = vor.u32 %v1458, %v1459
        %v1463 = vshrl.u32 %v1132, 16
        %v1465 = vrot.slane %v1463, 7
        %v1466 = vshll.u32 %v1132, 16
        %v1468 = vor.u32 %v1465, %v1466
        %v1469 = vsel %vm315, %v1458, %v1468
        %v1471 = vshrl.u32 %v1133, 16
        %v1473 = vrot.slane %v1471, 7
        %v1474 = vshll.u32 %v1133, 16
        %v1476 = vor.u32 %v1473, %v1474
        %v1478 = vshrl.u32 %v1134, 16
        %v1480 = vrot.slane %v1478, 7
        %v1481 = vshll.u32 %v1134, 16
        %v1483 = vor.u32 %v1480, %v1481
        %v1484 = vsel %vm315, %v1473, %v1483
        %v1486 = vshrl.u32 %v1135, 16
        %v1488 = vrot.slane %v1486, 7
        %v1489 = vshll.u32 %v1135, 16
        %v1491 = vor.u32 %v1488, %v1489
        %v1493 = vshrl.u32 %v1136, 16
        %v1495 = vrot.slane %v1493, 7
        %v1496 = vshll.u32 %v1136, 16
        %v1498 = vor.u32 %v1495, %v1496
        %v1499 = vsel %vm315, %v1488, %v1498
        %v1501 = vshrl.u32 %v1137, 16
        %v1503 = vrot.slane %v1501, 7
        %v1504 = vshll.u32 %v1137, 16
        %v1506 = vor.u32 %v1503, %v1504
        %v1508 = vshrl.u32 %v1138, 16
        %v1510 = vrot.slane %v1508, 7
        %v1511 = vshll.u32 %v1138, 16
        %v1513 = vor.u32 %v1510, %v1511
        %v1514 = vsel %vm315, %v1503, %v1513
        %v1516 = vshrl.u32 %v1139, 16
        %v1518 = vrot.slane %v1516, 7
        %v1519 = vshll.u32 %v1139, 16
        %v1521 = vor.u32 %v1518, %v1519
        %v1523 = vshrl.u32 %v1140, 16
        %v1525 = vrot.slane %v1523, 7
        %v1526 = vshll.u32 %v1140, 16
        %v1528 = vor.u32 %v1525, %v1526
        %v1529 = vsel %vm315, %v1518, %v1528
        %v1531 = vshrl.u32 %v1141, 16
        %v1533 = vrot.slane %v1531, 7
        %v1534 = vshll.u32 %v1141, 16
        %v1536 = vor.u32 %v1533, %v1534
        %v1538 = vshrl.u32 %v1142, 16
        %v1540 = vrot.slane %v1538, 7
        %v1541 = vshll.u32 %v1142, 16
        %v1543 = vor.u32 %v1540, %v1541
        %v1544 = vsel %vm315, %v1533, %v1543
        %vm1577 = vcmask 261120
        %vm1578 = vsmask.f32 7938
        %vm1579 = vmand %vm1577, %vm1578
        %v1580 = vld [vmem:[%s1271] sm:$0xff]
        %v1581 = vsel %vm1579, %v1311, %v1580
        %1582 = vst [vmem:[%s1271] sm:$0xff] %v1581
        %vm1583 = vcmask 261120
        %1584 = vst.msk [vmem:[%s1271 + $0x8] sm:$0xff] %vm1583, %v1319
        %v1585 = vld [vmem:[%s1271 + $0x10] sm:$0xff]
        %v1586 = vsel %vm1579, %v1326, %v1585
        %1587 = vst [vmem:[%s1271 + $0x10] sm:$0xff] %v1586
        %1588 = vst.msk [vmem:[%s1271 + $0x18] sm:$0xff] %vm1583, %v1334
        %v1589 = vld [vmem:[%s1271 + $0x20] sm:$0xff]
        %v1590 = vsel %vm1579, %v1341, %v1589
        %1591 = vst [vmem:[%s1271 + $0x20] sm:$0xff] %v1590
        %1592 = vst.msk [vmem:[%s1271 + $0x28] sm:$0xff] %vm1583, %v1349
        %v1593 = vld [vmem:[%s1271 + $0x30] sm:$0xff]
        %v1594 = vsel %vm1579, %v1356, %v1593
        %1595 = vst [vmem:[%s1271 + $0x30] sm:$0xff] %v1594
        %1596 = vst.msk [vmem:[%s1271 + $0x38] sm:$0xff] %vm1583, %v1364
        %v1597 = vld [vmem:[%s1271 + $0x40] sm:$0xff]
        %v1598 = vsel %vm1579, %v1371, %v1597
        %1599 = vst [vmem:[%s1271 + $0x40] sm:$0xff] %v1598
        %1600 = vst.msk [vmem:[%s1271 + $0x48] sm:$0xff] %vm1583, %v1379
        %v1601 = vld [vmem:[%s1271 + $0x50] sm:$0xff]
        %v1602 = vsel %vm1579, %v1386, %v1601
        %1603 = vst [vmem:[%s1271 + $0x50] sm:$0xff] %v1602
        %1604 = vst.msk [vmem:[%s1271 + $0x58] sm:$0xff] %vm1583, %v1394
        %v1605 = vld [vmem:[%s1271 + $0x60] sm:$0xff]
        %v1606 = vsel %vm1579, %v1401, %v1605
        %1607 = vst [vmem:[%s1271 + $0x60] sm:$0xff] %v1606
        %1608 = vst.msk [vmem:[%s1271 + $0x68] sm:$0xff] %vm1583, %v1409
        %v1609 = vld [vmem:[%s1271 + $0x70] sm:$0xff]
        %v1610 = vsel %vm1579, %v1416, %v1609
        %1611 = vst [vmem:[%s1271 + $0x70] sm:$0xff] %v1610
        %1612 = vst.msk [vmem:[%s1271 + $0x78] sm:$0xff] %vm1583, %v1424
        %v1613 = vld [vmem:[%s1271 + $0x80] sm:$0xff]
        %v1614 = vsel %vm1579, %v1431, %v1613
        %1615 = vst [vmem:[%s1271 + $0x80] sm:$0xff] %v1614
        %1616 = vst.msk [vmem:[%s1271 + $0x88] sm:$0xff] %vm1583, %v1439
        %v1617 = vld [vmem:[%s1271 + $0x90] sm:$0xff]
        %v1618 = vsel %vm1579, %v1446, %v1617
        %1619 = vst [vmem:[%s1271 + $0x90] sm:$0xff] %v1618
        %1620 = vst.msk [vmem:[%s1271 + $0x98] sm:$0xff] %vm1583, %v1454
        %v1621 = vld [vmem:[%s1271 + $0xa0] sm:$0xff]
        %v1622 = vsel %vm1579, %v1461, %v1621
        %1623 = vst [vmem:[%s1271 + $0xa0] sm:$0xff] %v1622
        %1624 = vst.msk [vmem:[%s1271 + $0xa8] sm:$0xff] %vm1583, %v1469
        %v1625 = vld [vmem:[%s1271 + $0xb0] sm:$0xff]
        %v1626 = vsel %vm1579, %v1476, %v1625
        %1627 = vst [vmem:[%s1271 + $0xb0] sm:$0xff] %v1626
        %1628 = vst.msk [vmem:[%s1271 + $0xb8] sm:$0xff] %vm1583, %v1484
        %v1629 = vld [vmem:[%s1271 + $0xc0] sm:$0xff]
        %v1630 = vsel %vm1579, %v1491, %v1629
        %1631 = vst [vmem:[%s1271 + $0xc0] sm:$0xff] %v1630
        %1632 = vst.msk [vmem:[%s1271 + $0xc8] sm:$0xff] %vm1583, %v1499
        %v1633 = vld [vmem:[%s1271 + $0xd0] sm:$0xff]
        %v1634 = vsel %vm1579, %v1506, %v1633
        %1635 = vst [vmem:[%s1271 + $0xd0] sm:$0xff] %v1634
        %1636 = vst.msk [vmem:[%s1271 + $0xd8] sm:$0xff] %vm1583, %v1514
        %v1637 = vld [vmem:[%s1271 + $0xe0] sm:$0xff]
        %v1638 = vsel %vm1579, %v1521, %v1637
        %1639 = vst [vmem:[%s1271 + $0xe0] sm:$0xff] %v1638
        %1640 = vst.msk [vmem:[%s1271 + $0xe8] sm:$0xff] %vm1583, %v1529
        %v1641 = vld [vmem:[%s1271 + $0xf0] sm:$0xff]
        %v1642 = vsel %vm1579, %v1536, %v1641
        %1643 = vst [vmem:[%s1271 + $0xf0] sm:$0xff] %v1642
        %1644 = vst.msk [vmem:[%s1271 + $0xf8] sm:$0xff] %vm1583, %v1544
        %vm1645 = vsmask.f32 7424
        %v1646 = vrot.slane %v1309, 1
        %v1647 = vor.u32 %v1306, %v1646
        %v1648 = vrot.slane %v1316, 1
        %v1649 = vsel %vm1645, %v1647, %v1648
        %v1650 = vor.u32 %v1313, %v1648
        %v1651 = vrot.slane %v1324, 1
        %v1652 = vor.u32 %v1321, %v1651
        %v1653 = vrot.slane %v1331, 1
        %v1654 = vsel %vm1645, %v1652, %v1653
        %v1655 = vor.u32 %v1328, %v1653
        %v1656 = vrot.slane %v1339, 1
        %v1657 = vor.u32 %v1336, %v1656
        %v1658 = vrot.slane %v1346, 1
        %v1659 = vsel %vm1645, %v1657, %v1658
        %v1660 = vor.u32 %v1343, %v1658
        %v1661 = vrot.slane %v1354, 1
        %v1662 = vor.u32 %v1351, %v1661
        %v1663 = vrot.slane %v1361, 1
        %v1664 = vsel %vm1645, %v1662, %v1663
        %v1665 = vor.u32 %v1358, %v1663
        %v1666 = vrot.slane %v1369, 1
        %v1667 = vor.u32 %v1366, %v1666
        %v1668 = vrot.slane %v1376, 1
        %v1669 = vsel %vm1645, %v1667, %v1668
        %v1670 = vor.u32 %v1373, %v1668
        %v1671 = vrot.slane %v1384, 1
        %v1672 = vor.u32 %v1381, %v1671
        %v1673 = vrot.slane %v1391, 1
        %v1674 = vsel %vm1645, %v1672, %v1673
        %v1675 = vor.u32 %v1388, %v1673
        %v1676 = vrot.slane %v1399, 1
        %v1677 = vor.u32 %v1396, %v1676
        %v1678 = vrot.slane %v1406, 1
        %v1679 = vsel %vm1645, %v1677, %v1678
        %v1680 = vor.u32 %v1403, %v1678
        %v1681 = vrot.slane %v1414, 1
        %v1682 = vor.u32 %v1411, %v1681
        %v1683 = vrot.slane %v1421, 1
        %v1684 = vsel %vm1645, %v1682, %v1683
        %v1685 = vor.u32 %v1418, %v1683
        %v1686 = vrot.slane %v1429, 1
        %v1687 = vor.u32 %v1426, %v1686
        %v1688 = vrot.slane %v1436, 1
        %v1689 = vsel %vm1645, %v1687, %v1688
        %v1690 = vor.u32 %v1433, %v1688
        %v1691 = vrot.slane %v1444, 1
        %v1692 = vor.u32 %v1441, %v1691
        %v1693 = vrot.slane %v1451, 1
        %v1694 = vsel %vm1645, %v1692, %v1693
        %v1695 = vor.u32 %v1448, %v1693
        %v1696 = vrot.slane %v1459, 1
        %v1697 = vor.u32 %v1456, %v1696
        %v1698 = vrot.slane %v1466, 1
        %v1699 = vsel %vm1645, %v1697, %v1698
        %v1700 = vor.u32 %v1463, %v1698
        %v1701 = vrot.slane %v1474, 1
        %v1702 = vor.u32 %v1471, %v1701
        %v1703 = vrot.slane %v1481, 1
        %v1704 = vsel %vm1645, %v1702, %v1703
        %v1705 = vor.u32 %v1478, %v1703
        %v1706 = vrot.slane %v1489, 1
        %v1707 = vor.u32 %v1486, %v1706
        %v1708 = vrot.slane %v1496, 1
        %v1709 = vsel %vm1645, %v1707, %v1708
        %v1710 = vor.u32 %v1493, %v1708
        %v1711 = vrot.slane %v1504, 1
        %v1712 = vor.u32 %v1501, %v1711
        %v1713 = vrot.slane %v1511, 1
        %v1714 = vsel %vm1645, %v1712, %v1713
        %v1715 = vor.u32 %v1508, %v1713
        %v1716 = vrot.slane %v1519, 1
        %v1717 = vor.u32 %v1516, %v1716
        %v1718 = vrot.slane %v1526, 1
        %v1719 = vsel %vm1645, %v1717, %v1718
        %v1720 = vor.u32 %v1523, %v1718
        %v1721 = vrot.slane %v1534, 1
        %v1722 = vor.u32 %v1531, %v1721
        %v1723 = vrot.slane %v1541, 1
        %v1724 = vsel %vm1645, %v1722, %v1723
        %v1725 = vor.u32 %v1538, %v1723
        %1726 = vrot.lane.b32.xlu0 %v1649, 64
        %v1727 = vpop.permute.xlu0 %1726
        %1728 = vrot.lane.b32.xlu0 %v1650, 64
        %v1729 = vpop.permute.xlu0 %1728
        %1730 = vrot.lane.b32.xlu0 %v1654, 64
        %v1731 = vpop.permute.xlu0 %1730
        %1732 = vrot.lane.b32.xlu0 %v1655, 64
        %v1733 = vpop.permute.xlu0 %1732
        %1734 = vrot.lane.b32.xlu0 %v1659, 64
        %v1735 = vpop.permute.xlu0 %1734
        %1736 = vrot.lane.b32.xlu0 %v1660, 64
        %v1737 = vpop.permute.xlu0 %1736
        %1738 = vrot.lane.b32.xlu0 %v1664, 64
        %v1739 = vpop.permute.xlu0 %1738
        %1740 = vrot.lane.b32.xlu0 %v1665, 64
        %v1741 = vpop.permute.xlu0 %1740
        %1742 = vrot.lane.b32.xlu0 %v1669, 64
        %v1743 = vpop.permute.xlu0 %1742
        %1744 = vrot.lane.b32.xlu0 %v1670, 64
        %v1745 = vpop.permute.xlu0 %1744
        %1746 = vrot.lane.b32.xlu0 %v1674, 64
        %v1747 = vpop.permute.xlu0 %1746
        %1748 = vrot.lane.b32.xlu0 %v1675, 64
        %v1749 = vpop.permute.xlu0 %1748
        %1750 = vrot.lane.b32.xlu0 %v1679, 64
        %v1751 = vpop.permute.xlu0 %1750
        %1752 = vrot.lane.b32.xlu0 %v1680, 64
        %v1753 = vpop.permute.xlu0 %1752
        %1754 = vrot.lane.b32.xlu0 %v1684, 64
        %v1755 = vpop.permute.xlu0 %1754
        %1756 = vrot.lane.b32.xlu0 %v1685, 64
        %v1757 = vpop.permute.xlu0 %1756
        %1758 = vrot.lane.b32.xlu0 %v1689, 64
        %v1759 = vpop.permute.xlu0 %1758
        %1760 = vrot.lane.b32.xlu0 %v1690, 64
        %v1761 = vpop.permute.xlu0 %1760
        %1762 = vrot.lane.b32.xlu0 %v1694, 64
        %v1763 = vpop.permute.xlu0 %1762
        %1764 = vrot.lane.b32.xlu0 %v1695, 64
        %v1765 = vpop.permute.xlu0 %1764
        %1766 = vrot.lane.b32.xlu0 %v1699, 64
        %v1767 = vpop.permute.xlu0 %1766
        %1768 = vrot.lane.b32.xlu0 %v1700, 64
        %v1769 = vpop.permute.xlu0 %1768
        %1770 = vrot.lane.b32.xlu0 %v1704, 64
        %v1771 = vpop.permute.xlu0 %1770
        %1772 = vrot.lane.b32.xlu0 %v1705, 64
        %v1773 = vpop.permute.xlu0 %1772
        %1774 = vrot.lane.b32.xlu0 %v1709, 64
        %v1775 = vpop.permute.xlu0 %1774
        %1776 = vrot.lane.b32.xlu0 %v1710, 64
        %v1777 = vpop.permute.xlu0 %1776
        %1778 = vrot.lane.b32.xlu0 %v1714, 64
        %v1779 = vpop.permute.xlu0 %1778
        %1780 = vrot.lane.b32.xlu0 %v1715, 64
        %v1781 = vpop.permute.xlu0 %1780
        %1782 = vrot.lane.b32.xlu0 %v1719, 64
        %v1783 = vpop.permute.xlu0 %1782
        %1784 = vrot.lane.b32.xlu0 %v1720, 64
        %v1785 = vpop.permute.xlu0 %1784
        %1786 = vrot.lane.b32.xlu0 %v1724, 64
        %v1787 = vpop.permute.xlu0 %1786
        %1788 = vrot.lane.b32.xlu0 %v1725, 64
        %v1789 = vpop.permute.xlu0 %1788
        %vm1822 = vcmask 785920
        %1823 = vst.msk [vmem:[%s1271] sm:$0xff] %vm1822, %v1727
        %vm1824 = vcmask 785920
        %vm1825 = vmand %vm1824, %vm1645
        %v1826 = vld [vmem:[%s1271 + $0x8] sm:$0xff]
        %v1827 = vsel %vm1825, %v1729, %v1826
        %1828 = vst [vmem:[%s1271 + $0x8] sm:$0xff] %v1827
        %1829 = vst.msk [vmem:[%s1271 + $0x10] sm:$0xff] %vm1822, %v1731
        %v1830 = vld [vmem:[%s1271 + $0x18] sm:$0xff]
        %v1831 = vsel %vm1825, %v1733, %v1830
        %1832 = vst [vmem:[%s1271 + $0x18] sm:$0xff] %v1831
        %1833 = vst.msk [vmem:[%s1271 + $0x20] sm:$0xff] %vm1822, %v1735
        %v1834 = vld [vmem:[%s1271 + $0x28] sm:$0xff]
        %v1835 = vsel %vm1825, %v1737, %v1834
        %1836 = vst [vmem:[%s1271 + $0x28] sm:$0xff] %v1835
        %1837 = vst.msk [vmem:[%s1271 + $0x30] sm:$0xff] %vm1822, %v1739
        %v1838 = vld [vmem:[%s1271 + $0x38] sm:$0xff]
        %v1839 = vsel %vm1825, %v1741, %v1838
        %1840 = vst [vmem:[%s1271 + $0x38] sm:$0xff] %v1839
        %1841 = vst.msk [vmem:[%s1271 + $0x40] sm:$0xff] %vm1822, %v1743
        %v1842 = vld [vmem:[%s1271 + $0x48] sm:$0xff]
        %v1843 = vsel %vm1825, %v1745, %v1842
        %1844 = vst [vmem:[%s1271 + $0x48] sm:$0xff] %v1843
        %1845 = vst.msk [vmem:[%s1271 + $0x50] sm:$0xff] %vm1822, %v1747
        %v1846 = vld [vmem:[%s1271 + $0x58] sm:$0xff]
        %v1847 = vsel %vm1825, %v1749, %v1846
        %1848 = vst [vmem:[%s1271 + $0x58] sm:$0xff] %v1847
        %1849 = vst.msk [vmem:[%s1271 + $0x60] sm:$0xff] %vm1822, %v1751
        %v1850 = vld [vmem:[%s1271 + $0x68] sm:$0xff]
        %v1851 = vsel %vm1825, %v1753, %v1850
        %1852 = vst [vmem:[%s1271 + $0x68] sm:$0xff] %v1851
        %1853 = vst.msk [vmem:[%s1271 + $0x70] sm:$0xff] %vm1822, %v1755
        %v1854 = vld [vmem:[%s1271 + $0x78] sm:$0xff]
        %v1855 = vsel %vm1825, %v1757, %v1854
        %1856 = vst [vmem:[%s1271 + $0x78] sm:$0xff] %v1855
        %1857 = vst.msk [vmem:[%s1271 + $0x80] sm:$0xff] %vm1822, %v1759
        %v1858 = vld [vmem:[%s1271 + $0x88] sm:$0xff]
        %v1859 = vsel %vm1825, %v1761, %v1858
        %1860 = vst [vmem:[%s1271 + $0x88] sm:$0xff] %v1859
        %1861 = vst.msk [vmem:[%s1271 + $0x90] sm:$0xff] %vm1822, %v1763
        %v1862 = vld [vmem:[%s1271 + $0x98] sm:$0xff]
        %v1863 = vsel %vm1825, %v1765, %v1862
        %1864 = vst [vmem:[%s1271 + $0x98] sm:$0xff] %v1863
        %1865 = vst.msk [vmem:[%s1271 + $0xa0] sm:$0xff] %vm1822, %v1767
        %v1866 = vld [vmem:[%s1271 + $0xa8] sm:$0xff]
        %v1867 = vsel %vm1825, %v1769, %v1866
        %1868 = vst [vmem:[%s1271 + $0xa8] sm:$0xff] %v1867
        %1869 = vst.msk [vmem:[%s1271 + $0xb0] sm:$0xff] %vm1822, %v1771
        %v1870 = vld [vmem:[%s1271 + $0xb8] sm:$0xff]
        %v1871 = vsel %vm1825, %v1773, %v1870
        %1872 = vst [vmem:[%s1271 + $0xb8] sm:$0xff] %v1871
        %1873 = vst.msk [vmem:[%s1271 + $0xc0] sm:$0xff] %vm1822, %v1775
        %v1874 = vld [vmem:[%s1271 + $0xc8] sm:$0xff]
        %v1875 = vsel %vm1825, %v1777, %v1874
        %1876 = vst [vmem:[%s1271 + $0xc8] sm:$0xff] %v1875
        %1877 = vst.msk [vmem:[%s1271 + $0xd0] sm:$0xff] %vm1822, %v1779
        %v1878 = vld [vmem:[%s1271 + $0xd8] sm:$0xff]
        %v1879 = vsel %vm1825, %v1781, %v1878
        %1880 = vst [vmem:[%s1271 + $0xd8] sm:$0xff] %v1879
        %1881 = vst.msk [vmem:[%s1271 + $0xe0] sm:$0xff] %vm1822, %v1783
        %v1882 = vld [vmem:[%s1271 + $0xe8] sm:$0xff]
        %v1883 = vsel %vm1825, %v1785, %v1882
        %1884 = vst [vmem:[%s1271 + $0xe8] sm:$0xff] %v1883
        %1885 = vst.msk [vmem:[%s1271 + $0xf0] sm:$0xff] %vm1822, %v1787
        %v1886 = vld [vmem:[%s1271 + $0xf8] sm:$0xff]
        %v1887 = vsel %vm1825, %v1789, %v1886
        %1888 = vst [vmem:[%s1271 + $0xf8] sm:$0xff] %v1887
        %p1889 = scmp.eq.s32.totalorder %s29, 0
        // Predicated region
        $region53: #{tpu_custom_call.1} parent=47 // pred_check
          %p1890 = pneg %p1889
        $region54: #{tpu_custom_call.1} parent=47 // pred_check_branch
          %1892 = sbr.rel (%p1890) target = $region56
        $region55: #{tpu_custom_call.1} parent=47 // pred_region
          %vm1893 = vcmask 785408
          %1894 = vst.msk [vmem:[#allocation2] sm:$0xff] %vm1893, 0
          %1895 = vst.msk [vmem:[#allocation2 + $0x8] sm:$0xff] %vm1893, 0
        $region56: #{tpu_custom_call.1} parent=47 // pred_fallthru
          _
        %p1896 = scmp.gt.s32.totalorder %s29, 0
        // Predicated region
        $region57: #{tpu_custom_call.1} parent=47 // pred_check
          %p1897 = pneg %p1896
        $region58: #{tpu_custom_call.1} parent=47 // pred_check_branch
          %1899 = sbr.rel (%p1897) target = $region60
        $region59: #{tpu_custom_call.1} parent=47 // pred_region
          %s1900 = ssub.s32 %s313, 1
          %s1901 = smul.u32 %s1900, 4
          %s1902 = smul.addr %s1901, 4
          %s1903 = scalar_lea.vmem %s280, %s1902 [#allocation3]
          %v1904 = vld [vmem:[%s1903] sm:$0xf]
          %v1905 = vld [vmem:[%s1903 + $0x4] sm:$0xf]
          %v1906 = vld [vmem:[%s1903 + $0x8] sm:$0xf]
          %v1907 = vld [vmem:[%s1903 + $0xc] sm:$0xf]
          %v1908 = vld [vmem:[%s1] sm:$0xf]
          %v1909 = vld [vmem:[%s1 + $0x4] sm:$0xf]
          %v1910 = vld [vmem:[%s1 + $0x8] sm:$0xf]
          %v1911 = vld [vmem:[%s1 + $0xc] sm:$0xf]
          %v1912 = vld [vmem:[%s1 + $0x10] sm:$0xf]
          %v1913 = vld [vmem:[%s1 + $0x14] sm:$0xf]
          %v1914 = vld [vmem:[%s1 + $0x18] sm:$0xf]
          %v1915 = vld [vmem:[%s1 + $0x1c] sm:$0xf]
          %v1916 = vld [vmem:[%s1 + $0x20] sm:$0xf]
          %v1917 = vld [vmem:[%s1 + $0x24] sm:$0xf]
          %v1918 = vld [vmem:[%s1 + $0x28] sm:$0xf]
          %v1919 = vld [vmem:[%s1 + $0x2c] sm:$0xf]
          %v1920 = vld [vmem:[%s1 + $0x30] sm:$0xf]
          %v1921 = vld [vmem:[%s1 + $0x34] sm:$0xf]
          %v1922 = vld [vmem:[%s1 + $0x38] sm:$0xf]
          %v1923 = vld [vmem:[%s1 + $0x3c] sm:$0xf]
          %v1924 = vld [vmem:[%s2] sm:$0x1]
          %v1926 = vlaneseq
          %v1927 = vshrl.u32 %v1926, 7
          %v1928 = vsub.s32 0, %v1927
          %v1929 = vrot.slane %v1924, %v1928
          %v1935 = vunpack.c.l.b16 %v1904
          %v1936 = vunpack.c.l.b16 %v1905
          %v1937 = vunpack.c.l.b16 %v1906
          %v1938 = vunpack.c.l.b16 %v1907
          %v1939 = vpack.c.b16 %v1936, %v1935
          %v1940 = vpack.c.b16 %v1938, %v1937
          %v1959 = vunpack.c.l.b16 %v1908
          %v1960 = vunpack.c.l.b16 %v1909
          %v1961 = vunpack.c.l.b16 %v1910
          %v1962 = vunpack.c.l.b16 %v1911
          %v1963 = vunpack.c.l.b16 %v1912
          %v1964 = vunpack.c.l.b16 %v1913
          %v1965 = vunpack.c.l.b16 %v1914
          %v1966 = vunpack.c.l.b16 %v1915
          %v1967 = vunpack.c.l.b16 %v1916
          %v1968 = vunpack.c.l.b16 %v1917
          %v1969 = vunpack.c.l.b16 %v1918
          %v1970 = vunpack.c.l.b16 %v1919
          %v1971 = vunpack.c.l.b16 %v1920
          %v1972 = vunpack.c.l.b16 %v1921
          %v1973 = vunpack.c.l.b16 %v1922
          %v1974 = vunpack.c.l.b16 %v1923
          %v1975 = vpack.c.b16 %v1960, %v1959
          %v1976 = vpack.c.b16 %v1962, %v1961
          %v1977 = vpack.c.b16 %v1964, %v1963
          %v1978 = vpack.c.b16 %v1966, %v1965
          %v1979 = vpack.c.b16 %v1968, %v1967
          %v1980 = vpack.c.b16 %v1970, %v1969
          %v1981 = vpack.c.b16 %v1972, %v1971
          %v1982 = vpack.c.b16 %v1974, %v1973
          %1991 = vmatprep.subr.bf16.mxu0 0
          %1992 = vmatpush1.bf16.msra.mxu0 %v1975
          %1993 = vmatprep.subr.bf16.mxu0 0
          %1994 = vmatpush1.bf16.msra.mxu0 %v1976
          %1995 = vmatprep.subr.bf16.mxu0 0
          %1996 = vmatpush1.bf16.msra.mxu0 %v1977
          %1997 = vmatprep.subr.bf16.mxu0 0
          %1998 = vmatpush1.bf16.msra.mxu0 %v1978
          %1999 = vmatprep.subr.bf16.mxu0 0
          %2000 = vmatpush1.bf16.msra.mxu0 %v1979
          %2001 = vmatprep.subr.bf16.mxu0 0
          %2002 = vmatpush1.bf16.msra.mxu0 %v1980
          %2003 = vmatprep.subr.bf16.mxu0 0
          %2004 = vmatpush1.bf16.msra.mxu0 %v1981
          %2005 = vmatprep.subr.bf16.mxu0 0
          %2006 = vmatpush1.bf16.msra.mxu0 %v1982
          %2007 = vmatprep.subr.bf16.mxu0 0
          %2008 = vmatpush1.bf16.msra.mxu0 0
          %2009 = vmatprep.subr.bf16.mxu0 0
          %2010 = vmatpush1.bf16.msra.mxu0 0
          %2011 = vmatprep.subr.bf16.mxu0 0
          %2012 = vmatpush1.bf16.msra.mxu0 0
          %2013 = vmatprep.subr.bf16.mxu0 0
          %2014 = vmatpush1.bf16.msra.mxu0 0
          %2015 = vmatprep.subr.bf16.mxu0 0
          %2016 = vmatpush1.bf16.msra.mxu0 0
          %2017 = vmatprep.subr.bf16.mxu0 0
          %2018 = vmatpush1.bf16.msra.mxu0 0
          %2019 = vmatprep.subr.bf16.mxu0 0
          %2020 = vmatpush1.bf16.msra.mxu0 0
          %2021 = vmatprep.subr.bf16.mxu0 0
          %2022 = vmatpush1.bf16.msra.mxu0 0
          %2023 = vmatprep.mubr.bf16.mxu0 0
          %2024 = vmatmul.mubr.bf16.gmra.mrb[0].mxu0 %v1939
          %v2025 = vpop.f32.mrb[0].mxu0
          %v2026 = vadd.f32 %v1929, %v2025
          %v2027 = vpop.f32.mrb[0].mxu0
          %v2028 = vpop.f32.mrb[0].mxu0
          %v2029 = vadd.f32 %v1929, %v2028
          %v2030 = vpop.f32.mrb[0].mxu0
          %2031 = vmatprep.mubr.bf16.mxu0 0
          %2032 = vmatmul.mubr.bf16.gmra.mrb[0].mxu0 %v1940
          %v2033 = vpop.f32.mrb[0].mxu0
          %v2034 = vadd.f32 %v1929, %v2033
          %v2035 = vpop.f32.mrb[0].mxu0
          %v2036 = vpop.f32.mrb[0].mxu0
          %v2037 = vadd.f32 %v1929, %v2036
          %v2038 = vpop.f32.mrb[0].mxu0
          %2039 = vdwg.mxu0
          %v2040 = vmax.f32 %v2026, 0.0
          %v2041 = vmax.f32 %v2029, 0.0
          %v2042 = vmax.f32 %v2034, 0.0
          %v2043 = vmax.f32 %v2037, 0.0
          %v2044 = vpack.c.bf16 %v2041, %v2040
          %v2045 = vpack.c.bf16 %v2043, %v2042
          %2048 = vrot.lane.b32.xlu0 %v2044, 32
          %v2049 = vpop.permute.xlu0 %2048
          %2050 = vrot.lane.b32.xlu0 %v2045, 32
          %v2051 = vpop.permute.xlu0 %2050
          %2054 = vst.msk [vmem:[#allocation2] sm:$0xff] %vm1272, %v2049
          %2055 = vst.msk [vmem:[#allocation2 + $0x8] sm:$0xff] %vm1272, %v2051
          %v2057 = vshrl.u32 %v2044, 16
          %v2059 = vrot.slane %v2057, 7
          %v2060 = vshll.u32 %v2044, 16
          %v2062 = vor.u32 %v2059, %v2060
          %v2064 = vshrl.u32 %v2045, 16
          %v2066 = vrot.slane %v2064, 7
          %v2067 = vshll.u32 %v2045, 16
          %v2069 = vor.u32 %v2066, %v2067
          %v2070 = vsel %vm315, %v2059, %v2069
          %v2073 = vld [vmem:[#allocation2] sm:$0xff]
          %v2074 = vsel %vm1579, %v2062, %v2073
          %2075 = vst [vmem:[#allocation2] sm:$0xff] %v2074
          %2076 = vst.msk [vmem:[#allocation2 + $0x8] sm:$0xff] %vm1583, %v2070
          %v2077 = vrot.slane %v2060, 1
          %v2078 = vor.u32 %v2057, %v2077
          %v2079 = vrot.slane %v2067, 1
          %v2080 = vsel %vm1645, %v2078, %v2079
          %v2081 = vor.u32 %v2064, %v2079
          %2082 = vrot.lane.b32.xlu0 %v2080, 64
          %v2083 = vpop.permute.xlu0 %2082
          %2084 = vrot.lane.b32.xlu0 %v2081, 64
          %v2085 = vpop.permute.xlu0 %2084
          %2088 = vst.msk [vmem:[#allocation2] sm:$0xff] %vm1822, %v2083
          %v2089 = vld [vmem:[#allocation2 + $0x8] sm:$0xff]
          %v2090 = vsel %vm1825, %v2085, %v2089
          %2091 = vst [vmem:[#allocation2 + $0x8] sm:$0xff] %v2090
        $region60: #{tpu_custom_call.1} parent=47 // pred_fallthru
          _
        %p2092 = scmp.eq.s32.totalorder %s29, 1
        // Predicated region
        $region61: #{tpu_custom_call.1} parent=47 // pred_check
          %p2093 = pneg %p2092
        $region62: #{tpu_custom_call.1} parent=47 // pred_check_branch
          %2095 = sbr.rel (%p2093) target = $region64
        $region63: #{tpu_custom_call.1} parent=47 // pred_region
          %s2096 = scalar_lea.vmem [#allocation2], 272
          %vm2097 = vcmask 785408
          %2098 = vst.msk [vmem:[%s2096] sm:$0xff] %vm2097, 0
          %2099 = vst.msk [vmem:[%s2096 + $0x8] sm:$0xff] %vm2097, 0
        $region64: #{tpu_custom_call.1} parent=47 // pred_fallthru
          _
        %p2100 = scmp.lt.s32.totalorder %s29, 1
        // Predicated region
        $region65: #{tpu_custom_call.1} parent=47 // pred_check
          %p2101 = pneg %p2100
        $region66: #{tpu_custom_call.1} parent=47 // pred_check_branch
          %2103 = sbr.rel (%p2101) target = $region68
        $region67: #{tpu_custom_call.1} parent=47 // pred_region
          %s2104 = sadd.s32 %s313, 16
          %s2105 = smul.u32 %s2104, 4
          %s2106 = smul.addr %s2105, 4
          %s2107 = scalar_lea.vmem %s280, %s2106 [#allocation3]
          %v2108 = vld [vmem:[%s2107] sm:$0xf]
          %v2109 = vld [vmem:[%s2107 + $0x4] sm:$0xf]
          %v2110 = vld [vmem:[%s2107 + $0x8] sm:$0xf]
          %v2111 = vld [vmem:[%s2107 + $0xc] sm:$0xf]
          %v2112 = vld [vmem:[%s1] sm:$0xf]
          %v2113 = vld [vmem:[%s1 + $0x4] sm:$0xf]
          %v2114 = vld [vmem:[%s1 + $0x8] sm:$0xf]
          %v2115 = vld [vmem:[%s1 + $0xc] sm:$0xf]
          %v2116 = vld [vmem:[%s1 + $0x10] sm:$0xf]
          %v2117 = vld [vmem:[%s1 + $0x14] sm:$0xf]
          %v2118 = vld [vmem:[%s1 + $0x18] sm:$0xf]
          %v2119 = vld [vmem:[%s1 + $0x1c] sm:$0xf]
          %v2120 = vld [vmem:[%s1 + $0x20] sm:$0xf]
          %v2121 = vld [vmem:[%s1 + $0x24] sm:$0xf]
          %v2122 = vld [vmem:[%s1 + $0x28] sm:$0xf]
          %v2123 = vld [vmem:[%s1 + $0x2c] sm:$0xf]
          %v2124 = vld [vmem:[%s1 + $0x30] sm:$0xf]
          %v2125 = vld [vmem:[%s1 + $0x34] sm:$0xf]
          %v2126 = vld [vmem:[%s1 + $0x38] sm:$0xf]
          %v2127 = vld [vmem:[%s1 + $0x3c] sm:$0xf]
          %v2128 = vld [vmem:[%s2] sm:$0x1]
          %v2130 = vlaneseq
          %v2131 = vshrl.u32 %v2130, 7
          %v2132 = vsub.s32 0, %v2131
          %v2133 = vrot.slane %v2128, %v2132
          %v2139 = vunpack.c.l.b16 %v2108
          %v2140 = vunpack.c.l.b16 %v2109
          %v2141 = vunpack.c.l.b16 %v2110
          %v2142 = vunpack.c.l.b16 %v2111
          %v2143 = vpack.c.b16 %v2140, %v2139
          %v2144 = vpack.c.b16 %v2142, %v2141
          %v2163 = vunpack.c.l.b16 %v2112
          %v2164 = vunpack.c.l.b16 %v2113
          %v2165 = vunpack.c.l.b16 %v2114
          %v2166 = vunpack.c.l.b16 %v2115
          %v2167 = vunpack.c.l.b16 %v2116
          %v2168 = vunpack.c.l.b16 %v2117
          %v2169 = vunpack.c.l.b16 %v2118
          %v2170 = vunpack.c.l.b16 %v2119
          %v2171 = vunpack.c.l.b16 %v2120
          %v2172 = vunpack.c.l.b16 %v2121
          %v2173 = vunpack.c.l.b16 %v2122
          %v2174 = vunpack.c.l.b16 %v2123
          %v2175 = vunpack.c.l.b16 %v2124
          %v2176 = vunpack.c.l.b16 %v2125
          %v2177 = vunpack.c.l.b16 %v2126
          %v2178 = vunpack.c.l.b16 %v2127
          %v2179 = vpack.c.b16 %v2164, %v2163
          %v2180 = vpack.c.b16 %v2166, %v2165
          %v2181 = vpack.c.b16 %v2168, %v2167
          %v2182 = vpack.c.b16 %v2170, %v2169
          %v2183 = vpack.c.b16 %v2172, %v2171
          %v2184 = vpack.c.b16 %v2174, %v2173
          %v2185 = vpack.c.b16 %v2176, %v2175
          %v2186 = vpack.c.b16 %v2178, %v2177
          %2195 = vmatprep.subr.bf16.mxu0 0
          %2196 = vmatpush1.bf16.msra.mxu0 %v2179
          %2197 = vmatprep.subr.bf16.mxu0 0
          %2198 = vmatpush1.bf16.msra.mxu0 %v2180
          %2199 = vmatprep.subr.bf16.mxu0 0
          %2200 = vmatpush1.bf16.msra.mxu0 %v2181
          %2201 = vmatprep.subr.bf16.mxu0 0
          %2202 = vmatpush1.bf16.msra.mxu0 %v2182
          %2203 = vmatprep.subr.bf16.mxu0 0
          %2204 = vmatpush1.bf16.msra.mxu0 %v2183
          %2205 = vmatprep.subr.bf16.mxu0 0
          %2206 = vmatpush1.bf16.msra.mxu0 %v2184
          %2207 = vmatprep.subr.bf16.mxu0 0
          %2208 = vmatpush1.bf16.msra.mxu0 %v2185
          %2209 = vmatprep.subr.bf16.mxu0 0
          %2210 = vmatpush1.bf16.msra.mxu0 %v2186
          %2211 = vmatprep.subr.bf16.mxu0 0
          %2212 = vmatpush1.bf16.msra.mxu0 0
          %2213 = vmatprep.subr.bf16.mxu0 0
          %2214 = vmatpush1.bf16.msra.mxu0 0
          %2215 = vmatprep.subr.bf16.mxu0 0
          %2216 = vmatpush1.bf16.msra.mxu0 0
          %2217 = vmatprep.subr.bf16.mxu0 0
          %2218 = vmatpush1.bf16.msra.mxu0 0
          %2219 = vmatprep.subr.bf16.mxu0 0
          %2220 = vmatpush1.bf16.msra.mxu0 0
          %2221 = vmatprep.subr.bf16.mxu0 0
          %2222 = vmatpush1.bf16.msra.mxu0 0
          %2223 = vmatprep.subr.bf16.mxu0 0
          %2224 = vmatpush1.bf16.msra.mxu0 0
          %2225 = vmatprep.subr.bf16.mxu0 0
          %2226 = vmatpush1.bf16.msra.mxu0 0
          %2227 = vmatprep.mubr.bf16.mxu0 0
          %2228 = vmatmul.mubr.bf16.gmra.mrb[0].mxu0 %v2143
          %v2229 = vpop.f32.mrb[0].mxu0
          %v2230 = vadd.f32 %v2133, %v2229
          %v2231 = vpop.f32.mrb[0].mxu0
          %v2232 = vpop.f32.mrb[0].mxu0
          %v2233 = vadd.f32 %v2133, %v2232
          %v2234 = vpop.f32.mrb[0].mxu0
          %2235 = vmatprep.mubr.bf16.mxu0 0
          %2236 = vmatmul.mubr.bf16.gmra.mrb[0].mxu0 %v2144
          %v2237 = vpop.f32.mrb[0].mxu0
          %v2238 = vadd.f32 %v2133, %v2237
          %v2239 = vpop.f32.mrb[0].mxu0
          %v2240 = vpop.f32.mrb[0].mxu0
          %v2241 = vadd.f32 %v2133, %v2240
          %v2242 = vpop.f32.mrb[0].mxu0
          %2243 = vdwg.mxu0
          %v2244 = vmax.f32 %v2230, 0.0
          %v2245 = vmax.f32 %v2233, 0.0
          %v2246 = vmax.f32 %v2238, 0.0
          %v2247 = vmax.f32 %v2241, 0.0
          %v2248 = vpack.c.bf16 %v2245, %v2244
          %v2249 = vpack.c.bf16 %v2247, %v2246
          %2252 = vrot.lane.b32.xlu0 %v2248, 32
          %v2253 = vpop.permute.xlu0 %2252
          %2254 = vrot.lane.b32.xlu0 %v2249, 32
          %v2255 = vpop.permute.xlu0 %2254
          %s2258 = scalar_lea.vmem [#allocation2], 272
          %2259 = vst.msk [vmem:[%s2258] sm:$0xff] %vm1272, %v2253
          %2260 = vst.msk [vmem:[%s2258 + $0x8] sm:$0xff] %vm1272, %v2255
          %v2262 = vshrl.u32 %v2248, 16
          %v2264 = vrot.slane %v2262, 7
          %v2265 = vshll.u32 %v2248, 16
          %v2267 = vor.u32 %v2264, %v2265
          %v2269 = vshrl.u32 %v2249, 16
          %v2271 = vrot.slane %v2269, 7
          %v2272 = vshll.u32 %v2249, 16
          %v2274 = vor.u32 %v2271, %v2272
          %v2275 = vsel %vm315, %v2264, %v2274
          %v2278 = vld [vmem:[%s2258] sm:$0xff]
          %v2279 = vsel %vm1579, %v2267, %v2278
          %2280 = vst [vmem:[%s2258] sm:$0xff] %v2279
          %2281 = vst.msk [vmem:[%s2258 + $0x8] sm:$0xff] %vm1583, %v2275
          %v2282 = vrot.slane %v2265, 1
          %v2283 = vor.u32 %v2262, %v2282
          %v2284 = vrot.slane %v2272, 1
          %v2285 = vsel %vm1645, %v2283, %v2284
          %v2286 = vor.u32 %v2269, %v2284
          %2287 = vrot.lane.b32.xlu0 %v2285, 64
          %v2288 = vpop.permute.xlu0 %2287
          %2289 = vrot.lane.b32.xlu0 %v2286, 64
          %v2290 = vpop.permute.xlu0 %2289
          %2293 = vst.msk [vmem:[%s2258] sm:$0xff] %vm1822, %v2288
          %v2294 = vld [vmem:[%s2258 + $0x8] sm:$0xff]
          %v2295 = vsel %vm1825, %v2290, %v2294
          %2296 = vst [vmem:[%s2258 + $0x8] sm:$0xff] %v2295
        $region68: #{tpu_custom_call.1} parent=47 // pred_fallthru
          _
        %v2297 = vld [vmem:[#allocation2] sm:$0xff]
        %v2298 = vld [vmem:[#allocation2 + $0x8] sm:$0xff]
        %v2299 = vld [vmem:[#allocation2 + $0x10] sm:$0xff]
        %v2300 = vld [vmem:[#allocation2 + $0x18] sm:$0xff]
        %v2301 = vld [vmem:[#allocation2 + $0x20] sm:$0xff]
        %v2302 = vld [vmem:[#allocation2 + $0x28] sm:$0xff]
        %v2303 = vld [vmem:[#allocation2 + $0x30] sm:$0xff]
        %v2304 = vld [vmem:[#allocation2 + $0x38] sm:$0xff]
        %v2305 = vld [vmem:[#allocation2 + $0x40] sm:$0xff]
        %v2306 = vld [vmem:[#allocation2 + $0x48] sm:$0xff]
        %v2307 = vld [vmem:[#allocation2 + $0x50] sm:$0xff]
        %v2308 = vld [vmem:[#allocation2 + $0x58] sm:$0xff]
        %v2309 = vld [vmem:[#allocation2 + $0x60] sm:$0xff]
        %v2310 = vld [vmem:[#allocation2 + $0x68] sm:$0xff]
        %v2311 = vld [vmem:[#allocation2 + $0x70] sm:$0xff]
        %v2312 = vld [vmem:[#allocation2 + $0x78] sm:$0xff]
        %v2313 = vld [vmem:[#allocation2 + $0x80] sm:$0xff]
        %v2314 = vld [vmem:[#allocation2 + $0x88] sm:$0xff]
        %v2315 = vld [vmem:[#allocation2 + $0x90] sm:$0xff]
        %v2316 = vld [vmem:[#allocation2 + $0x98] sm:$0xff]
        %v2317 = vld [vmem:[#allocation2 + $0xa0] sm:$0xff]
        %v2318 = vld [vmem:[#allocation2 + $0xa8] sm:$0xff]
        %v2319 = vld [vmem:[#allocation2 + $0xb0] sm:$0xff]
        %v2320 = vld [vmem:[#allocation2 + $0xb8] sm:$0xff]
        %v2321 = vld [vmem:[#allocation2 + $0xc0] sm:$0xff]
        %v2322 = vld [vmem:[#allocation2 + $0xc8] sm:$0xff]
        %v2323 = vld [vmem:[#allocation2 + $0xd0] sm:$0xff]
        %v2324 = vld [vmem:[#allocation2 + $0xd8] sm:$0xff]
        %v2325 = vld [vmem:[#allocation2 + $0xe0] sm:$0xff]
        %v2326 = vld [vmem:[#allocation2 + $0xe8] sm:$0xff]
        %v2327 = vld [vmem:[#allocation2 + $0xf0] sm:$0xff]
        %v2328 = vld [vmem:[#allocation2 + $0xf8] sm:$0xff]
        %v2329 = vld [vmem:[%s3] sm:$0xf]
        %v2330 = vld [vmem:[%s3 + $0x4] sm:$0xf]
        %v2331 = vld [vmem:[%s3 + $0x8] sm:$0xf]
        %v2332 = vld [vmem:[%s3 + $0xc] sm:$0xf]
        %v2333 = vld [vmem:[%s3 + $0x10] sm:$0xf]
        %v2334 = vld [vmem:[%s3 + $0x14] sm:$0xf]
        %v2335 = vld [vmem:[%s3 + $0x18] sm:$0xf]
        %v2336 = vld [vmem:[%s3 + $0x1c] sm:$0xf]
        %v2337 = vld [vmem:[%s3 + $0x20] sm:$0xf]
        %v2338 = vld [vmem:[%s3 + $0x24] sm:$0xf]
        %v2339 = vld [vmem:[%s3 + $0x28] sm:$0xf]
        %v2340 = vld [vmem:[%s3 + $0x2c] sm:$0xf]
        %v2341 = vld [vmem:[%s1271] sm:$0xff]
        %v2342 = vld [vmem:[%s1271 + $0x8] sm:$0xff]
        %v2343 = vld [vmem:[%s1271 + $0x10] sm:$0xff]
        %v2344 = vld [vmem:[%s1271 + $0x18] sm:$0xff]
        %v2345 = vld [vmem:[%s1271 + $0x20] sm:$0xff]
        %v2346 = vld [vmem:[%s1271 + $0x28] sm:$0xff]
        %v2347 = vld [vmem:[%s1271 + $0x30] sm:$0xff]
        %v2348 = vld [vmem:[%s1271 + $0x38] sm:$0xff]
        %v2349 = vld [vmem:[%s1271 + $0x40] sm:$0xff]
        %v2350 = vld [vmem:[%s1271 + $0x48] sm:$0xff]
        %v2351 = vld [vmem:[%s1271 + $0x50] sm:$0xff]
        %v2352 = vld [vmem:[%s1271 + $0x58] sm:$0xff]
        %v2353 = vld [vmem:[%s1271 + $0x60] sm:$0xff]
        %v2354 = vld [vmem:[%s1271 + $0x68] sm:$0xff]
        %v2355 = vld [vmem:[%s1271 + $0x70] sm:$0xff]
        %v2356 = vld [vmem:[%s1271 + $0x78] sm:$0xff]
        %v2357 = vld [vmem:[%s1271 + $0x80] sm:$0xff]
        %v2358 = vld [vmem:[%s1271 + $0x88] sm:$0xff]
        %v2359 = vld [vmem:[%s1271 + $0x90] sm:$0xff]
        %v2360 = vld [vmem:[%s1271 + $0x98] sm:$0xff]
        %v2361 = vld [vmem:[%s1271 + $0xa0] sm:$0xff]
        %v2362 = vld [vmem:[%s1271 + $0xa8] sm:$0xff]
        %v2363 = vld [vmem:[%s1271 + $0xb0] sm:$0xff]
        %v2364 = vld [vmem:[%s1271 + $0xb8] sm:$0xff]
        %v2365 = vld [vmem:[%s1271 + $0xc0] sm:$0xff]
        %v2366 = vld [vmem:[%s1271 + $0xc8] sm:$0xff]
        %v2367 = vld [vmem:[%s1271 + $0xd0] sm:$0xff]
        %v2368 = vld [vmem:[%s1271 + $0xd8] sm:$0xff]
        %v2369 = vld [vmem:[%s1271 + $0xe0] sm:$0xff]
        %v2370 = vld [vmem:[%s1271 + $0xe8] sm:$0xff]
        %v2371 = vld [vmem:[%s1271 + $0xf0] sm:$0xff]
        %v2372 = vld [vmem:[%s1271 + $0xf8] sm:$0xff]
        %s2373 = scalar_lea.vmem %s3, 48
        %v2374 = vld [vmem:[%s2373] sm:$0xf]
        %v2375 = vld [vmem:[%s2373 + $0x4] sm:$0xf]
        %v2376 = vld [vmem:[%s2373 + $0x8] sm:$0xf]
        %v2377 = vld [vmem:[%s2373 + $0xc] sm:$0xf]
        %v2378 = vld [vmem:[%s2373 + $0x10] sm:$0xf]
        %v2379 = vld [vmem:[%s2373 + $0x14] sm:$0xf]
        %v2380 = vld [vmem:[%s2373 + $0x18] sm:$0xf]
        %v2381 = vld [vmem:[%s2373 + $0x1c] sm:$0xf]
        %v2382 = vld [vmem:[%s2373 + $0x20] sm:$0xf]
        %v2383 = vld [vmem:[%s2373 + $0x24] sm:$0xf]
        %v2384 = vld [vmem:[%s2373 + $0x28] sm:$0xf]
        %v2385 = vld [vmem:[%s2373 + $0x2c] sm:$0xf]
        %v2398 = vunpack.c.l.b16 %v2374
        %v2399 = vunpack.c.l.b16 %v2375
        %v2400 = vunpack.c.l.b16 %v2376
        %v2401 = vunpack.c.l.b16 %v2377
        %v2402 = vunpack.c.l.b16 %v2378
        %v2403 = vunpack.c.l.b16 %v2379
        %v2404 = vunpack.c.l.b16 %v2380
        %v2405 = vunpack.c.l.b16 %v2381
        %v2406 = vunpack.c.l.b16 %v2382
        %v2407 = vunpack.c.l.b16 %v2383
        %v2408 = vunpack.c.l.b16 %v2384
        %v2409 = vunpack.c.l.b16 %v2385
        %v2410 = vpack.c.b16 %v2399, %v2398
        %v2411 = vpack.c.b16 %v2401, %v2400
        %v2412 = vpack.c.b16 %v2403, %v2402
        %v2413 = vpack.c.b16 %v2405, %v2404
        %v2414 = vpack.c.b16 %v2407, %v2406
        %v2415 = vpack.c.b16 %v2409, %v2408
        %vm2422 = vcmask 785408
        %v2424 = vsel %vm2422, %v2341, 0
        %v2427 = vsel %vm2422, %v2342, 0
        %v2430 = vsel %vm2422, %v2343, 0
        %v2433 = vsel %vm2422, %v2344, 0
        %v2436 = vsel %vm2422, %v2345, 0
        %v2439 = vsel %vm2422, %v2346, 0
        %v2442 = vsel %vm2422, %v2347, 0
        %v2445 = vsel %vm2422, %v2348, 0
        %v2448 = vsel %vm2422, %v2349, 0
        %v2451 = vsel %vm2422, %v2350, 0
        %v2454 = vsel %vm2422, %v2351, 0
        %v2457 = vsel %vm2422, %v2352, 0
        %v2460 = vsel %vm2422, %v2353, 0
        %v2463 = vsel %vm2422, %v2354, 0
        %v2466 = vsel %vm2422, %v2355, 0
        %v2469 = vsel %vm2422, %v2356, 0
        %v2472 = vsel %vm2422, %v2357, 0
        %v2475 = vsel %vm2422, %v2358, 0
        %v2478 = vsel %vm2422, %v2359, 0
        %v2481 = vsel %vm2422, %v2360, 0
        %v2484 = vsel %vm2422, %v2361, 0
        %v2487 = vsel %vm2422, %v2362, 0
        %v2490 = vsel %vm2422, %v2363, 0
        %v2493 = vsel %vm2422, %v2364, 0
        %v2496 = vsel %vm2422, %v2365, 0
        %v2499 = vsel %vm2422, %v2366, 0
        %v2502 = vsel %vm2422, %v2367, 0
        %v2505 = vsel %vm2422, %v2368, 0
        %v2508 = vsel %vm2422, %v2369, 0
        %v2511 = vsel %vm2422, %v2370, 0
        %v2514 = vsel %vm2422, %v2371, 0
        %v2517 = vsel %vm2422, %v2372, 0
        %2519 = vmatprep.subr.bf16.mxu0 0
        %2520 = vmatpush1.bf16.msra.mxu0 %v2410
        %2521 = vmatprep.subr.bf16.mxu0 0
        %2522 = vmatpush1.bf16.msra.mxu0 %v2411
        %2523 = vmatprep.subr.bf16.mxu0 0
        %2524 = vmatpush1.bf16.msra.mxu0 %v2412
        %2525 = vmatprep.subr.bf16.mxu0 0
        %2526 = vmatpush1.bf16.msra.mxu0 %v2413
        %2527 = vmatprep.subr.bf16.mxu0 0
        %2528 = vmatpush1.bf16.msra.mxu0 %v2414
        %2529 = vmatprep.subr.bf16.mxu0 0
        %2530 = vmatpush1.bf16.msra.mxu0 %v2415
        %2531 = vmatprep.subr.bf16.mxu0 0
        %2532 = vmatpush1.bf16.msra.mxu0 0
        %2533 = vmatprep.subr.bf16.mxu0 0
        %2534 = vmatpush1.bf16.msra.mxu0 0
        %2535 = vmatprep.subr.bf16.mxu0 0
        %2536 = vmatpush1.bf16.msra.mxu0 0
        %2537 = vmatprep.subr.bf16.mxu0 0
        %2538 = vmatpush1.bf16.msra.mxu0 0
        %2539 = vmatprep.subr.bf16.mxu0 0
        %2540 = vmatpush1.bf16.msra.mxu0 0
        %2541 = vmatprep.subr.bf16.mxu0 0
        %2542 = vmatpush1.bf16.msra.mxu0 0
        %2543 = vmatprep.subr.bf16.mxu0 0
        %2544 = vmatpush1.bf16.msra.mxu0 0
        %2545 = vmatprep.subr.bf16.mxu0 0
        %2546 = vmatpush1.bf16.msra.mxu0 0
        %2547 = vmatprep.subr.bf16.mxu0 0
        %2548 = vmatpush1.bf16.msra.mxu0 0
        %2549 = vmatprep.subr.bf16.mxu0 0
        %2550 = vmatpush1.bf16.msra.mxu0 0
        %2551 = vmatprep.mubr.bf16.mxu0 0
        %2552 = vmatmul.mubr.bf16.gmra.mrb[0].mxu0 %v2424
        %v2553 = vpop.f32.mrb[0].mxu0
        %v2554 = vadd.f32 0.0, %v2553
        %v2555 = vpop.f32.mrb[0].mxu0
        %v2556 = vpop.f32.mrb[0].mxu0
        %v2557 = vadd.f32 0.0, %v2556
        %v2558 = vpop.f32.mrb[0].mxu0
        %2559 = vmatprep.mubr.bf16.mxu0 0
        %2560 = vmatmul.mubr.bf16.gmra.mrb[0].mxu0 %v2427
        %v2561 = vpop.f32.mrb[0].mxu0
        %v2562 = vadd.f32 0.0, %v2561
        %v2563 = vpop.f32.mrb[0].mxu0
        %v2564 = vpop.f32.mrb[0].mxu0
        %v2565 = vadd.f32 0.0, %v2564
        %v2566 = vpop.f32.mrb[0].mxu0
        %2567 = vmatprep.mubr.bf16.mxu0 0
        %2568 = vmatmul.mubr.bf16.gmra.mrb[0].mxu0 %v2430
        %v2569 = vpop.f32.mrb[0].mxu0
        %v2570 = vadd.f32 0.0, %v2569
        %v2571 = vpop.f32.mrb[0].mxu0
        %v2572 = vpop.f32.mrb[0].mxu0
        %v2573 = vadd.f32 0.0, %v2572
        %v2574 = vpop.f32.mrb[0].mxu0
        %2575 = vmatprep.mubr.bf16.mxu0 0
        %2576 = vmatmul.mubr.bf16.gmra.mrb[0].mxu0 %v2433
        %v2577 = vpop.f32.mrb[0].mxu0
        %v2578 = vadd.f32 0.0, %v2577
        %v2579 = vpop.f32.mrb[0].mxu0
        %v2580 = vpop.f32.mrb[0].mxu0
        %v2581 = vadd.f32 0.0, %v2580
        %v2582 = vpop.f32.mrb[0].mxu0
        %2583 = vmatprep.mubr.bf16.mxu0 0
        %2584 = vmatmul.mubr.bf16.gmra.mrb[0].mxu0 %v2436
        %v2585 = vpop.f32.mrb[0].mxu0
        %v2586 = vadd.f32 0.0, %v2585
        %v2587 = vpop.f32.mrb[0].mxu0
        %v2588 = vpop.f32.mrb[0].mxu0
        %v2589 = vadd.f32 0.0, %v2588
        %v2590 = vpop.f32.mrb[0].mxu0
        %2591 = vmatprep.mubr.bf16.mxu0 0
        %2592 = vmatmul.mubr.bf16.gmra.mrb[0].mxu0 %v2439
        %v2593 = vpop.f32.mrb[0].mxu0
        %v2594 = vadd.f32 0.0, %v2593
        %v2595 = vpop.f32.mrb[0].mxu0
        %v2596 = vpop.f32.mrb[0].mxu0
        %v2597 = vadd.f32 0.0, %v2596
        %v2598 = vpop.f32.mrb[0].mxu0
        %2599 = vmatprep.mubr.bf16.mxu0 0
        %2600 = vmatmul.mubr.bf16.gmra.mrb[0].mxu0 %v2442
        %v2601 = vpop.f32.mrb[0].mxu0
        %v2602 = vadd.f32 0.0, %v2601
        %v2603 = vpop.f32.mrb[0].mxu0
        %v2604 = vpop.f32.mrb[0].mxu0
        %v2605 = vadd.f32 0.0, %v2604
        %v2606 = vpop.f32.mrb[0].mxu0
        %2607 = vmatprep.mubr.bf16.mxu0 0
        %2608 = vmatmul.mubr.bf16.gmra.mrb[0].mxu0 %v2445
        %v2609 = vpop.f32.mrb[0].mxu0
        %v2610 = vadd.f32 0.0, %v2609
        %v2611 = vpop.f32.mrb[0].mxu0
        %v2612 = vpop.f32.mrb[0].mxu0
        %v2613 = vadd.f32 0.0, %v2612
        %v2614 = vpop.f32.mrb[0].mxu0
        %2615 = vmatprep.mubr.bf16.mxu0 0
        %2616 = vmatmul.mubr.bf16.gmra.mrb[0].mxu0 %v2448
        %v2617 = vpop.f32.mrb[0].mxu0
        %v2618 = vadd.f32 0.0, %v2617
        %v2619 = vpop.f32.mrb[0].mxu0
        %v2620 = vpop.f32.mrb[0].mxu0
        %v2621 = vadd.f32 0.0, %v2620
        %v2622 = vpop.f32.mrb[0].mxu0
        %2623 = vmatprep.mubr.bf16.mxu0 0
        %2624 = vmatmul.mubr.bf16.gmra.mrb[0].mxu0 %v2451
        %v2625 = vpop.f32.mrb[0].mxu0
        %v2626 = vadd.f32 0.0, %v2625
        %v2627 = vpop.f32.mrb[0].mxu0
        %v2628 = vpop.f32.mrb[0].mxu0
        %v2629 = vadd.f32 0.0, %v2628
        %v2630 = vpop.f32.mrb[0].mxu0
        %2631 = vmatprep.mubr.bf16.mxu0 0
        %2632 = vmatmul.mubr.bf16.gmra.mrb[0].mxu0 %v2454
        %v2633 = vpop.f32.mrb[0].mxu0
        %v2634 = vadd.f32 0.0, %v2633
        %v2635 = vpop.f32.mrb[0].mxu0
        %v2636 = vpop.f32.mrb[0].mxu0
        %v2637 = vadd.f32 0.0, %v2636
        %v2638 = vpop.f32.mrb[0].mxu0
        %2639 = vmatprep.mubr.bf16.mxu0 0
        %2640 = vmatmul.mubr.bf16.gmra.mrb[0].mxu0 %v2457
        %v2641 = vpop.f32.mrb[0].mxu0
        %v2642 = vadd.f32 0.0, %v2641
        %v2643 = vpop.f32.mrb[0].mxu0
        %v2644 = vpop.f32.mrb[0].mxu0
        %v2645 = vadd.f32 0.0, %v2644
        %v2646 = vpop.f32.mrb[0].mxu0
        %2647 = vmatprep.mubr.bf16.mxu0 0
        %2648 = vmatmul.mubr.bf16.gmra.mrb[0].mxu0 %v2460
        %v2649 = vpop.f32.mrb[0].mxu0
        %v2650 = vadd.f32 0.0, %v2649
        %v2651 = vpop.f32.mrb[0].mxu0
        %v2652 = vpop.f32.mrb[0].mxu0
        %v2653 = vadd.f32 0.0, %v2652
        %v2654 = vpop.f32.mrb[0].mxu0
        %2655 = vmatprep.mubr.bf16.mxu0 0
        %2656 = vmatmul.mubr.bf16.gmra.mrb[0].mxu0 %v2463
        %v2657 = vpop.f32.mrb[0].mxu0
        %v2658 = vadd.f32 0.0, %v2657
        %v2659 = vpop.f32.mrb[0].mxu0
        %v2660 = vpop.f32.mrb[0].mxu0
        %v2661 = vadd.f32 0.0, %v2660
        %v2662 = vpop.f32.mrb[0].mxu0
        %2663 = vmatprep.mubr.bf16.mxu0 0
        %2664 = vmatmul.mubr.bf16.gmra.mrb[0].mxu0 %v2466
        %v2665 = vpop.f32.mrb[0].mxu0
        %v2666 = vadd.f32 0.0, %v2665
        %v2667 = vpop.f32.mrb[0].mxu0
        %v2668 = vpop.f32.mrb[0].mxu0
        %v2669 = vadd.f32 0.0, %v2668
        %v2670 = vpop.f32.mrb[0].mxu0
        %2671 = vmatprep.mubr.bf16.mxu0 0
        %2672 = vmatmul.mubr.bf16.gmra.mrb[0].mxu0 %v2469
        %v2673 = vpop.f32.mrb[0].mxu0
        %v2674 = vadd.f32 0.0, %v2673
        %v2675 = vpop.f32.mrb[0].mxu0
        %v2676 = vpop.f32.mrb[0].mxu0
        %v2677 = vadd.f32 0.0, %v2676
        %v2678 = vpop.f32.mrb[0].mxu0
        %2679 = vmatprep.mubr.bf16.mxu0 0
        %2680 = vmatmul.mubr.bf16.gmra.mrb[0].mxu0 %v2472
        %v2681 = vpop.f32.mrb[0].mxu0
        %v2682 = vadd.f32 0.0, %v2681
        %v2683 = vpop.f32.mrb[0].mxu0
        %v2684 = vpop.f32.mrb[0].mxu0
        %v2685 = vadd.f32 0.0, %v2684
        %v2686 = vpop.f32.mrb[0].mxu0
        %2687 = vmatprep.mubr.bf16.mxu0 0
        %2688 = vmatmul.mubr.bf16.gmra.mrb[0].mxu0 %v2475
        %v2689 = vpop.f32.mrb[0].mxu0
        %v2690 = vadd.f32 0.0, %v2689
        %v2691 = vpop.f32.mrb[0].mxu0
        %v2692 = vpop.f32.mrb[0].mxu0
        %v2693 = vadd.f32 0.0, %v2692
        %v2694 = vpop.f32.mrb[0].mxu0
        %2695 = vmatprep.mubr.bf16.mxu0 0
        %2696 = vmatmul.mubr.bf16.gmra.mrb[0].mxu0 %v2478
        %v2697 = vpop.f32.mrb[0].mxu0
        %v2698 = vadd.f32 0.0, %v2697
        %v2699 = vpop.f32.mrb[0].mxu0
        %v2700 = vpop.f32.mrb[0].mxu0
        %v2701 = vadd.f32 0.0, %v2700
        %v2702 = vpop.f32.mrb[0].mxu0
        %2703 = vmatprep.mubr.bf16.mxu0 0
        %2704 = vmatmul.mubr.bf16.gmra.mrb[0].mxu0 %v2481
        %v2705 = vpop.f32.mrb[0].mxu0
        %v2706 = vadd.f32 0.0, %v2705
        %v2707 = vpop.f32.mrb[0].mxu0
        %v2708 = vpop.f32.mrb[0].mxu0
        %v2709 = vadd.f32 0.0, %v2708
        %v2710 = vpop.f32.mrb[0].mxu0
        %2711 = vmatprep.mubr.bf16.mxu0 0
        %2712 = vmatmul.mubr.bf16.gmra.mrb[0].mxu0 %v2484
        %v2713 = vpop.f32.mrb[0].mxu0
        %v2714 = vadd.f32 0.0, %v2713
        %v2715 = vpop.f32.mrb[0].mxu0
        %v2716 = vpop.f32.mrb[0].mxu0
        %v2717 = vadd.f32 0.0, %v2716
        %v2718 = vpop.f32.mrb[0].mxu0
        %2719 = vmatprep.mubr.bf16.mxu0 0
        %2720 = vmatmul.mubr.bf16.gmra.mrb[0].mxu0 %v2487
        %v2721 = vpop.f32.mrb[0].mxu0
        %v2722 = vadd.f32 0.0, %v2721
        %v2723 = vpop.f32.mrb[0].mxu0
        %v2724 = vpop.f32.mrb[0].mxu0
        %v2725 = vadd.f32 0.0, %v2724
        %v2726 = vpop.f32.mrb[0].mxu0
        %2727 = vmatprep.mubr.bf16.mxu0 0
        %2728 = vmatmul.mubr.bf16.gmra.mrb[0].mxu0 %v2490
        %v2729 = vpop.f32.mrb[0].mxu0
        %v2730 = vadd.f32 0.0, %v2729
        %v2731 = vpop.f32.mrb[0].mxu0
        %v2732 = vpop.f32.mrb[0].mxu0
        %v2733 = vadd.f32 0.0, %v2732
        %v2734 = vpop.f32.mrb[0].mxu0
        %2735 = vmatprep.mubr.bf16.mxu0 0
        %2736 = vmatmul.mubr.bf16.gmra.mrb[0].mxu0 %v2493
        %v2737 = vpop.f32.mrb[0].mxu0
        %v2738 = vadd.f32 0.0, %v2737
        %v2739 = vpop.f32.mrb[0].mxu0
        %v2740 = vpop.f32.mrb[0].mxu0
        %v2741 = vadd.f32 0.0, %v2740
        %v2742 = vpop.f32.mrb[0].mxu0
        %2743 = vmatprep.mubr.bf16.mxu0 0
        %2744 = vmatmul.mubr.bf16.gmra.mrb[0].mxu0 %v2496
        %v2745 = vpop.f32.mrb[0].mxu0
        %v2746 = vadd.f32 0.0, %v2745
        %v2747 = vpop.f32.mrb[0].mxu0
        %v2748 = vpop.f32.mrb[0].mxu0
        %v2749 = vadd.f32 0.0, %v2748
        %v2750 = vpop.f32.mrb[0].mxu0
        %2751 = vmatprep.mubr.bf16.mxu0 0
        %2752 = vmatmul.mubr.bf16.gmra.mrb[0].mxu0 %v2499
        %v2753 = vpop.f32.mrb[0].mxu0
        %v2754 = vadd.f32 0.0, %v2753
        %v2755 = vpop.f32.mrb[0].mxu0
        %v2756 = vpop.f32.mrb[0].mxu0
        %v2757 = vadd.f32 0.0, %v2756
        %v2758 = vpop.f32.mrb[0].mxu0
        %2759 = vmatprep.mubr.bf16.mxu0 0
        %2760 = vmatmul.mubr.bf16.gmra.mrb[0].mxu0 %v2502
        %v2761 = vpop.f32.mrb[0].mxu0
        %v2762 = vadd.f32 0.0, %v2761
        %v2763 = vpop.f32.mrb[0].mxu0
        %v2764 = vpop.f32.mrb[0].mxu0
        %v2765 = vadd.f32 0.0, %v2764
        %v2766 = vpop.f32.mrb[0].mxu0
        %2767 = vmatprep.mubr.bf16.mxu0 0
        %2768 = vmatmul.mubr.bf16.gmra.mrb[0].mxu0 %v2505
        %v2769 = vpop.f32.mrb[0].mxu0
        %v2770 = vadd.f32 0.0, %v2769
        %v2771 = vpop.f32.mrb[0].mxu0
        %v2772 = vpop.f32.mrb[0].mxu0
        %v2773 = vadd.f32 0.0, %v2772
        %v2774 = vpop.f32.mrb[0].mxu0
        %2775 = vmatprep.mubr.bf16.mxu0 0
        %2776 = vmatmul.mubr.bf16.gmra.mrb[0].mxu0 %v2508
        %v2777 = vpop.f32.mrb[0].mxu0
        %v2778 = vadd.f32 0.0, %v2777
        %v2779 = vpop.f32.mrb[0].mxu0
        %v2780 = vpop.f32.mrb[0].mxu0
        %v2781 = vadd.f32 0.0, %v2780
        %v2782 = vpop.f32.mrb[0].mxu0
        %2783 = vmatprep.mubr.bf16.mxu0 0
        %2784 = vmatmul.mubr.bf16.gmra.mrb[0].mxu0 %v2511
        %v2785 = vpop.f32.mrb[0].mxu0
        %v2786 = vadd.f32 0.0, %v2785
        %v2787 = vpop.f32.mrb[0].mxu0
        %v2788 = vpop.f32.mrb[0].mxu0
        %v2789 = vadd.f32 0.0, %v2788
        %v2790 = vpop.f32.mrb[0].mxu0
        %2791 = vmatprep.mubr.bf16.mxu0 0
        %2792 = vmatmul.mubr.bf16.gmra.mrb[0].mxu0 %v2514
        %v2793 = vpop.f32.mrb[0].mxu0
        %v2794 = vadd.f32 0.0, %v2793
        %v2795 = vpop.f32.mrb[0].mxu0
        %v2796 = vpop.f32.mrb[0].mxu0
        %v2797 = vadd.f32 0.0, %v2796
        %v2798 = vpop.f32.mrb[0].mxu0
        %2799 = vmatprep.mubr.bf16.mxu0 0
        %2800 = vmatmul.mubr.bf16.gmra.mrb[0].mxu0 %v2517
        %v2801 = vpop.f32.mrb[0].mxu0
        %v2802 = vadd.f32 0.0, %v2801
        %v2803 = vpop.f32.mrb[0].mxu0
        %v2804 = vpop.f32.mrb[0].mxu0
        %v2805 = vadd.f32 0.0, %v2804
        %v2806 = vpop.f32.mrb[0].mxu0
        %2807 = vdwg.mxu0
        %v2820 = vunpack.c.l.b16 %v2329
        %v2821 = vunpack.c.l.b16 %v2330
        %v2822 = vunpack.c.l.b16 %v2331
        %v2823 = vunpack.c.l.b16 %v2332
        %v2824 = vunpack.c.l.b16 %v2333
        %v2825 = vunpack.c.l.b16 %v2334
        %v2826 = vunpack.c.l.b16 %v2335
        %v2827 = vunpack.c.l.b16 %v2336
        %v2828 = vunpack.c.l.b16 %v2337
        %v2829 = vunpack.c.l.b16 %v2338
        %v2830 = vunpack.c.l.b16 %v2339
        %v2831 = vunpack.c.l.b16 %v2340
        %v2832 = vpack.c.b16 %v2821, %v2820
        %v2833 = vpack.c.b16 %v2823, %v2822
        %v2834 = vpack.c.b16 %v2825, %v2824
        %v2835 = vpack.c.b16 %v2827, %v2826
        %v2836 = vpack.c.b16 %v2829, %v2828
        %v2837 = vpack.c.b16 %v2831, %v2830
        %v2845 = vsel %vm2422, %v2297, 0
        %v2848 = vsel %vm2422, %v2298, 0
        %v2851 = vsel %vm2422, %v2299, 0
        %v2854 = vsel %vm2422, %v2300, 0
        %v2857 = vsel %vm2422, %v2301, 0
        %v2860 = vsel %vm2422, %v2302, 0
        %v2863 = vsel %vm2422, %v2303, 0
        %v2866 = vsel %vm2422, %v2304, 0
        %v2869 = vsel %vm2422, %v2305, 0
        %v2872 = vsel %vm2422, %v2306, 0
        %v2875 = vsel %vm2422, %v2307, 0
        %v2878 = vsel %vm2422, %v2308, 0
        %v2881 = vsel %vm2422, %v2309, 0
        %v2884 = vsel %vm2422, %v2310, 0
        %v2887 = vsel %vm2422, %v2311, 0
        %v2890 = vsel %vm2422, %v2312, 0
        %v2893 = vsel %vm2422, %v2313, 0
        %v2896 = vsel %vm2422, %v2314, 0
        %v2899 = vsel %vm2422, %v2315, 0
        %v2902 = vsel %vm2422, %v2316, 0
        %v2905 = vsel %vm2422, %v2317, 0
        %v2908 = vsel %vm2422, %v2318, 0
        %v2911 = vsel %vm2422, %v2319, 0
        %v2914 = vsel %vm2422, %v2320, 0
        %v2917 = vsel %vm2422, %v2321, 0
        %v2920 = vsel %vm2422, %v2322, 0
        %v2923 = vsel %vm2422, %v2323, 0
        %v2926 = vsel %vm2422, %v2324, 0
        %v2929 = vsel %vm2422, %v2325, 0
        %v2932 = vsel %vm2422, %v2326, 0
        %v2935 = vsel %vm2422, %v2327, 0
        %v2938 = vsel %vm2422, %v2328, 0
        %2940 = vmatprep.subr.bf16.mxu0 0
        %2941 = vmatpush1.bf16.msra.mxu0 %v2832
        %2942 = vmatprep.subr.bf16.mxu0 0
        %2943 = vmatpush1.bf16.msra.mxu0 %v2833
        %2944 = vmatprep.subr.bf16.mxu0 0
        %2945 = vmatpush1.bf16.msra.mxu0 %v2834
        %2946 = vmatprep.subr.bf16.mxu0 0
        %2947 = vmatpush1.bf16.msra.mxu0 %v2835
        %2948 = vmatprep.subr.bf16.mxu0 0
        %2949 = vmatpush1.bf16.msra.mxu0 %v2836
        %2950 = vmatprep.subr.bf16.mxu0 0
        %2951 = vmatpush1.bf16.msra.mxu0 %v2837
        %2952 = vmatprep.subr.bf16.mxu0 0
        %2953 = vmatpush1.bf16.msra.mxu0 0
        %2954 = vmatprep.subr.bf16.mxu0 0
        %2955 = vmatpush1.bf16.msra.mxu0 0
        %2956 = vmatprep.subr.bf16.mxu0 0
        %2957 = vmatpush1.bf16.msra.mxu0 0
        %2958 = vmatprep.subr.bf16.mxu0 0
        %2959 = vmatpush1.bf16.msra.mxu0 0
        %2960 = vmatprep.subr.bf16.mxu0 0
        %2961 = vmatpush1.bf16.msra.mxu0 0
        %2962 = vmatprep.subr.bf16.mxu0 0
        %2963 = vmatpush1.bf16.msra.mxu0 0
        %2964 = vmatprep.subr.bf16.mxu0 0
        %2965 = vmatpush1.bf16.msra.mxu0 0
        %2966 = vmatprep.subr.bf16.mxu0 0
        %2967 = vmatpush1.bf16.msra.mxu0 0
        %2968 = vmatprep.subr.bf16.mxu0 0
        %2969 = vmatpush1.bf16.msra.mxu0 0
        %2970 = vmatprep.subr.bf16.mxu0 0
        %2971 = vmatpush1.bf16.msra.mxu0 0
        %2972 = vmatprep.mubr.bf16.mxu0 0
        %2973 = vmatmul.mubr.bf16.gmra.mrb[0].mxu0 %v2845
        %v2974 = vpop.f32.mrb[0].mxu0
        %v2975 = vadd.f32 %v2554, %v2974
        %v2976 = vpop.f32.mrb[0].mxu0
        %v2977 = vpop.f32.mrb[0].mxu0
        %v2978 = vadd.f32 %v2557, %v2977
        %v2979 = vpop.f32.mrb[0].mxu0
        %2980 = vmatprep.mubr.bf16.mxu0 0
        %2981 = vmatmul.mubr.bf16.gmra.mrb[0].mxu0 %v2848
        %v2982 = vpop.f32.mrb[0].mxu0
        %v2983 = vadd.f32 %v2562, %v2982
        %v2984 = vpop.f32.mrb[0].mxu0
        %v2985 = vpop.f32.mrb[0].mxu0
        %v2986 = vadd.f32 %v2565, %v2985
        %v2987 = vpop.f32.mrb[0].mxu0
        %2988 = vmatprep.mubr.bf16.mxu0 0
        %2989 = vmatmul.mubr.bf16.gmra.mrb[0].mxu0 %v2851
        %v2990 = vpop.f32.mrb[0].mxu0
        %v2991 = vadd.f32 %v2570, %v2990
        %v2992 = vpop.f32.mrb[0].mxu0
        %v2993 = vpop.f32.mrb[0].mxu0
        %v2994 = vadd.f32 %v2573, %v2993
        %v2995 = vpop.f32.mrb[0].mxu0
        %2996 = vmatprep.mubr.bf16.mxu0 0
        %2997 = vmatmul.mubr.bf16.gmra.mrb[0].mxu0 %v2854
        %v2998 = vpop.f32.mrb[0].mxu0
        %v2999 = vadd.f32 %v2578, %v2998
        %v3000 = vpop.f32.mrb[0].mxu0
        %v3001 = vpop.f32.mrb[0].mxu0
        %v3002 = vadd.f32 %v2581, %v3001
        %v3003 = vpop.f32.mrb[0].mxu0
        %3004 = vmatprep.mubr.bf16.mxu0 0
        %3005 = vmatmul.mubr.bf16.gmra.mrb[0].mxu0 %v2857
        %v3006 = vpop.f32.mrb[0].mxu0
        %v3007 = vadd.f32 %v2586, %v3006
        %v3008 = vpop.f32.mrb[0].mxu0
        %v3009 = vpop.f32.mrb[0].mxu0
        %v3010 = vadd.f32 %v2589, %v3009
        %v3011 = vpop.f32.mrb[0].mxu0
        %3012 = vmatprep.mubr.bf16.mxu0 0
        %3013 = vmatmul.mubr.bf16.gmra.mrb[0].mxu0 %v2860
        %v3014 = vpop.f32.mrb[0].mxu0
        %v3015 = vadd.f32 %v2594, %v3014
        %v3016 = vpop.f32.mrb[0].mxu0
        %v3017 = vpop.f32.mrb[0].mxu0
        %v3018 = vadd.f32 %v2597, %v3017
        %v3019 = vpop.f32.mrb[0].mxu0
        %3020 = vmatprep.mubr.bf16.mxu0 0
        %3021 = vmatmul.mubr.bf16.gmra.mrb[0].mxu0 %v2863
        %v3022 = vpop.f32.mrb[0].mxu0
        %v3023 = vadd.f32 %v2602, %v3022
        %v3024 = vpop.f32.mrb[0].mxu0
        %v3025 = vpop.f32.mrb[0].mxu0
        %v3026 = vadd.f32 %v2605, %v3025
        %v3027 = vpop.f32.mrb[0].mxu0
        %3028 = vmatprep.mubr.bf16.mxu0 0
        %3029 = vmatmul.mubr.bf16.gmra.mrb[0].mxu0 %v2866
        %v3030 = vpop.f32.mrb[0].mxu0
        %v3031 = vadd.f32 %v2610, %v3030
        %v3032 = vpop.f32.mrb[0].mxu0
        %v3033 = vpop.f32.mrb[0].mxu0
        %v3034 = vadd.f32 %v2613, %v3033
        %v3035 = vpop.f32.mrb[0].mxu0
        %3036 = vmatprep.mubr.bf16.mxu0 0
        %3037 = vmatmul.mubr.bf16.gmra.mrb[0].mxu0 %v2869
        %v3038 = vpop.f32.mrb[0].mxu0
        %v3039 = vadd.f32 %v2618, %v3038
        %v3040 = vpop.f32.mrb[0].mxu0
        %v3041 = vpop.f32.mrb[0].mxu0
        %v3042 = vadd.f32 %v2621, %v3041
        %v3043 = vpop.f32.mrb[0].mxu0
        %3044 = vmatprep.mubr.bf16.mxu0 0
        %3045 = vmatmul.mubr.bf16.gmra.mrb[0].mxu0 %v2872
        %v3046 = vpop.f32.mrb[0].mxu0
        %v3047 = vadd.f32 %v2626, %v3046
        %v3048 = vpop.f32.mrb[0].mxu0
        %v3049 = vpop.f32.mrb[0].mxu0
        %v3050 = vadd.f32 %v2629, %v3049
        %v3051 = vpop.f32.mrb[0].mxu0
        %3052 = vmatprep.mubr.bf16.mxu0 0
        %3053 = vmatmul.mubr.bf16.gmra.mrb[0].mxu0 %v2875
        %v3054 = vpop.f32.mrb[0].mxu0
        %v3055 = vadd.f32 %v2634, %v3054
        %v3056 = vpop.f32.mrb[0].mxu0
        %v3057 = vpop.f32.mrb[0].mxu0
        %v3058 = vadd.f32 %v2637, %v3057
        %v3059 = vpop.f32.mrb[0].mxu0
        %3060 = vmatprep.mubr.bf16.mxu0 0
        %3061 = vmatmul.mubr.bf16.gmra.mrb[0].mxu0 %v2878
        %v3062 = vpop.f32.mrb[0].mxu0
        %v3063 = vadd.f32 %v2642, %v3062
        %v3064 = vpop.f32.mrb[0].mxu0
        %v3065 = vpop.f32.mrb[0].mxu0
        %v3066 = vadd.f32 %v2645, %v3065
        %v3067 = vpop.f32.mrb[0].mxu0
        %3068 = vmatprep.mubr.bf16.mxu0 0
        %3069 = vmatmul.mubr.bf16.gmra.mrb[0].mxu0 %v2881
        %v3070 = vpop.f32.mrb[0].mxu0
        %v3071 = vadd.f32 %v2650, %v3070
        %v3072 = vpop.f32.mrb[0].mxu0
        %v3073 = vpop.f32.mrb[0].mxu0
        %v3074 = vadd.f32 %v2653, %v3073
        %v3075 = vpop.f32.mrb[0].mxu0
        %3076 = vmatprep.mubr.bf16.mxu0 0
        %3077 = vmatmul.mubr.bf16.gmra.mrb[0].mxu0 %v2884
        %v3078 = vpop.f32.mrb[0].mxu0
        %v3079 = vadd.f32 %v2658, %v3078
        %v3080 = vpop.f32.mrb[0].mxu0
        %v3081 = vpop.f32.mrb[0].mxu0
        %v3082 = vadd.f32 %v2661, %v3081
        %v3083 = vpop.f32.mrb[0].mxu0
        %3084 = vmatprep.mubr.bf16.mxu0 0
        %3085 = vmatmul.mubr.bf16.gmra.mrb[0].mxu0 %v2887
        %v3086 = vpop.f32.mrb[0].mxu0
        %v3087 = vadd.f32 %v2666, %v3086
        %v3088 = vpop.f32.mrb[0].mxu0
        %v3089 = vpop.f32.mrb[0].mxu0
        %v3090 = vadd.f32 %v2669, %v3089
        %v3091 = vpop.f32.mrb[0].mxu0
        %3092 = vmatprep.mubr.bf16.mxu0 0
        %3093 = vmatmul.mubr.bf16.gmra.mrb[0].mxu0 %v2890
        %v3094 = vpop.f32.mrb[0].mxu0
        %v3095 = vadd.f32 %v2674, %v3094
        %v3096 = vpop.f32.mrb[0].mxu0
        %v3097 = vpop.f32.mrb[0].mxu0
        %v3098 = vadd.f32 %v2677, %v3097
        %v3099 = vpop.f32.mrb[0].mxu0
        %3100 = vmatprep.mubr.bf16.mxu0 0
        %3101 = vmatmul.mubr.bf16.gmra.mrb[0].mxu0 %v2893
        %v3102 = vpop.f32.mrb[0].mxu0
        %v3103 = vadd.f32 %v2682, %v3102
        %v3104 = vpop.f32.mrb[0].mxu0
        %v3105 = vpop.f32.mrb[0].mxu0
        %v3106 = vadd.f32 %v2685, %v3105
        %v3107 = vpop.f32.mrb[0].mxu0
        %3108 = vmatprep.mubr.bf16.mxu0 0
        %3109 = vmatmul.mubr.bf16.gmra.mrb[0].mxu0 %v2896
        %v3110 = vpop.f32.mrb[0].mxu0
        %v3111 = vadd.f32 %v2690, %v3110
        %v3112 = vpop.f32.mrb[0].mxu0
        %v3113 = vpop.f32.mrb[0].mxu0
        %v3114 = vadd.f32 %v2693, %v3113
        %v3115 = vpop.f32.mrb[0].mxu0
        %3116 = vmatprep.mubr.bf16.mxu0 0
        %3117 = vmatmul.mubr.bf16.gmra.mrb[0].mxu0 %v2899
        %v3118 = vpop.f32.mrb[0].mxu0
        %v3119 = vadd.f32 %v2698, %v3118
        %v3120 = vpop.f32.mrb[0].mxu0
        %v3121 = vpop.f32.mrb[0].mxu0
        %v3122 = vadd.f32 %v2701, %v3121
        %v3123 = vpop.f32.mrb[0].mxu0
        %3124 = vmatprep.mubr.bf16.mxu0 0
        %3125 = vmatmul.mubr.bf16.gmra.mrb[0].mxu0 %v2902
        %v3126 = vpop.f32.mrb[0].mxu0
        %v3127 = vadd.f32 %v2706, %v3126
        %v3128 = vpop.f32.mrb[0].mxu0
        %v3129 = vpop.f32.mrb[0].mxu0
        %v3130 = vadd.f32 %v2709, %v3129
        %v3131 = vpop.f32.mrb[0].mxu0
        %3132 = vmatprep.mubr.bf16.mxu0 0
        %3133 = vmatmul.mubr.bf16.gmra.mrb[0].mxu0 %v2905
        %v3134 = vpop.f32.mrb[0].mxu0
        %v3135 = vadd.f32 %v2714, %v3134
        %v3136 = vpop.f32.mrb[0].mxu0
        %v3137 = vpop.f32.mrb[0].mxu0
        %v3138 = vadd.f32 %v2717, %v3137
        %v3139 = vpop.f32.mrb[0].mxu0
        %3140 = vmatprep.mubr.bf16.mxu0 0
        %3141 = vmatmul.mubr.bf16.gmra.mrb[0].mxu0 %v2908
        %v3142 = vpop.f32.mrb[0].mxu0
        %v3143 = vadd.f32 %v2722, %v3142
        %v3144 = vpop.f32.mrb[0].mxu0
        %v3145 = vpop.f32.mrb[0].mxu0
        %v3146 = vadd.f32 %v2725, %v3145
        %v3147 = vpop.f32.mrb[0].mxu0
        %3148 = vmatprep.mubr.bf16.mxu0 0
        %3149 = vmatmul.mubr.bf16.gmra.mrb[0].mxu0 %v2911
        %v3150 = vpop.f32.mrb[0].mxu0
        %v3151 = vadd.f32 %v2730, %v3150
        %v3152 = vpop.f32.mrb[0].mxu0
        %v3153 = vpop.f32.mrb[0].mxu0
        %v3154 = vadd.f32 %v2733, %v3153
        %v3155 = vpop.f32.mrb[0].mxu0
        %3156 = vmatprep.mubr.bf16.mxu0 0
        %3157 = vmatmul.mubr.bf16.gmra.mrb[0].mxu0 %v2914
        %v3158 = vpop.f32.mrb[0].mxu0
        %v3159 = vadd.f32 %v2738, %v3158
        %v3160 = vpop.f32.mrb[0].mxu0
        %v3161 = vpop.f32.mrb[0].mxu0
        %v3162 = vadd.f32 %v2741, %v3161
        %v3163 = vpop.f32.mrb[0].mxu0
        %3164 = vmatprep.mubr.bf16.mxu0 0
        %3165 = vmatmul.mubr.bf16.gmra.mrb[0].mxu0 %v2917
        %v3166 = vpop.f32.mrb[0].mxu0
        %v3167 = vadd.f32 %v2746, %v3166
        %v3168 = vpop.f32.mrb[0].mxu0
        %v3169 = vpop.f32.mrb[0].mxu0
        %v3170 = vadd.f32 %v2749, %v3169
        %v3171 = vpop.f32.mrb[0].mxu0
        %3172 = vmatprep.mubr.bf16.mxu0 0
        %3173 = vmatmul.mubr.bf16.gmra.mrb[0].mxu0 %v2920
        %v3174 = vpop.f32.mrb[0].mxu0
        %v3175 = vadd.f32 %v2754, %v3174
        %v3176 = vpop.f32.mrb[0].mxu0
        %v3177 = vpop.f32.mrb[0].mxu0
        %v3178 = vadd.f32 %v2757, %v3177
        %v3179 = vpop.f32.mrb[0].mxu0
        %3180 = vmatprep.mubr.bf16.mxu0 0
        %3181 = vmatmul.mubr.bf16.gmra.mrb[0].mxu0 %v2923
        %v3182 = vpop.f32.mrb[0].mxu0
        %v3183 = vadd.f32 %v2762, %v3182
        %v3184 = vpop.f32.mrb[0].mxu0
        %v3185 = vpop.f32.mrb[0].mxu0
        %v3186 = vadd.f32 %v2765, %v3185
        %v3187 = vpop.f32.mrb[0].mxu0
        %3188 = vmatprep.mubr.bf16.mxu0 0
        %3189 = vmatmul.mubr.bf16.gmra.mrb[0].mxu0 %v2926
        %v3190 = vpop.f32.mrb[0].mxu0
        %v3191 = vadd.f32 %v2770, %v3190
        %v3192 = vpop.f32.mrb[0].mxu0
        %v3193 = vpop.f32.mrb[0].mxu0
        %v3194 = vadd.f32 %v2773, %v3193
        %v3195 = vpop.f32.mrb[0].mxu0
        %3196 = vmatprep.mubr.bf16.mxu0 0
        %3197 = vmatmul.mubr.bf16.gmra.mrb[0].mxu0 %v2929
        %v3198 = vpop.f32.mrb[0].mxu0
        %v3199 = vadd.f32 %v2778, %v3198
        %v3200 = vpop.f32.mrb[0].mxu0
        %v3201 = vpop.f32.mrb[0].mxu0
        %v3202 = vadd.f32 %v2781, %v3201
        %v3203 = vpop.f32.mrb[0].mxu0
        %3204 = vmatprep.mubr.bf16.mxu0 0
        %3205 = vmatmul.mubr.bf16.gmra.mrb[0].mxu0 %v2932
        %v3206 = vpop.f32.mrb[0].mxu0
        %v3207 = vadd.f32 %v2786, %v3206
        %v3208 = vpop.f32.mrb[0].mxu0
        %v3209 = vpop.f32.mrb[0].mxu0
        %v3210 = vadd.f32 %v2789, %v3209
        %v3211 = vpop.f32.mrb[0].mxu0
        %3212 = vmatprep.mubr.bf16.mxu0 0
        %3213 = vmatmul.mubr.bf16.gmra.mrb[0].mxu0 %v2935
        %v3214 = vpop.f32.mrb[0].mxu0
        %v3215 = vadd.f32 %v2794, %v3214
        %v3216 = vpop.f32.mrb[0].mxu0
        %v3217 = vpop.f32.mrb[0].mxu0
        %v3218 = vadd.f32 %v2797, %v3217
        %v3219 = vpop.f32.mrb[0].mxu0
        %3220 = vmatprep.mubr.bf16.mxu0 0
        %3221 = vmatmul.mubr.bf16.gmra.mrb[0].mxu0 %v2938
        %v3222 = vpop.f32.mrb[0].mxu0
        %v3223 = vadd.f32 %v2802, %v3222
        %v3224 = vpop.f32.mrb[0].mxu0
        %v3225 = vpop.f32.mrb[0].mxu0
        %v3226 = vadd.f32 %v2805, %v3225
        %v3227 = vpop.f32.mrb[0].mxu0
        %3228 = vdwg.mxu0
        %s3229 = scalar_lea.vmem [#allocation2], 32
        %v3230 = vld [vmem:[%s3229] sm:$0xff]
        %v3231 = vld [vmem:[%s3229 + $0x8] sm:$0xff]
        %v3232 = vld [vmem:[%s3229 + $0x10] sm:$0xff]
        %v3233 = vld [vmem:[%s3229 + $0x18] sm:$0xff]
        %v3234 = vld [vmem:[%s3229 + $0x20] sm:$0xff]
        %v3235 = vld [vmem:[%s3229 + $0x28] sm:$0xff]
        %v3236 = vld [vmem:[%s3229 + $0x30] sm:$0xff]
        %v3237 = vld [vmem:[%s3229 + $0x38] sm:$0xff]
        %v3238 = vld [vmem:[%s3229 + $0x40] sm:$0xff]
        %v3239 = vld [vmem:[%s3229 + $0x48] sm:$0xff]
        %v3240 = vld [vmem:[%s3229 + $0x50] sm:$0xff]
        %v3241 = vld [vmem:[%s3229 + $0x58] sm:$0xff]
        %v3242 = vld [vmem:[%s3229 + $0x60] sm:$0xff]
        %v3243 = vld [vmem:[%s3229 + $0x68] sm:$0xff]
        %v3244 = vld [vmem:[%s3229 + $0x70] sm:$0xff]
        %v3245 = vld [vmem:[%s3229 + $0x78] sm:$0xff]
        %v3246 = vld [vmem:[%s3229 + $0x80] sm:$0xff]
        %v3247 = vld [vmem:[%s3229 + $0x88] sm:$0xff]
        %v3248 = vld [vmem:[%s3229 + $0x90] sm:$0xff]
        %v3249 = vld [vmem:[%s3229 + $0x98] sm:$0xff]
        %v3250 = vld [vmem:[%s3229 + $0xa0] sm:$0xff]
        %v3251 = vld [vmem:[%s3229 + $0xa8] sm:$0xff]
        %v3252 = vld [vmem:[%s3229 + $0xb0] sm:$0xff]
        %v3253 = vld [vmem:[%s3229 + $0xb8] sm:$0xff]
        %v3254 = vld [vmem:[%s3229 + $0xc0] sm:$0xff]
        %v3255 = vld [vmem:[%s3229 + $0xc8] sm:$0xff]
        %v3256 = vld [vmem:[%s3229 + $0xd0] sm:$0xff]
        %v3257 = vld [vmem:[%s3229 + $0xd8] sm:$0xff]
        %v3258 = vld [vmem:[%s3229 + $0xe0] sm:$0xff]
        %v3259 = vld [vmem:[%s3229 + $0xe8] sm:$0xff]
        %v3260 = vld [vmem:[%s3229 + $0xf0] sm:$0xff]
        %v3261 = vld [vmem:[%s3229 + $0xf8] sm:$0xff]
        %s3262 = scalar_lea.vmem %s3, 96
        %v3263 = vld [vmem:[%s3262] sm:$0xf]
        %v3264 = vld [vmem:[%s3262 + $0x4] sm:$0xf]
        %v3265 = vld [vmem:[%s3262 + $0x8] sm:$0xf]
        %v3266 = vld [vmem:[%s3262 + $0xc] sm:$0xf]
        %v3267 = vld [vmem:[%s3262 + $0x10] sm:$0xf]
        %v3268 = vld [vmem:[%s3262 + $0x14] sm:$0xf]
        %v3269 = vld [vmem:[%s3262 + $0x18] sm:$0xf]
        %v3270 = vld [vmem:[%s3262 + $0x1c] sm:$0xf]
        %v3271 = vld [vmem:[%s3262 + $0x20] sm:$0xf]
        %v3272 = vld [vmem:[%s3262 + $0x24] sm:$0xf]
        %v3273 = vld [vmem:[%s3262 + $0x28] sm:$0xf]
        %v3274 = vld [vmem:[%s3262 + $0x2c] sm:$0xf]
        %v3287 = vunpack.c.l.b16 %v3263
        %v3288 = vunpack.c.l.b16 %v3264
        %v3289 = vunpack.c.l.b16 %v3265
        %v3290 = vunpack.c.l.b16 %v3266
        %v3291 = vunpack.c.l.b16 %v3267
        %v3292 = vunpack.c.l.b16 %v3268
        %v3293 = vunpack.c.l.b16 %v3269
        %v3294 = vunpack.c.l.b16 %v3270
        %v3295 = vunpack.c.l.b16 %v3271
        %v3296 = vunpack.c.l.b16 %v3272
        %v3297 = vunpack.c.l.b16 %v3273
        %v3298 = vunpack.c.l.b16 %v3274
        %v3299 = vpack.c.b16 %v3288, %v3287
        %v3300 = vpack.c.b16 %v3290, %v3289
        %v3301 = vpack.c.b16 %v3292, %v3291
        %v3302 = vpack.c.b16 %v3294, %v3293
        %v3303 = vpack.c.b16 %v3296, %v3295
        %v3304 = vpack.c.b16 %v3298, %v3297
        %v3312 = vsel %vm2422, %v3230, 0
        %v3315 = vsel %vm2422, %v3231, 0
        %v3318 = vsel %vm2422, %v3232, 0
        %v3321 = vsel %vm2422, %v3233, 0
        %v3324 = vsel %vm2422, %v3234, 0
        %v3327 = vsel %vm2422, %v3235, 0
        %v3330 = vsel %vm2422, %v3236, 0
        %v3333 = vsel %vm2422, %v3237, 0
        %v3336 = vsel %vm2422, %v3238, 0
        %v3339 = vsel %vm2422, %v3239, 0
        %v3342 = vsel %vm2422, %v3240, 0
        %v3345 = vsel %vm2422, %v3241, 0
        %v3348 = vsel %vm2422, %v3242, 0
        %v3351 = vsel %vm2422, %v3243, 0
        %v3354 = vsel %vm2422, %v3244, 0
        %v3357 = vsel %vm2422, %v3245, 0
        %v3360 = vsel %vm2422, %v3246, 0
        %v3363 = vsel %vm2422, %v3247, 0
        %v3366 = vsel %vm2422, %v3248, 0
        %v3369 = vsel %vm2422, %v3249, 0
        %v3372 = vsel %vm2422, %v3250, 0
        %v3375 = vsel %vm2422, %v3251, 0
        %v3378 = vsel %vm2422, %v3252, 0
        %v3381 = vsel %vm2422, %v3253, 0
        %v3384 = vsel %vm2422, %v3254, 0
        %v3387 = vsel %vm2422, %v3255, 0
        %v3390 = vsel %vm2422, %v3256, 0
        %v3393 = vsel %vm2422, %v3257, 0
        %v3396 = vsel %vm2422, %v3258, 0
        %v3399 = vsel %vm2422, %v3259, 0
        %v3402 = vsel %vm2422, %v3260, 0
        %v3405 = vsel %vm2422, %v3261, 0
        %3407 = vmatprep.subr.bf16.mxu0 0
        %3408 = vmatpush1.bf16.msra.mxu0 %v3299
        %3409 = vmatprep.subr.bf16.mxu0 0
        %3410 = vmatpush1.bf16.msra.mxu0 %v3300
        %3411 = vmatprep.subr.bf16.mxu0 0
        %3412 = vmatpush1.bf16.msra.mxu0 %v3301
        %3413 = vmatprep.subr.bf16.mxu0 0
        %3414 = vmatpush1.bf16.msra.mxu0 %v3302
        %3415 = vmatprep.subr.bf16.mxu0 0
        %3416 = vmatpush1.bf16.msra.mxu0 %v3303
        %3417 = vmatprep.subr.bf16.mxu0 0
        %3418 = vmatpush1.bf16.msra.mxu0 %v3304
        %3419 = vmatprep.subr.bf16.mxu0 0
        %3420 = vmatpush1.bf16.msra.mxu0 0
        %3421 = vmatprep.subr.bf16.mxu0 0
        %3422 = vmatpush1.bf16.msra.mxu0 0
        %3423 = vmatprep.subr.bf16.mxu0 0
        %3424 = vmatpush1.bf16.msra.mxu0 0
        %3425 = vmatprep.subr.bf16.mxu0 0
        %3426 = vmatpush1.bf16.msra.mxu0 0
        %3427 = vmatprep.subr.bf16.mxu0 0
        %3428 = vmatpush1.bf16.msra.mxu0 0
        %3429 = vmatprep.subr.bf16.mxu0 0
        %3430 = vmatpush1.bf16.msra.mxu0 0
        %3431 = vmatprep.subr.bf16.mxu0 0
        %3432 = vmatpush1.bf16.msra.mxu0 0
        %3433 = vmatprep.subr.bf16.mxu0 0
        %3434 = vmatpush1.bf16.msra.mxu0 0
        %3435 = vmatprep.subr.bf16.mxu0 0
        %3436 = vmatpush1.bf16.msra.mxu0 0
        %3437 = vmatprep.subr.bf16.mxu0 0
        %3438 = vmatpush1.bf16.msra.mxu0 0
        %3439 = vmatprep.mubr.bf16.mxu0 0
        %3440 = vmatmul.mubr.bf16.gmra.mrb[0].mxu0 %v3312
        %v3441 = vpop.f32.mrb[0].mxu0
        %v3442 = vadd.f32 0.0, %v3441
        %v3443 = vpop.f32.mrb[0].mxu0
        %v3444 = vpop.f32.mrb[0].mxu0
        %v3445 = vadd.f32 0.0, %v3444
        %v3446 = vpop.f32.mrb[0].mxu0
        %3447 = vmatprep.mubr.bf16.mxu0 0
        %3448 = vmatmul.mubr.bf16.gmra.mrb[0].mxu0 %v3315
        %v3449 = vpop.f32.mrb[0].mxu0
        %v3450 = vadd.f32 0.0, %v3449
        %v3451 = vpop.f32.mrb[0].mxu0
        %v3452 = vpop.f32.mrb[0].mxu0
        %v3453 = vadd.f32 0.0, %v3452
        %v3454 = vpop.f32.mrb[0].mxu0
        %3455 = vmatprep.mubr.bf16.mxu0 0
        %3456 = vmatmul.mubr.bf16.gmra.mrb[0].mxu0 %v3318
        %v3457 = vpop.f32.mrb[0].mxu0
        %v3458 = vadd.f32 0.0, %v3457
        %v3459 = vpop.f32.mrb[0].mxu0
        %v3460 = vpop.f32.mrb[0].mxu0
        %v3461 = vadd.f32 0.0, %v3460
        %v3462 = vpop.f32.mrb[0].mxu0
        %3463 = vmatprep.mubr.bf16.mxu0 0
        %3464 = vmatmul.mubr.bf16.gmra.mrb[0].mxu0 %v3321
        %v3465 = vpop.f32.mrb[0].mxu0
        %v3466 = vadd.f32 0.0, %v3465
        %v3467 = vpop.f32.mrb[0].mxu0
        %v3468 = vpop.f32.mrb[0].mxu0
        %v3469 = vadd.f32 0.0, %v3468
        %v3470 = vpop.f32.mrb[0].mxu0
        %3471 = vmatprep.mubr.bf16.mxu0 0
        %3472 = vmatmul.mubr.bf16.gmra.mrb[0].mxu0 %v3324
        %v3473 = vpop.f32.mrb[0].mxu0
        %v3474 = vadd.f32 0.0, %v3473
        %v3475 = vpop.f32.mrb[0].mxu0
        %v3476 = vpop.f32.mrb[0].mxu0
        %v3477 = vadd.f32 0.0, %v3476
        %v3478 = vpop.f32.mrb[0].mxu0
        %3479 = vmatprep.mubr.bf16.mxu0 0
        %3480 = vmatmul.mubr.bf16.gmra.mrb[0].mxu0 %v3327
        %v3481 = vpop.f32.mrb[0].mxu0
        %v3482 = vadd.f32 0.0, %v3481
        %v3483 = vpop.f32.mrb[0].mxu0
        %v3484 = vpop.f32.mrb[0].mxu0
        %v3485 = vadd.f32 0.0, %v3484
        %v3486 = vpop.f32.mrb[0].mxu0
        %3487 = vmatprep.mubr.bf16.mxu0 0
        %3488 = vmatmul.mubr.bf16.gmra.mrb[0].mxu0 %v3330
        %v3489 = vpop.f32.mrb[0].mxu0
        %v3490 = vadd.f32 0.0, %v3489
        %v3491 = vpop.f32.mrb[0].mxu0
        %v3492 = vpop.f32.mrb[0].mxu0
        %v3493 = vadd.f32 0.0, %v3492
        %v3494 = vpop.f32.mrb[0].mxu0
        %3495 = vmatprep.mubr.bf16.mxu0 0
        %3496 = vmatmul.mubr.bf16.gmra.mrb[0].mxu0 %v3333
        %v3497 = vpop.f32.mrb[0].mxu0
        %v3498 = vadd.f32 0.0, %v3497
        %v3499 = vpop.f32.mrb[0].mxu0
        %v3500 = vpop.f32.mrb[0].mxu0
        %v3501 = vadd.f32 0.0, %v3500
        %v3502 = vpop.f32.mrb[0].mxu0
        %3503 = vmatprep.mubr.bf16.mxu0 0
        %3504 = vmatmul.mubr.bf16.gmra.mrb[0].mxu0 %v3336
        %v3505 = vpop.f32.mrb[0].mxu0
        %v3506 = vadd.f32 0.0, %v3505
        %v3507 = vpop.f32.mrb[0].mxu0
        %v3508 = vpop.f32.mrb[0].mxu0
        %v3509 = vadd.f32 0.0, %v3508
        %v3510 = vpop.f32.mrb[0].mxu0
        %3511 = vmatprep.mubr.bf16.mxu0 0
        %3512 = vmatmul.mubr.bf16.gmra.mrb[0].mxu0 %v3339
        %v3513 = vpop.f32.mrb[0].mxu0
        %v3514 = vadd.f32 0.0, %v3513
        %v3515 = vpop.f32.mrb[0].mxu0
        %v3516 = vpop.f32.mrb[0].mxu0
        %v3517 = vadd.f32 0.0, %v3516
        %v3518 = vpop.f32.mrb[0].mxu0
        %3519 = vmatprep.mubr.bf16.mxu0 0
        %3520 = vmatmul.mubr.bf16.gmra.mrb[0].mxu0 %v3342
        %v3521 = vpop.f32.mrb[0].mxu0
        %v3522 = vadd.f32 0.0, %v3521
        %v3523 = vpop.f32.mrb[0].mxu0
        %v3524 = vpop.f32.mrb[0].mxu0
        %v3525 = vadd.f32 0.0, %v3524
        %v3526 = vpop.f32.mrb[0].mxu0
        %3527 = vmatprep.mubr.bf16.mxu0 0
        %3528 = vmatmul.mubr.bf16.gmra.mrb[0].mxu0 %v3345
        %v3529 = vpop.f32.mrb[0].mxu0
        %v3530 = vadd.f32 0.0, %v3529
        %v3531 = vpop.f32.mrb[0].mxu0
        %v3532 = vpop.f32.mrb[0].mxu0
        %v3533 = vadd.f32 0.0, %v3532
        %v3534 = vpop.f32.mrb[0].mxu0
        %3535 = vmatprep.mubr.bf16.mxu0 0
        %3536 = vmatmul.mubr.bf16.gmra.mrb[0].mxu0 %v3348
        %v3537 = vpop.f32.mrb[0].mxu0
        %v3538 = vadd.f32 0.0, %v3537
        %v3539 = vpop.f32.mrb[0].mxu0
        %v3540 = vpop.f32.mrb[0].mxu0
        %v3541 = vadd.f32 0.0, %v3540
        %v3542 = vpop.f32.mrb[0].mxu0
        %3543 = vmatprep.mubr.bf16.mxu0 0
        %3544 = vmatmul.mubr.bf16.gmra.mrb[0].mxu0 %v3351
        %v3545 = vpop.f32.mrb[0].mxu0
        %v3546 = vadd.f32 0.0, %v3545
        %v3547 = vpop.f32.mrb[0].mxu0
        %v3548 = vpop.f32.mrb[0].mxu0
        %v3549 = vadd.f32 0.0, %v3548
        %v3550 = vpop.f32.mrb[0].mxu0
        %3551 = vmatprep.mubr.bf16.mxu0 0
        %3552 = vmatmul.mubr.bf16.gmra.mrb[0].mxu0 %v3354
        %v3553 = vpop.f32.mrb[0].mxu0
        %v3554 = vadd.f32 0.0, %v3553
        %v3555 = vpop.f32.mrb[0].mxu0
        %v3556 = vpop.f32.mrb[0].mxu0
        %v3557 = vadd.f32 0.0, %v3556
        %v3558 = vpop.f32.mrb[0].mxu0
        %3559 = vmatprep.mubr.bf16.mxu0 0
        %3560 = vmatmul.mubr.bf16.gmra.mrb[0].mxu0 %v3357
        %v3561 = vpop.f32.mrb[0].mxu0
        %v3562 = vadd.f32 0.0, %v3561
        %v3563 = vpop.f32.mrb[0].mxu0
        %v3564 = vpop.f32.mrb[0].mxu0
        %v3565 = vadd.f32 0.0, %v3564
        %v3566 = vpop.f32.mrb[0].mxu0
        %3567 = vmatprep.mubr.bf16.mxu0 0
        %3568 = vmatmul.mubr.bf16.gmra.mrb[0].mxu0 %v3360
        %v3569 = vpop.f32.mrb[0].mxu0
        %v3570 = vadd.f32 0.0, %v3569
        %v3571 = vpop.f32.mrb[0].mxu0
        %v3572 = vpop.f32.mrb[0].mxu0
        %v3573 = vadd.f32 0.0, %v3572
        %v3574 = vpop.f32.mrb[0].mxu0
        %3575 = vmatprep.mubr.bf16.mxu0 0
        %3576 = vmatmul.mubr.bf16.gmra.mrb[0].mxu0 %v3363
        %v3577 = vpop.f32.mrb[0].mxu0
        %v3578 = vadd.f32 0.0, %v3577
        %v3579 = vpop.f32.mrb[0].mxu0
        %v3580 = vpop.f32.mrb[0].mxu0
        %v3581 = vadd.f32 0.0, %v3580
        %v3582 = vpop.f32.mrb[0].mxu0
        %3583 = vmatprep.mubr.bf16.mxu0 0
        %3584 = vmatmul.mubr.bf16.gmra.mrb[0].mxu0 %v3366
        %v3585 = vpop.f32.mrb[0].mxu0
        %v3586 = vadd.f32 0.0, %v3585
        %v3587 = vpop.f32.mrb[0].mxu0
        %v3588 = vpop.f32.mrb[0].mxu0
        %v3589 = vadd.f32 0.0, %v3588
        %v3590 = vpop.f32.mrb[0].mxu0
        %3591 = vmatprep.mubr.bf16.mxu0 0
        %3592 = vmatmul.mubr.bf16.gmra.mrb[0].mxu0 %v3369
        %v3593 = vpop.f32.mrb[0].mxu0
        %v3594 = vadd.f32 0.0, %v3593
        %v3595 = vpop.f32.mrb[0].mxu0
        %v3596 = vpop.f32.mrb[0].mxu0
        %v3597 = vadd.f32 0.0, %v3596
        %v3598 = vpop.f32.mrb[0].mxu0
        %3599 = vmatprep.mubr.bf16.mxu0 0
        %3600 = vmatmul.mubr.bf16.gmra.mrb[0].mxu0 %v3372
        %v3601 = vpop.f32.mrb[0].mxu0
        %v3602 = vadd.f32 0.0, %v3601
        %v3603 = vpop.f32.mrb[0].mxu0
        %v3604 = vpop.f32.mrb[0].mxu0
        %v3605 = vadd.f32 0.0, %v3604
        %v3606 = vpop.f32.mrb[0].mxu0
        %3607 = vmatprep.mubr.bf16.mxu0 0
        %3608 = vmatmul.mubr.bf16.gmra.mrb[0].mxu0 %v3375
        %v3609 = vpop.f32.mrb[0].mxu0
        %v3610 = vadd.f32 0.0, %v3609
        %v3611 = vpop.f32.mrb[0].mxu0
        %v3612 = vpop.f32.mrb[0].mxu0
        %v3613 = vadd.f32 0.0, %v3612
        %v3614 = vpop.f32.mrb[0].mxu0
        %3615 = vmatprep.mubr.bf16.mxu0 0
        %3616 = vmatmul.mubr.bf16.gmra.mrb[0].mxu0 %v3378
        %v3617 = vpop.f32.mrb[0].mxu0
        %v3618 = vadd.f32 0.0, %v3617
        %v3619 = vpop.f32.mrb[0].mxu0
        %v3620 = vpop.f32.mrb[0].mxu0
        %v3621 = vadd.f32 0.0, %v3620
        %v3622 = vpop.f32.mrb[0].mxu0
        %3623 = vmatprep.mubr.bf16.mxu0 0
        %3624 = vmatmul.mubr.bf16.gmra.mrb[0].mxu0 %v3381
        %v3625 = vpop.f32.mrb[0].mxu0
        %v3626 = vadd.f32 0.0, %v3625
        %v3627 = vpop.f32.mrb[0].mxu0
        %v3628 = vpop.f32.mrb[0].mxu0
        %v3629 = vadd.f32 0.0, %v3628
        %v3630 = vpop.f32.mrb[0].mxu0
        %3631 = vmatprep.mubr.bf16.mxu0 0
        %3632 = vmatmul.mubr.bf16.gmra.mrb[0].mxu0 %v3384
        %v3633 = vpop.f32.mrb[0].mxu0
        %v3634 = vadd.f32 0.0, %v3633
        %v3635 = vpop.f32.mrb[0].mxu0
        %v3636 = vpop.f32.mrb[0].mxu0
        %v3637 = vadd.f32 0.0, %v3636
        %v3638 = vpop.f32.mrb[0].mxu0
        %3639 = vmatprep.mubr.bf16.mxu0 0
        %3640 = vmatmul.mubr.bf16.gmra.mrb[0].mxu0 %v3387
        %v3641 = vpop.f32.mrb[0].mxu0
        %v3642 = vadd.f32 0.0, %v3641
        %v3643 = vpop.f32.mrb[0].mxu0
        %v3644 = vpop.f32.mrb[0].mxu0
        %v3645 = vadd.f32 0.0, %v3644
        %v3646 = vpop.f32.mrb[0].mxu0
        %3647 = vmatprep.mubr.bf16.mxu0 0
        %3648 = vmatmul.mubr.bf16.gmra.mrb[0].mxu0 %v3390
        %v3649 = vpop.f32.mrb[0].mxu0
        %v3650 = vadd.f32 0.0, %v3649
        %v3651 = vpop.f32.mrb[0].mxu0
        %v3652 = vpop.f32.mrb[0].mxu0
        %v3653 = vadd.f32 0.0, %v3652
        %v3654 = vpop.f32.mrb[0].mxu0
        %3655 = vmatprep.mubr.bf16.mxu0 0
        %3656 = vmatmul.mubr.bf16.gmra.mrb[0].mxu0 %v3393
        %v3657 = vpop.f32.mrb[0].mxu0
        %v3658 = vadd.f32 0.0, %v3657
        %v3659 = vpop.f32.mrb[0].mxu0
        %v3660 = vpop.f32.mrb[0].mxu0
        %v3661 = vadd.f32 0.0, %v3660
        %v3662 = vpop.f32.mrb[0].mxu0
        %3663 = vmatprep.mubr.bf16.mxu0 0
        %3664 = vmatmul.mubr.bf16.gmra.mrb[0].mxu0 %v3396
        %v3665 = vpop.f32.mrb[0].mxu0
        %v3666 = vadd.f32 0.0, %v3665
        %v3667 = vpop.f32.mrb[0].mxu0
        %v3668 = vpop.f32.mrb[0].mxu0
        %v3669 = vadd.f32 0.0, %v3668
        %v3670 = vpop.f32.mrb[0].mxu0
        %3671 = vmatprep.mubr.bf16.mxu0 0
        %3672 = vmatmul.mubr.bf16.gmra.mrb[0].mxu0 %v3399
        %v3673 = vpop.f32.mrb[0].mxu0
        %v3674 = vadd.f32 0.0, %v3673
        %v3675 = vpop.f32.mrb[0].mxu0
        %v3676 = vpop.f32.mrb[0].mxu0
        %v3677 = vadd.f32 0.0, %v3676
        %v3678 = vpop.f32.mrb[0].mxu0
        %3679 = vmatprep.mubr.bf16.mxu0 0
        %3680 = vmatmul.mubr.bf16.gmra.mrb[0].mxu0 %v3402
        %v3681 = vpop.f32.mrb[0].mxu0
        %v3682 = vadd.f32 0.0, %v3681
        %v3683 = vpop.f32.mrb[0].mxu0
        %v3684 = vpop.f32.mrb[0].mxu0
        %v3685 = vadd.f32 0.0, %v3684
        %v3686 = vpop.f32.mrb[0].mxu0
        %3687 = vmatprep.mubr.bf16.mxu0 0
        %3688 = vmatmul.mubr.bf16.gmra.mrb[0].mxu0 %v3405
        %v3689 = vpop.f32.mrb[0].mxu0
        %v3690 = vadd.f32 0.0, %v3689
        %v3691 = vpop.f32.mrb[0].mxu0
        %v3692 = vpop.f32.mrb[0].mxu0
        %v3693 = vadd.f32 0.0, %v3692
        %v3694 = vpop.f32.mrb[0].mxu0
        %3695 = vdwg.mxu0
        %v3696 = vadd.f32 %v2975, %v3442
        %v3697 = vadd.f32 %v2978, %v3445
        %v3698 = vadd.f32 %v2983, %v3450
        %v3699 = vadd.f32 %v2986, %v3453
        %v3700 = vadd.f32 %v2991, %v3458
        %v3701 = vadd.f32 %v2994, %v3461
        %v3702 = vadd.f32 %v2999, %v3466
        %v3703 = vadd.f32 %v3002, %v3469
        %v3704 = vadd.f32 %v3007, %v3474
        %v3705 = vadd.f32 %v3010, %v3477
        %v3706 = vadd.f32 %v3015, %v3482
        %v3707 = vadd.f32 %v3018, %v3485
        %v3708 = vadd.f32 %v3023, %v3490
        %v3709 = vadd.f32 %v3026, %v3493
        %v3710 = vadd.f32 %v3031, %v3498
        %v3711 = vadd.f32 %v3034, %v3501
        %v3712 = vadd.f32 %v3039, %v3506
        %v3713 = vadd.f32 %v3042, %v3509
        %v3714 = vadd.f32 %v3047, %v3514
        %v3715 = vadd.f32 %v3050, %v3517
        %v3716 = vadd.f32 %v3055, %v3522
        %v3717 = vadd.f32 %v3058, %v3525
        %v3718 = vadd.f32 %v3063, %v3530
        %v3719 = vadd.f32 %v3066, %v3533
        %v3720 = vadd.f32 %v3071, %v3538
        %v3721 = vadd.f32 %v3074, %v3541
        %v3722 = vadd.f32 %v3079, %v3546
        %v3723 = vadd.f32 %v3082, %v3549
        %v3724 = vadd.f32 %v3087, %v3554
        %v3725 = vadd.f32 %v3090, %v3557
        %v3726 = vadd.f32 %v3095, %v3562
        %v3727 = vadd.f32 %v3098, %v3565
        %v3728 = vadd.f32 %v3103, %v3570
        %v3729 = vadd.f32 %v3106, %v3573
        %v3730 = vadd.f32 %v3111, %v3578
        %v3731 = vadd.f32 %v3114, %v3581
        %v3732 = vadd.f32 %v3119, %v3586
        %v3733 = vadd.f32 %v3122, %v3589
        %v3734 = vadd.f32 %v3127, %v3594
        %v3735 = vadd.f32 %v3130, %v3597
        %v3736 = vadd.f32 %v3135, %v3602
        %v3737 = vadd.f32 %v3138, %v3605
        %v3738 = vadd.f32 %v3143, %v3610
        %v3739 = vadd.f32 %v3146, %v3613
        %v3740 = vadd.f32 %v3151, %v3618
        %v3741 = vadd.f32 %v3154, %v3621
        %v3742 = vadd.f32 %v3159, %v3626
        %v3743 = vadd.f32 %v3162, %v3629
        %v3744 = vadd.f32 %v3167, %v3634
        %v3745 = vadd.f32 %v3170, %v3637
        %v3746 = vadd.f32 %v3175, %v3642
        %v3747 = vadd.f32 %v3178, %v3645
        %v3748 = vadd.f32 %v3183, %v3650
        %v3749 = vadd.f32 %v3186, %v3653
        %v3750 = vadd.f32 %v3191, %v3658
        %v3751 = vadd.f32 %v3194, %v3661
        %v3752 = vadd.f32 %v3199, %v3666
        %v3753 = vadd.f32 %v3202, %v3669
        %v3754 = vadd.f32 %v3207, %v3674
        %v3755 = vadd.f32 %v3210, %v3677
        %v3756 = vadd.f32 %v3215, %v3682
        %v3757 = vadd.f32 %v3218, %v3685
        %v3758 = vadd.f32 %v3223, %v3690
        %v3759 = vadd.f32 %v3226, %v3693
        %v3760 = vld [vmem:[%s4] sm:$0x1]
        %v3762 = vlaneseq
        %v3763 = vshrl.u32 %v3762, 7
        %v3764 = vsub.s32 0, %v3763
        %v3765 = vrot.slane %v3760, %v3764
        %v3767 = vadd.f32 %v3696, %v3765
        %v3768 = vadd.f32 %v3697, %v3765
        %v3769 = vadd.f32 %v3698, %v3765
        %v3770 = vadd.f32 %v3699, %v3765
        %v3771 = vadd.f32 %v3700, %v3765
        %v3772 = vadd.f32 %v3701, %v3765
        %v3773 = vadd.f32 %v3702, %v3765
        %v3774 = vadd.f32 %v3703, %v3765
        %v3775 = vadd.f32 %v3704, %v3765
        %v3776 = vadd.f32 %v3705, %v3765
        %v3777 = vadd.f32 %v3706, %v3765
        %v3778 = vadd.f32 %v3707, %v3765
        %v3779 = vadd.f32 %v3708, %v3765
        %v3780 = vadd.f32 %v3709, %v3765
        %v3781 = vadd.f32 %v3710, %v3765
        %v3782 = vadd.f32 %v3711, %v3765
        %v3783 = vadd.f32 %v3712, %v3765
        %v3784 = vadd.f32 %v3713, %v3765
        %v3785 = vadd.f32 %v3714, %v3765
        %v3786 = vadd.f32 %v3715, %v3765
        %v3787 = vadd.f32 %v3716, %v3765
        %v3788 = vadd.f32 %v3717, %v3765
        %v3789 = vadd.f32 %v3718, %v3765
        %v3790 = vadd.f32 %v3719, %v3765
        %v3791 = vadd.f32 %v3720, %v3765
        %v3792 = vadd.f32 %v3721, %v3765
        %v3793 = vadd.f32 %v3722, %v3765
        %v3794 = vadd.f32 %v3723, %v3765
        %v3795 = vadd.f32 %v3724, %v3765
        %v3796 = vadd.f32 %v3725, %v3765
        %v3797 = vadd.f32 %v3726, %v3765
        %v3798 = vadd.f32 %v3727, %v3765
        %v3799 = vadd.f32 %v3728, %v3765
        %v3800 = vadd.f32 %v3729, %v3765
        %v3801 = vadd.f32 %v3730, %v3765
        %v3802 = vadd.f32 %v3731, %v3765
        %v3803 = vadd.f32 %v3732, %v3765
        %v3804 = vadd.f32 %v3733, %v3765
        %v3805 = vadd.f32 %v3734, %v3765
        %v3806 = vadd.f32 %v3735, %v3765
        %v3807 = vadd.f32 %v3736, %v3765
        %v3808 = vadd.f32 %v3737, %v3765
        %v3809 = vadd.f32 %v3738, %v3765
        %v3810 = vadd.f32 %v3739, %v3765
        %v3811 = vadd.f32 %v3740, %v3765
        %v3812 = vadd.f32 %v3741, %v3765
        %v3813 = vadd.f32 %v3742, %v3765
        %v3814 = vadd.f32 %v3743, %v3765
        %v3815 = vadd.f32 %v3744, %v3765
        %v3816 = vadd.f32 %v3745, %v3765
        %v3817 = vadd.f32 %v3746, %v3765
        %v3818 = vadd.f32 %v3747, %v3765
        %v3819 = vadd.f32 %v3748, %v3765
        %v3820 = vadd.f32 %v3749, %v3765
        %v3821 = vadd.f32 %v3750, %v3765
        %v3822 = vadd.f32 %v3751, %v3765
        %v3823 = vadd.f32 %v3752, %v3765
        %v3824 = vadd.f32 %v3753, %v3765
        %v3825 = vadd.f32 %v3754, %v3765
        %v3826 = vadd.f32 %v3755, %v3765
        %v3827 = vadd.f32 %v3756, %v3765
        %v3828 = vadd.f32 %v3757, %v3765
        %v3829 = vadd.f32 %v3758, %v3765
        %v3830 = vadd.f32 %v3759, %v3765
        %v3831 = vmax.f32 %v3767, 0.0
        %v3832 = vmax.f32 %v3768, 0.0
        %v3833 = vmax.f32 %v3769, 0.0
        %v3834 = vmax.f32 %v3770, 0.0
        %v3835 = vmax.f32 %v3771, 0.0
        %v3836 = vmax.f32 %v3772, 0.0
        %v3837 = vmax.f32 %v3773, 0.0
        %v3838 = vmax.f32 %v3774, 0.0
        %v3839 = vmax.f32 %v3775, 0.0
        %v3840 = vmax.f32 %v3776, 0.0
        %v3841 = vmax.f32 %v3777, 0.0
        %v3842 = vmax.f32 %v3778, 0.0
        %v3843 = vmax.f32 %v3779, 0.0
        %v3844 = vmax.f32 %v3780, 0.0
        %v3845 = vmax.f32 %v3781, 0.0
        %v3846 = vmax.f32 %v3782, 0.0
        %v3847 = vmax.f32 %v3783, 0.0
        %v3848 = vmax.f32 %v3784, 0.0
        %v3849 = vmax.f32 %v3785, 0.0
        %v3850 = vmax.f32 %v3786, 0.0
        %v3851 = vmax.f32 %v3787, 0.0
        %v3852 = vmax.f32 %v3788, 0.0
        %v3853 = vmax.f32 %v3789, 0.0
        %v3854 = vmax.f32 %v3790, 0.0
        %v3855 = vmax.f32 %v3791, 0.0
        %v3856 = vmax.f32 %v3792, 0.0
        %v3857 = vmax.f32 %v3793, 0.0
        %v3858 = vmax.f32 %v3794, 0.0
        %v3859 = vmax.f32 %v3795, 0.0
        %v3860 = vmax.f32 %v3796, 0.0
        %v3861 = vmax.f32 %v3797, 0.0
        %v3862 = vmax.f32 %v3798, 0.0
        %v3863 = vmax.f32 %v3799, 0.0
        %v3864 = vmax.f32 %v3800, 0.0
        %v3865 = vmax.f32 %v3801, 0.0
        %v3866 = vmax.f32 %v3802, 0.0
        %v3867 = vmax.f32 %v3803, 0.0
        %v3868 = vmax.f32 %v3804, 0.0
        %v3869 = vmax.f32 %v3805, 0.0
        %v3870 = vmax.f32 %v3806, 0.0
        %v3871 = vmax.f32 %v3807, 0.0
        %v3872 = vmax.f32 %v3808, 0.0
        %v3873 = vmax.f32 %v3809, 0.0
        %v3874 = vmax.f32 %v3810, 0.0
        %v3875 = vmax.f32 %v3811, 0.0
        %v3876 = vmax.f32 %v3812, 0.0
        %v3877 = vmax.f32 %v3813, 0.0
        %v3878 = vmax.f32 %v3814, 0.0
        %v3879 = vmax.f32 %v3815, 0.0
        %v3880 = vmax.f32 %v3816, 0.0
        %v3881 = vmax.f32 %v3817, 0.0
        %v3882 = vmax.f32 %v3818, 0.0
        %v3883 = vmax.f32 %v3819, 0.0
        %v3884 = vmax.f32 %v3820, 0.0
        %v3885 = vmax.f32 %v3821, 0.0
        %v3886 = vmax.f32 %v3822, 0.0
        %v3887 = vmax.f32 %v3823, 0.0
        %v3888 = vmax.f32 %v3824, 0.0
        %v3889 = vmax.f32 %v3825, 0.0
        %v3890 = vmax.f32 %v3826, 0.0
        %v3891 = vmax.f32 %v3827, 0.0
        %v3892 = vmax.f32 %v3828, 0.0
        %v3893 = vmax.f32 %v3829, 0.0
        %v3894 = vmax.f32 %v3830, 0.0
        %v3895 = vpack.c.bf16 %v3832, %v3831
        %v3896 = vpack.c.bf16 %v3834, %v3833
        %v3897 = vpack.c.bf16 %v3836, %v3835
        %v3898 = vpack.c.bf16 %v3838, %v3837
        %v3899 = vpack.c.bf16 %v3840, %v3839
        %v3900 = vpack.c.bf16 %v3842, %v3841
        %v3901 = vpack.c.bf16 %v3844, %v3843
        %v3902 = vpack.c.bf16 %v3846, %v3845
        %v3903 = vpack.c.bf16 %v3848, %v3847
        %v3904 = vpack.c.bf16 %v3850, %v3849
        %v3905 = vpack.c.bf16 %v3852, %v3851
        %v3906 = vpack.c.bf16 %v3854, %v3853
        %v3907 = vpack.c.bf16 %v3856, %v3855
        %v3908 = vpack.c.bf16 %v3858, %v3857
        %v3909 = vpack.c.bf16 %v3860, %v3859
        %v3910 = vpack.c.bf16 %v3862, %v3861
        %v3911 = vpack.c.bf16 %v3864, %v3863
        %v3912 = vpack.c.bf16 %v3866, %v3865
        %v3913 = vpack.c.bf16 %v3868, %v3867
        %v3914 = vpack.c.bf16 %v3870, %v3869
        %v3915 = vpack.c.bf16 %v3872, %v3871
        %v3916 = vpack.c.bf16 %v3874, %v3873
        %v3917 = vpack.c.bf16 %v3876, %v3875
        %v3918 = vpack.c.bf16 %v3878, %v3877
        %v3919 = vpack.c.bf16 %v3880, %v3879
        %v3920 = vpack.c.bf16 %v3882, %v3881
        %v3921 = vpack.c.bf16 %v3884, %v3883
        %v3922 = vpack.c.bf16 %v3886, %v3885
        %v3923 = vpack.c.bf16 %v3888, %v3887
        %v3924 = vpack.c.bf16 %v3890, %v3889
        %v3925 = vpack.c.bf16 %v3892, %v3891
        %v3926 = vpack.c.bf16 %v3894, %v3893
        %v3927 = vld [vmem:[%s5] sm:$0xf]
        %v3928 = vld [vmem:[%s5 + $0x4] sm:$0xf]
        %v3929 = vld [vmem:[%s5 + $0x8] sm:$0xf]
        %v3930 = vld [vmem:[%s5 + $0xc] sm:$0xf]
        %v3931 = vld [vmem:[%s6] sm:$0x1]
        %v3933 = vlaneseq
        %v3934 = vshrl.u32 %v3933, 7
        %v3935 = vsub.s32 0, %v3934
        %v3936 = vrot.slane %v3931, %v3935
        %v3942 = vunpack.c.l.b16 %v3927
        %v3943 = vunpack.c.l.b16 %v3928
        %v3944 = vunpack.c.l.b16 %v3929
        %v3945 = vunpack.c.l.b16 %v3930
        %v3946 = vpack.c.b16 %v3943, %v3942
        %v3947 = vpack.c.b16 %v3945, %v3944
        %v3951 = vsel %vm1583, %v3895, 0
        %v3954 = vsel %vm1583, %v3896, 0
        %v3957 = vsel %vm1583, %v3897, 0
        %v3960 = vsel %vm1583, %v3898, 0
        %v3963 = vsel %vm1583, %v3899, 0
        %v3966 = vsel %vm1583, %v3900, 0
        %v3969 = vsel %vm1583, %v3901, 0
        %v3972 = vsel %vm1583, %v3902, 0
        %v3975 = vsel %vm1583, %v3903, 0
        %v3978 = vsel %vm1583, %v3904, 0
        %v3981 = vsel %vm1583, %v3905, 0
        %v3984 = vsel %vm1583, %v3906, 0
        %v3987 = vsel %vm1583, %v3907, 0
        %v3990 = vsel %vm1583, %v3908, 0
        %v3993 = vsel %vm1583, %v3909, 0
        %v3996 = vsel %vm1583, %v3910, 0
        %v3999 = vsel %vm1583, %v3911, 0
        %v4002 = vsel %vm1583, %v3912, 0
        %v4005 = vsel %vm1583, %v3913, 0
        %v4008 = vsel %vm1583, %v3914, 0
        %v4011 = vsel %vm1583, %v3915, 0
        %v4014 = vsel %vm1583, %v3916, 0
        %v4017 = vsel %vm1583, %v3917, 0
        %v4020 = vsel %vm1583, %v3918, 0
        %v4023 = vsel %vm1583, %v3919, 0
        %v4026 = vsel %vm1583, %v3920, 0
        %v4029 = vsel %vm1583, %v3921, 0
        %v4032 = vsel %vm1583, %v3922, 0
        %v4035 = vsel %vm1583, %v3923, 0
        %v4038 = vsel %vm1583, %v3924, 0
        %v4041 = vsel %vm1583, %v3925, 0
        %v4044 = vsel %vm1583, %v3926, 0
        %4046 = vmatprep.subr.bf16.mxu0 0
        %4047 = vmatpush1.bf16.msra.mxu0 %v3946
        %4048 = vmatprep.subr.bf16.mxu0 0
        %4049 = vmatpush1.bf16.msra.mxu0 %v3947
        %4050 = vmatprep.subr.bf16.mxu0 0
        %4051 = vmatpush1.bf16.msra.mxu0 0
        %4052 = vmatprep.subr.bf16.mxu0 0
        %4053 = vmatpush1.bf16.msra.mxu0 0
        %4054 = vmatprep.subr.bf16.mxu0 0
        %4055 = vmatpush1.bf16.msra.mxu0 0
        %4056 = vmatprep.subr.bf16.mxu0 0
        %4057 = vmatpush1.bf16.msra.mxu0 0
        %4058 = vmatprep.subr.bf16.mxu0 0
        %4059 = vmatpush1.bf16.msra.mxu0 0
        %4060 = vmatprep.subr.bf16.mxu0 0
        %4061 = vmatpush1.bf16.msra.mxu0 0
        %4062 = vmatprep.subr.bf16.mxu0 0
        %4063 = vmatpush1.bf16.msra.mxu0 0
        %4064 = vmatprep.subr.bf16.mxu0 0
        %4065 = vmatpush1.bf16.msra.mxu0 0
        %4066 = vmatprep.subr.bf16.mxu0 0
        %4067 = vmatpush1.bf16.msra.mxu0 0
        %4068 = vmatprep.subr.bf16.mxu0 0
        %4069 = vmatpush1.bf16.msra.mxu0 0
        %4070 = vmatprep.subr.bf16.mxu0 0
        %4071 = vmatpush1.bf16.msra.mxu0 0
        %4072 = vmatprep.subr.bf16.mxu0 0
        %4073 = vmatpush1.bf16.msra.mxu0 0
        %4074 = vmatprep.subr.bf16.mxu0 0
        %4075 = vmatpush1.bf16.msra.mxu0 0
        %4076 = vmatprep.subr.bf16.mxu0 0
        %4077 = vmatpush1.bf16.msra.mxu0 0
        %4078 = vmatprep.mubr.bf16.mxu0 0
        %4079 = vmatmul.mubr.bf16.gmra.mrb[0].mxu0 %v3951
        %v4080 = vpop.f32.mrb[0].mxu0
        %v4081 = vadd.f32 %v3936, %v4080
        %v4082 = vpop.f32.mrb[0].mxu0
        %v4083 = vpop.f32.mrb[0].mxu0
        %v4084 = vadd.f32 %v3936, %v4083
        %v4085 = vpop.f32.mrb[0].mxu0
        %4086 = vmatprep.mubr.bf16.mxu0 0
        %4087 = vmatmul.mubr.bf16.gmra.mrb[0].mxu0 %v3954
        %v4088 = vpop.f32.mrb[0].mxu0
        %v4089 = vadd.f32 %v3936, %v4088
        %v4090 = vpop.f32.mrb[0].mxu0
        %v4091 = vpop.f32.mrb[0].mxu0
        %v4092 = vadd.f32 %v3936, %v4091
        %v4093 = vpop.f32.mrb[0].mxu0
        %4094 = vmatprep.mubr.bf16.mxu0 0
        %4095 = vmatmul.mubr.bf16.gmra.mrb[0].mxu0 %v3957
        %v4096 = vpop.f32.mrb[0].mxu0
        %v4097 = vadd.f32 %v3936, %v4096
        %v4098 = vpop.f32.mrb[0].mxu0
        %v4099 = vpop.f32.mrb[0].mxu0
        %v4100 = vadd.f32 %v3936, %v4099
        %v4101 = vpop.f32.mrb[0].mxu0
        %4102 = vmatprep.mubr.bf16.mxu0 0
        %4103 = vmatmul.mubr.bf16.gmra.mrb[0].mxu0 %v3960
        %v4104 = vpop.f32.mrb[0].mxu0
        %v4105 = vadd.f32 %v3936, %v4104
        %v4106 = vpop.f32.mrb[0].mxu0
        %v4107 = vpop.f32.mrb[0].mxu0
        %v4108 = vadd.f32 %v3936, %v4107
        %v4109 = vpop.f32.mrb[0].mxu0
        %4110 = vmatprep.mubr.bf16.mxu0 0
        %4111 = vmatmul.mubr.bf16.gmra.mrb[0].mxu0 %v3963
        %v4112 = vpop.f32.mrb[0].mxu0
        %v4113 = vadd.f32 %v3936, %v4112
        %v4114 = vpop.f32.mrb[0].mxu0
        %v4115 = vpop.f32.mrb[0].mxu0
        %v4116 = vadd.f32 %v3936, %v4115
        %v4117 = vpop.f32.mrb[0].mxu0
        %4118 = vmatprep.mubr.bf16.mxu0 0
        %4119 = vmatmul.mubr.bf16.gmra.mrb[0].mxu0 %v3966
        %v4120 = vpop.f32.mrb[0].mxu0
        %v4121 = vadd.f32 %v3936, %v4120
        %v4122 = vpop.f32.mrb[0].mxu0
        %v4123 = vpop.f32.mrb[0].mxu0
        %v4124 = vadd.f32 %v3936, %v4123
        %v4125 = vpop.f32.mrb[0].mxu0
        %4126 = vmatprep.mubr.bf16.mxu0 0
        %4127 = vmatmul.mubr.bf16.gmra.mrb[0].mxu0 %v3969
        %v4128 = vpop.f32.mrb[0].mxu0
        %v4129 = vadd.f32 %v3936, %v4128
        %v4130 = vpop.f32.mrb[0].mxu0
        %v4131 = vpop.f32.mrb[0].mxu0
        %v4132 = vadd.f32 %v3936, %v4131
        %v4133 = vpop.f32.mrb[0].mxu0
        %4134 = vmatprep.mubr.bf16.mxu0 0
        %4135 = vmatmul.mubr.bf16.gmra.mrb[0].mxu0 %v3972
        %v4136 = vpop.f32.mrb[0].mxu0
        %v4137 = vadd.f32 %v3936, %v4136
        %v4138 = vpop.f32.mrb[0].mxu0
        %v4139 = vpop.f32.mrb[0].mxu0
        %v4140 = vadd.f32 %v3936, %v4139
        %v4141 = vpop.f32.mrb[0].mxu0
        %4142 = vmatprep.mubr.bf16.mxu0 0
        %4143 = vmatmul.mubr.bf16.gmra.mrb[0].mxu0 %v3975
        %v4144 = vpop.f32.mrb[0].mxu0
        %v4145 = vadd.f32 %v3936, %v4144
        %v4146 = vpop.f32.mrb[0].mxu0
        %v4147 = vpop.f32.mrb[0].mxu0
        %v4148 = vadd.f32 %v3936, %v4147
        %v4149 = vpop.f32.mrb[0].mxu0
        %4150 = vmatprep.mubr.bf16.mxu0 0
        %4151 = vmatmul.mubr.bf16.gmra.mrb[0].mxu0 %v3978
        %v4152 = vpop.f32.mrb[0].mxu0
        %v4153 = vadd.f32 %v3936, %v4152
        %v4154 = vpop.f32.mrb[0].mxu0
        %v4155 = vpop.f32.mrb[0].mxu0
        %v4156 = vadd.f32 %v3936, %v4155
        %v4157 = vpop.f32.mrb[0].mxu0
        %4158 = vmatprep.mubr.bf16.mxu0 0
        %4159 = vmatmul.mubr.bf16.gmra.mrb[0].mxu0 %v3981
        %v4160 = vpop.f32.mrb[0].mxu0
        %v4161 = vadd.f32 %v3936, %v4160
        %v4162 = vpop.f32.mrb[0].mxu0
        %v4163 = vpop.f32.mrb[0].mxu0
        %v4164 = vadd.f32 %v3936, %v4163
        %v4165 = vpop.f32.mrb[0].mxu0
        %4166 = vmatprep.mubr.bf16.mxu0 0
        %4167 = vmatmul.mubr.bf16.gmra.mrb[0].mxu0 %v3984
        %v4168 = vpop.f32.mrb[0].mxu0
        %v4169 = vadd.f32 %v3936, %v4168
        %v4170 = vpop.f32.mrb[0].mxu0
        %v4171 = vpop.f32.mrb[0].mxu0
        %v4172 = vadd.f32 %v3936, %v4171
        %v4173 = vpop.f32.mrb[0].mxu0
        %4174 = vmatprep.mubr.bf16.mxu0 0
        %4175 = vmatmul.mubr.bf16.gmra.mrb[0].mxu0 %v3987
        %v4176 = vpop.f32.mrb[0].mxu0
        %v4177 = vadd.f32 %v3936, %v4176
        %v4178 = vpop.f32.mrb[0].mxu0
        %v4179 = vpop.f32.mrb[0].mxu0
        %v4180 = vadd.f32 %v3936, %v4179
        %v4181 = vpop.f32.mrb[0].mxu0
        %4182 = vmatprep.mubr.bf16.mxu0 0
        %4183 = vmatmul.mubr.bf16.gmra.mrb[0].mxu0 %v3990
        %v4184 = vpop.f32.mrb[0].mxu0
        %v4185 = vadd.f32 %v3936, %v4184
        %v4186 = vpop.f32.mrb[0].mxu0
        %v4187 = vpop.f32.mrb[0].mxu0
        %v4188 = vadd.f32 %v3936, %v4187
        %v4189 = vpop.f32.mrb[0].mxu0
        %4190 = vmatprep.mubr.bf16.mxu0 0
        %4191 = vmatmul.mubr.bf16.gmra.mrb[0].mxu0 %v3993
        %v4192 = vpop.f32.mrb[0].mxu0
        %v4193 = vadd.f32 %v3936, %v4192
        %v4194 = vpop.f32.mrb[0].mxu0
        %v4195 = vpop.f32.mrb[0].mxu0
        %v4196 = vadd.f32 %v3936, %v4195
        %v4197 = vpop.f32.mrb[0].mxu0
        %4198 = vmatprep.mubr.bf16.mxu0 0
        %4199 = vmatmul.mubr.bf16.gmra.mrb[0].mxu0 %v3996
        %v4200 = vpop.f32.mrb[0].mxu0
        %v4201 = vadd.f32 %v3936, %v4200
        %v4202 = vpop.f32.mrb[0].mxu0
        %v4203 = vpop.f32.mrb[0].mxu0
        %v4204 = vadd.f32 %v3936, %v4203
        %v4205 = vpop.f32.mrb[0].mxu0
        %4206 = vmatprep.mubr.bf16.mxu0 0
        %4207 = vmatmul.mubr.bf16.gmra.mrb[0].mxu0 %v3999
        %v4208 = vpop.f32.mrb[0].mxu0
        %v4209 = vadd.f32 %v3936, %v4208
        %v4210 = vpop.f32.mrb[0].mxu0
        %v4211 = vpop.f32.mrb[0].mxu0
        %v4212 = vadd.f32 %v3936, %v4211
        %v4213 = vpop.f32.mrb[0].mxu0
        %4214 = vmatprep.mubr.bf16.mxu0 0
        %4215 = vmatmul.mubr.bf16.gmra.mrb[0].mxu0 %v4002
        %v4216 = vpop.f32.mrb[0].mxu0
        %v4217 = vadd.f32 %v3936, %v4216
        %v4218 = vpop.f32.mrb[0].mxu0
        %v4219 = vpop.f32.mrb[0].mxu0
        %v4220 = vadd.f32 %v3936, %v4219
        %v4221 = vpop.f32.mrb[0].mxu0
        %4222 = vmatprep.mubr.bf16.mxu0 0
        %4223 = vmatmul.mubr.bf16.gmra.mrb[0].mxu0 %v4005
        %v4224 = vpop.f32.mrb[0].mxu0
        %v4225 = vadd.f32 %v3936, %v4224
        %v4226 = vpop.f32.mrb[0].mxu0
        %v4227 = vpop.f32.mrb[0].mxu0
        %v4228 = vadd.f32 %v3936, %v4227
        %v4229 = vpop.f32.mrb[0].mxu0
        %4230 = vmatprep.mubr.bf16.mxu0 0
        %4231 = vmatmul.mubr.bf16.gmra.mrb[0].mxu0 %v4008
        %v4232 = vpop.f32.mrb[0].mxu0
        %v4233 = vadd.f32 %v3936, %v4232
        %v4234 = vpop.f32.mrb[0].mxu0
        %v4235 = vpop.f32.mrb[0].mxu0
        %v4236 = vadd.f32 %v3936, %v4235
        %v4237 = vpop.f32.mrb[0].mxu0
        %4238 = vmatprep.mubr.bf16.mxu0 0
        %4239 = vmatmul.mubr.bf16.gmra.mrb[0].mxu0 %v4011
        %v4240 = vpop.f32.mrb[0].mxu0
        %v4241 = vadd.f32 %v3936, %v4240
        %v4242 = vpop.f32.mrb[0].mxu0
        %v4243 = vpop.f32.mrb[0].mxu0
        %v4244 = vadd.f32 %v3936, %v4243
        %v4245 = vpop.f32.mrb[0].mxu0
        %4246 = vmatprep.mubr.bf16.mxu0 0
        %4247 = vmatmul.mubr.bf16.gmra.mrb[0].mxu0 %v4014
        %v4248 = vpop.f32.mrb[0].mxu0
        %v4249 = vadd.f32 %v3936, %v4248
        %v4250 = vpop.f32.mrb[0].mxu0
        %v4251 = vpop.f32.mrb[0].mxu0
        %v4252 = vadd.f32 %v3936, %v4251
        %v4253 = vpop.f32.mrb[0].mxu0
        %4254 = vmatprep.mubr.bf16.mxu0 0
        %4255 = vmatmul.mubr.bf16.gmra.mrb[0].mxu0 %v4017
        %v4256 = vpop.f32.mrb[0].mxu0
        %v4257 = vadd.f32 %v3936, %v4256
        %v4258 = vpop.f32.mrb[0].mxu0
        %v4259 = vpop.f32.mrb[0].mxu0
        %v4260 = vadd.f32 %v3936, %v4259
        %v4261 = vpop.f32.mrb[0].mxu0
        %4262 = vmatprep.mubr.bf16.mxu0 0
        %4263 = vmatmul.mubr.bf16.gmra.mrb[0].mxu0 %v4020
        %v4264 = vpop.f32.mrb[0].mxu0
        %v4265 = vadd.f32 %v3936, %v4264
        %v4266 = vpop.f32.mrb[0].mxu0
        %v4267 = vpop.f32.mrb[0].mxu0
        %v4268 = vadd.f32 %v3936, %v4267
        %v4269 = vpop.f32.mrb[0].mxu0
        %4270 = vmatprep.mubr.bf16.mxu0 0
        %4271 = vmatmul.mubr.bf16.gmra.mrb[0].mxu0 %v4023
        %v4272 = vpop.f32.mrb[0].mxu0
        %v4273 = vadd.f32 %v3936, %v4272
        %v4274 = vpop.f32.mrb[0].mxu0
        %v4275 = vpop.f32.mrb[0].mxu0
        %v4276 = vadd.f32 %v3936, %v4275
        %v4277 = vpop.f32.mrb[0].mxu0
        %4278 = vmatprep.mubr.bf16.mxu0 0
        %4279 = vmatmul.mubr.bf16.gmra.mrb[0].mxu0 %v4026
        %v4280 = vpop.f32.mrb[0].mxu0
        %v4281 = vadd.f32 %v3936, %v4280
        %v4282 = vpop.f32.mrb[0].mxu0
        %v4283 = vpop.f32.mrb[0].mxu0
        %v4284 = vadd.f32 %v3936, %v4283
        %v4285 = vpop.f32.mrb[0].mxu0
        %4286 = vmatprep.mubr.bf16.mxu0 0
        %4287 = vmatmul.mubr.bf16.gmra.mrb[0].mxu0 %v4029
        %v4288 = vpop.f32.mrb[0].mxu0
        %v4289 = vadd.f32 %v3936, %v4288
        %v4290 = vpop.f32.mrb[0].mxu0
        %v4291 = vpop.f32.mrb[0].mxu0
        %v4292 = vadd.f32 %v3936, %v4291
        %v4293 = vpop.f32.mrb[0].mxu0
        %4294 = vmatprep.mubr.bf16.mxu0 0
        %4295 = vmatmul.mubr.bf16.gmra.mrb[0].mxu0 %v4032
        %v4296 = vpop.f32.mrb[0].mxu0
        %v4297 = vadd.f32 %v3936, %v4296
        %v4298 = vpop.f32.mrb[0].mxu0
        %v4299 = vpop.f32.mrb[0].mxu0
        %v4300 = vadd.f32 %v3936, %v4299
        %v4301 = vpop.f32.mrb[0].mxu0
        %4302 = vmatprep.mubr.bf16.mxu0 0
        %4303 = vmatmul.mubr.bf16.gmra.mrb[0].mxu0 %v4035
        %v4304 = vpop.f32.mrb[0].mxu0
        %v4305 = vadd.f32 %v3936, %v4304
        %v4306 = vpop.f32.mrb[0].mxu0
        %v4307 = vpop.f32.mrb[0].mxu0
        %v4308 = vadd.f32 %v3936, %v4307
        %v4309 = vpop.f32.mrb[0].mxu0
        %4310 = vmatprep.mubr.bf16.mxu0 0
        %4311 = vmatmul.mubr.bf16.gmra.mrb[0].mxu0 %v4038
        %v4312 = vpop.f32.mrb[0].mxu0
        %v4313 = vadd.f32 %v3936, %v4312
        %v4314 = vpop.f32.mrb[0].mxu0
        %v4315 = vpop.f32.mrb[0].mxu0
        %v4316 = vadd.f32 %v3936, %v4315
        %v4317 = vpop.f32.mrb[0].mxu0
        %4318 = vmatprep.mubr.bf16.mxu0 0
        %4319 = vmatmul.mubr.bf16.gmra.mrb[0].mxu0 %v4041
        %v4320 = vpop.f32.mrb[0].mxu0
        %v4321 = vadd.f32 %v3936, %v4320
        %v4322 = vpop.f32.mrb[0].mxu0
        %v4323 = vpop.f32.mrb[0].mxu0
        %v4324 = vadd.f32 %v3936, %v4323
        %v4325 = vpop.f32.mrb[0].mxu0
        %4326 = vmatprep.mubr.bf16.mxu0 0
        %4327 = vmatmul.mubr.bf16.gmra.mrb[0].mxu0 %v4044
        %v4328 = vpop.f32.mrb[0].mxu0
        %v4329 = vadd.f32 %v3936, %v4328
        %v4330 = vpop.f32.mrb[0].mxu0
        %v4331 = vpop.f32.mrb[0].mxu0
        %v4332 = vadd.f32 %v3936, %v4331
        %v4333 = vpop.f32.mrb[0].mxu0
        %4334 = vdwg.mxu0
        %v4335 = vunpack.c.l.bf16 %v431
        %v4336 = vunpack.c.l.bf16 %v432
        %v4337 = vunpack.c.l.bf16 %v433
        %v4338 = vunpack.c.l.bf16 %v434
        %v4339 = vunpack.c.l.bf16 %v435
        %v4340 = vunpack.c.l.bf16 %v436
        %v4341 = vunpack.c.l.bf16 %v437
        %v4342 = vunpack.c.l.bf16 %v438
        %v4343 = vunpack.c.l.bf16 %v439
        %v4344 = vunpack.c.l.bf16 %v440
        %v4345 = vunpack.c.l.bf16 %v441
        %v4346 = vunpack.c.l.bf16 %v442
        %v4347 = vunpack.c.l.bf16 %v443
        %v4348 = vunpack.c.l.bf16 %v444
        %v4349 = vunpack.c.l.bf16 %v445
        %v4350 = vunpack.c.l.bf16 %v446
        %v4351 = vunpack.c.l.bf16 %v447
        %v4352 = vunpack.c.l.bf16 %v448
        %v4353 = vunpack.c.l.bf16 %v449
        %v4354 = vunpack.c.l.bf16 %v450
        %v4355 = vunpack.c.l.bf16 %v451
        %v4356 = vunpack.c.l.bf16 %v452
        %v4357 = vunpack.c.l.bf16 %v453
        %v4358 = vunpack.c.l.bf16 %v454
        %v4359 = vunpack.c.l.bf16 %v455
        %v4360 = vunpack.c.l.bf16 %v456
        %v4361 = vunpack.c.l.bf16 %v457
        %v4362 = vunpack.c.l.bf16 %v458
        %v4363 = vunpack.c.l.bf16 %v459
        %v4364 = vunpack.c.l.bf16 %v460
        %v4365 = vunpack.c.l.bf16 %v461
        %v4366 = vunpack.c.l.bf16 %v462
        %v4367 = vunpack.c.l.bf16 %v463
        %v4368 = vunpack.c.l.bf16 %v464
        %v4369 = vunpack.c.l.bf16 %v465
        %v4370 = vunpack.c.l.bf16 %v466
        %v4371 = vunpack.c.l.bf16 %v467
        %v4372 = vunpack.c.l.bf16 %v468
        %v4373 = vunpack.c.l.bf16 %v469
        %v4374 = vunpack.c.l.bf16 %v470
        %v4375 = vunpack.c.l.bf16 %v471
        %v4376 = vunpack.c.l.bf16 %v472
        %v4377 = vunpack.c.l.bf16 %v473
        %v4378 = vunpack.c.l.bf16 %v474
        %v4379 = vunpack.c.l.bf16 %v475
        %v4380 = vunpack.c.l.bf16 %v476
        %v4381 = vunpack.c.l.bf16 %v477
        %v4382 = vunpack.c.l.bf16 %v478
        %v4383 = vunpack.c.l.bf16 %v479
        %v4384 = vunpack.c.l.bf16 %v480
        %v4385 = vunpack.c.l.bf16 %v481
        %v4386 = vunpack.c.l.bf16 %v482
        %v4387 = vunpack.c.l.bf16 %v483
        %v4388 = vunpack.c.l.bf16 %v484
        %v4389 = vunpack.c.l.bf16 %v485
        %v4390 = vunpack.c.l.bf16 %v486
        %v4391 = vunpack.c.l.bf16 %v487
        %v4392 = vunpack.c.l.bf16 %v488
        %v4393 = vunpack.c.l.bf16 %v489
        %v4394 = vunpack.c.l.bf16 %v490
        %v4395 = vunpack.c.l.bf16 %v491
        %v4396 = vunpack.c.l.bf16 %v492
        %v4397 = vunpack.c.l.bf16 %v493
        %v4398 = vunpack.c.l.bf16 %v494
        %v4399 = vadd.f32 %v4081, %v4335
        %v4400 = vadd.f32 %v4084, %v4336
        %v4401 = vadd.f32 %v4089, %v4337
        %v4402 = vadd.f32 %v4092, %v4338
        %v4403 = vadd.f32 %v4097, %v4339
        %v4404 = vadd.f32 %v4100, %v4340
        %v4405 = vadd.f32 %v4105, %v4341
        %v4406 = vadd.f32 %v4108, %v4342
        %v4407 = vadd.f32 %v4113, %v4343
        %v4408 = vadd.f32 %v4116, %v4344
        %v4409 = vadd.f32 %v4121, %v4345
        %v4410 = vadd.f32 %v4124, %v4346
        %v4411 = vadd.f32 %v4129, %v4347
        %v4412 = vadd.f32 %v4132, %v4348
        %v4413 = vadd.f32 %v4137, %v4349
        %v4414 = vadd.f32 %v4140, %v4350
        %v4415 = vadd.f32 %v4145, %v4351
        %v4416 = vadd.f32 %v4148, %v4352
        %v4417 = vadd.f32 %v4153, %v4353
        %v4418 = vadd.f32 %v4156, %v4354
        %v4419 = vadd.f32 %v4161, %v4355
        %v4420 = vadd.f32 %v4164, %v4356
        %v4421 = vadd.f32 %v4169, %v4357
        %v4422 = vadd.f32 %v4172, %v4358
        %v4423 = vadd.f32 %v4177, %v4359
        %v4424 = vadd.f32 %v4180, %v4360
        %v4425 = vadd.f32 %v4185, %v4361
        %v4426 = vadd.f32 %v4188, %v4362
        %v4427 = vadd.f32 %v4193, %v4363
        %v4428 = vadd.f32 %v4196, %v4364
        %v4429 = vadd.f32 %v4201, %v4365
        %v4430 = vadd.f32 %v4204, %v4366
        %v4431 = vadd.f32 %v4209, %v4367
        %v4432 = vadd.f32 %v4212, %v4368
        %v4433 = vadd.f32 %v4217, %v4369
        %v4434 = vadd.f32 %v4220, %v4370
        %v4435 = vadd.f32 %v4225, %v4371
        %v4436 = vadd.f32 %v4228, %v4372
        %v4437 = vadd.f32 %v4233, %v4373
        %v4438 = vadd.f32 %v4236, %v4374
        %v4439 = vadd.f32 %v4241, %v4375
        %v4440 = vadd.f32 %v4244, %v4376
        %v4441 = vadd.f32 %v4249, %v4377
        %v4442 = vadd.f32 %v4252, %v4378
        %v4443 = vadd.f32 %v4257, %v4379
        %v4444 = vadd.f32 %v4260, %v4380
        %v4445 = vadd.f32 %v4265, %v4381
        %v4446 = vadd.f32 %v4268, %v4382
        %v4447 = vadd.f32 %v4273, %v4383
        %v4448 = vadd.f32 %v4276, %v4384
        %v4449 = vadd.f32 %v4281, %v4385
        %v4450 = vadd.f32 %v4284, %v4386
        %v4451 = vadd.f32 %v4289, %v4387
        %v4452 = vadd.f32 %v4292, %v4388
        %v4453 = vadd.f32 %v4297, %v4389
        %v4454 = vadd.f32 %v4300, %v4390
        %v4455 = vadd.f32 %v4305, %v4391
        %v4456 = vadd.f32 %v4308, %v4392
        %v4457 = vadd.f32 %v4313, %v4393
        %v4458 = vadd.f32 %v4316, %v4394
        %v4459 = vadd.f32 %v4321, %v4395
        %v4460 = vadd.f32 %v4324, %v4396
        %v4461 = vadd.f32 %v4329, %v4397
        %v4462 = vadd.f32 %v4332, %v4398
        %v4463 = vmax.f32 %v4399, 0.0
        %v4464 = vmax.f32 %v4400, 0.0
        %v4465 = vmax.f32 %v4401, 0.0
        %v4466 = vmax.f32 %v4402, 0.0
        %v4467 = vmax.f32 %v4403, 0.0
        %v4468 = vmax.f32 %v4404, 0.0
        %v4469 = vmax.f32 %v4405, 0.0
        %v4470 = vmax.f32 %v4406, 0.0
        %v4471 = vmax.f32 %v4407, 0.0
        %v4472 = vmax.f32 %v4408, 0.0
        %v4473 = vmax.f32 %v4409, 0.0
        %v4474 = vmax.f32 %v4410, 0.0
        %v4475 = vmax.f32 %v4411, 0.0
        %v4476 = vmax.f32 %v4412, 0.0
        %v4477 = vmax.f32 %v4413, 0.0
        %v4478 = vmax.f32 %v4414, 0.0
        %v4479 = vmax.f32 %v4415, 0.0
        %v4480 = vmax.f32 %v4416, 0.0
        %v4481 = vmax.f32 %v4417, 0.0
        %v4482 = vmax.f32 %v4418, 0.0
        %v4483 = vmax.f32 %v4419, 0.0
        %v4484 = vmax.f32 %v4420, 0.0
        %v4485 = vmax.f32 %v4421, 0.0
        %v4486 = vmax.f32 %v4422, 0.0
        %v4487 = vmax.f32 %v4423, 0.0
        %v4488 = vmax.f32 %v4424, 0.0
        %v4489 = vmax.f32 %v4425, 0.0
        %v4490 = vmax.f32 %v4426, 0.0
        %v4491 = vmax.f32 %v4427, 0.0
        %v4492 = vmax.f32 %v4428, 0.0
        %v4493 = vmax.f32 %v4429, 0.0
        %v4494 = vmax.f32 %v4430, 0.0
        %v4495 = vmax.f32 %v4431, 0.0
        %v4496 = vmax.f32 %v4432, 0.0
        %v4497 = vmax.f32 %v4433, 0.0
        %v4498 = vmax.f32 %v4434, 0.0
        %v4499 = vmax.f32 %v4435, 0.0
        %v4500 = vmax.f32 %v4436, 0.0
        %v4501 = vmax.f32 %v4437, 0.0
        %v4502 = vmax.f32 %v4438, 0.0
        %v4503 = vmax.f32 %v4439, 0.0
        %v4504 = vmax.f32 %v4440, 0.0
        %v4505 = vmax.f32 %v4441, 0.0
        %v4506 = vmax.f32 %v4442, 0.0
        %v4507 = vmax.f32 %v4443, 0.0
        %v4508 = vmax.f32 %v4444, 0.0
        %v4509 = vmax.f32 %v4445, 0.0
        %v4510 = vmax.f32 %v4446, 0.0
        %v4511 = vmax.f32 %v4447, 0.0
        %v4512 = vmax.f32 %v4448, 0.0
        %v4513 = vmax.f32 %v4449, 0.0
        %v4514 = vmax.f32 %v4450, 0.0
        %v4515 = vmax.f32 %v4451, 0.0
        %v4516 = vmax.f32 %v4452, 0.0
        %v4517 = vmax.f32 %v4453, 0.0
        %v4518 = vmax.f32 %v4454, 0.0
        %v4519 = vmax.f32 %v4455, 0.0
        %v4520 = vmax.f32 %v4456, 0.0
        %v4521 = vmax.f32 %v4457, 0.0
        %v4522 = vmax.f32 %v4458, 0.0
        %v4523 = vmax.f32 %v4459, 0.0
        %v4524 = vmax.f32 %v4460, 0.0
        %v4525 = vmax.f32 %v4461, 0.0
        %v4526 = vmax.f32 %v4462, 0.0
        %v4527 = vpack.c.bf16 %v4464, %v4463
        %v4528 = vpack.c.bf16 %v4466, %v4465
        %v4529 = vpack.c.bf16 %v4468, %v4467
        %v4530 = vpack.c.bf16 %v4470, %v4469
        %v4531 = vpack.c.bf16 %v4472, %v4471
        %v4532 = vpack.c.bf16 %v4474, %v4473
        %v4533 = vpack.c.bf16 %v4476, %v4475
        %v4534 = vpack.c.bf16 %v4478, %v4477
        %v4535 = vpack.c.bf16 %v4480, %v4479
        %v4536 = vpack.c.bf16 %v4482, %v4481
        %v4537 = vpack.c.bf16 %v4484, %v4483
        %v4538 = vpack.c.bf16 %v4486, %v4485
        %v4539 = vpack.c.bf16 %v4488, %v4487
        %v4540 = vpack.c.bf16 %v4490, %v4489
        %v4541 = vpack.c.bf16 %v4492, %v4491
        %v4542 = vpack.c.bf16 %v4494, %v4493
        %v4543 = vpack.c.bf16 %v4496, %v4495
        %v4544 = vpack.c.bf16 %v4498, %v4497
        %v4545 = vpack.c.bf16 %v4500, %v4499
        %v4546 = vpack.c.bf16 %v4502, %v4501
        %v4547 = vpack.c.bf16 %v4504, %v4503
        %v4548 = vpack.c.bf16 %v4506, %v4505
        %v4549 = vpack.c.bf16 %v4508, %v4507
        %v4550 = vpack.c.bf16 %v4510, %v4509
        %v4551 = vpack.c.bf16 %v4512, %v4511
        %v4552 = vpack.c.bf16 %v4514, %v4513
        %v4553 = vpack.c.bf16 %v4516, %v4515
        %v4554 = vpack.c.bf16 %v4518, %v4517
        %v4555 = vpack.c.bf16 %v4520, %v4519
        %v4556 = vpack.c.bf16 %v4522, %v4521
        %v4557 = vpack.c.bf16 %v4524, %v4523
        %v4558 = vpack.c.bf16 %v4526, %v4525
        %v4591 = vunpack.c.l.b16 %v4527
        %v4592 = vunpack.c.h.b16 %v4527
        %v4593 = vunpack.c.l.b16 %v4528
        %v4594 = vunpack.c.h.b16 %v4528
        %v4595 = vunpack.c.l.b16 %v4529
        %v4596 = vunpack.c.h.b16 %v4529
        %v4597 = vunpack.c.l.b16 %v4530
        %v4598 = vunpack.c.h.b16 %v4530
        %v4599 = vunpack.c.l.b16 %v4531
        %v4600 = vunpack.c.h.b16 %v4531
        %v4601 = vunpack.c.l.b16 %v4532
        %v4602 = vunpack.c.h.b16 %v4532
        %v4603 = vunpack.c.l.b16 %v4533
        %v4604 = vunpack.c.h.b16 %v4533
        %v4605 = vunpack.c.l.b16 %v4534
        %v4606 = vunpack.c.h.b16 %v4534
        %v4607 = vunpack.c.l.b16 %v4535
        %v4608 = vunpack.c.h.b16 %v4535
        %v4609 = vunpack.c.l.b16 %v4536
        %v4610 = vunpack.c.h.b16 %v4536
        %v4611 = vunpack.c.l.b16 %v4537
        %v4612 = vunpack.c.h.b16 %v4537
        %v4613 = vunpack.c.l.b16 %v4538
        %v4614 = vunpack.c.h.b16 %v4538
        %v4615 = vunpack.c.l.b16 %v4539
        %v4616 = vunpack.c.h.b16 %v4539
        %v4617 = vunpack.c.l.b16 %v4540
        %v4618 = vunpack.c.h.b16 %v4540
        %v4619 = vunpack.c.l.b16 %v4541
        %v4620 = vunpack.c.h.b16 %v4541
        %v4621 = vunpack.c.l.b16 %v4542
        %v4622 = vunpack.c.h.b16 %v4542
        %v4623 = vunpack.c.l.b16 %v4543
        %v4624 = vunpack.c.h.b16 %v4543
        %v4625 = vunpack.c.l.b16 %v4544
        %v4626 = vunpack.c.h.b16 %v4544
        %v4627 = vunpack.c.l.b16 %v4545
        %v4628 = vunpack.c.h.b16 %v4545
        %v4629 = vunpack.c.l.b16 %v4546
        %v4630 = vunpack.c.h.b16 %v4546
        %v4631 = vunpack.c.l.b16 %v4547
        %v4632 = vunpack.c.h.b16 %v4547
        %v4633 = vunpack.c.l.b16 %v4548
        %v4634 = vunpack.c.h.b16 %v4548
        %v4635 = vunpack.c.l.b16 %v4549
        %v4636 = vunpack.c.h.b16 %v4549
        %v4637 = vunpack.c.l.b16 %v4550
        %v4638 = vunpack.c.h.b16 %v4550
        %v4639 = vunpack.c.l.b16 %v4551
        %v4640 = vunpack.c.h.b16 %v4551
        %v4641 = vunpack.c.l.b16 %v4552
        %v4642 = vunpack.c.h.b16 %v4552
        %v4643 = vunpack.c.l.b16 %v4553
        %v4644 = vunpack.c.h.b16 %v4553
        %v4645 = vunpack.c.l.b16 %v4554
        %v4646 = vunpack.c.h.b16 %v4554
        %v4647 = vunpack.c.l.b16 %v4555
        %v4648 = vunpack.c.h.b16 %v4555
        %v4649 = vunpack.c.l.b16 %v4556
        %v4650 = vunpack.c.h.b16 %v4556
        %v4651 = vunpack.c.l.b16 %v4557
        %v4652 = vunpack.c.h.b16 %v4557
        %v4653 = vunpack.c.l.b16 %v4558
        %v4654 = vunpack.c.h.b16 %v4558
        %v4655 = vpack.c.b16 %v4591, %v4591
        %v4656 = vpack.c.b16 %v4592, %v4592
        %v4657 = vpack.c.b16 %v4593, %v4593
        %v4658 = vpack.c.b16 %v4594, %v4594
        %v4659 = vpack.c.b16 %v4595, %v4595
        %v4660 = vpack.c.b16 %v4596, %v4596
        %v4661 = vpack.c.b16 %v4597, %v4597
        %v4662 = vpack.c.b16 %v4598, %v4598
        %v4663 = vpack.c.b16 %v4599, %v4599
        %v4664 = vpack.c.b16 %v4600, %v4600
        %v4665 = vpack.c.b16 %v4601, %v4601
        %v4666 = vpack.c.b16 %v4602, %v4602
        %v4667 = vpack.c.b16 %v4603, %v4603
        %v4668 = vpack.c.b16 %v4604, %v4604
        %v4669 = vpack.c.b16 %v4605, %v4605
        %v4670 = vpack.c.b16 %v4606, %v4606
        %v4671 = vpack.c.b16 %v4607, %v4607
        %v4672 = vpack.c.b16 %v4608, %v4608
        %v4673 = vpack.c.b16 %v4609, %v4609
        %v4674 = vpack.c.b16 %v4610, %v4610
        %v4675 = vpack.c.b16 %v4611, %v4611
        %v4676 = vpack.c.b16 %v4612, %v4612
        %v4677 = vpack.c.b16 %v4613, %v4613
        %v4678 = vpack.c.b16 %v4614, %v4614
        %v4679 = vpack.c.b16 %v4615, %v4615
        %v4680 = vpack.c.b16 %v4616, %v4616
        %v4681 = vpack.c.b16 %v4617, %v4617
        %v4682 = vpack.c.b16 %v4618, %v4618
        %v4683 = vpack.c.b16 %v4619, %v4619
        %v4684 = vpack.c.b16 %v4620, %v4620
        %v4685 = vpack.c.b16 %v4621, %v4621
        %v4686 = vpack.c.b16 %v4622, %v4622
        %v4687 = vpack.c.b16 %v4623, %v4623
        %v4688 = vpack.c.b16 %v4624, %v4624
        %v4689 = vpack.c.b16 %v4625, %v4625
        %v4690 = vpack.c.b16 %v4626, %v4626
        %v4691 = vpack.c.b16 %v4627, %v4627
        %v4692 = vpack.c.b16 %v4628, %v4628
        %v4693 = vpack.c.b16 %v4629, %v4629
        %v4694 = vpack.c.b16 %v4630, %v4630
        %v4695 = vpack.c.b16 %v4631, %v4631
        %v4696 = vpack.c.b16 %v4632, %v4632
        %v4697 = vpack.c.b16 %v4633, %v4633
        %v4698 = vpack.c.b16 %v4634, %v4634
        %v4699 = vpack.c.b16 %v4635, %v4635
        %v4700 = vpack.c.b16 %v4636, %v4636
        %v4701 = vpack.c.b16 %v4637, %v4637
        %v4702 = vpack.c.b16 %v4638, %v4638
        %v4703 = vpack.c.b16 %v4639, %v4639
        %v4704 = vpack.c.b16 %v4640, %v4640
        %v4705 = vpack.c.b16 %v4641, %v4641
        %v4706 = vpack.c.b16 %v4642, %v4642
        %v4707 = vpack.c.b16 %v4643, %v4643
        %v4708 = vpack.c.b16 %v4644, %v4644
        %v4709 = vpack.c.b16 %v4645, %v4645
        %v4710 = vpack.c.b16 %v4646, %v4646
        %v4711 = vpack.c.b16 %v4647, %v4647
        %v4712 = vpack.c.b16 %v4648, %v4648
        %v4713 = vpack.c.b16 %v4649, %v4649
        %v4714 = vpack.c.b16 %v4650, %v4650
        %v4715 = vpack.c.b16 %v4651, %v4651
        %v4716 = vpack.c.b16 %v4652, %v4652
        %v4717 = vpack.c.b16 %v4653, %v4653
        %v4718 = vpack.c.b16 %v4654, %v4654
        %4783 = vst [vmem:[%s310] sm:$0xf] %v4655
        %4784 = vst [vmem:[%s310 + $0x4] sm:$0xf] %v4656
        %4785 = vst [vmem:[%s310 + $0x8] sm:$0xf] %v4657
        %4786 = vst [vmem:[%s310 + $0xc] sm:$0xf] %v4658
        %4787 = vst [vmem:[%s310 + $0x10] sm:$0xf] %v4659
        %4788 = vst [vmem:[%s310 + $0x14] sm:$0xf] %v4660
        %4789 = vst [vmem:[%s310 + $0x18] sm:$0xf] %v4661
        %4790 = vst [vmem:[%s310 + $0x1c] sm:$0xf] %v4662
        %4791 = vst [vmem:[%s310 + $0x20] sm:$0xf] %v4663
        %4792 = vst [vmem:[%s310 + $0x24] sm:$0xf] %v4664
        %4793 = vst [vmem:[%s310 + $0x28] sm:$0xf] %v4665
        %4794 = vst [vmem:[%s310 + $0x2c] sm:$0xf] %v4666
        %4795 = vst [vmem:[%s310 + $0x30] sm:$0xf] %v4667
        %4796 = vst [vmem:[%s310 + $0x34] sm:$0xf] %v4668
        %4797 = vst [vmem:[%s310 + $0x38] sm:$0xf] %v4669
        %4798 = vst [vmem:[%s310 + $0x3c] sm:$0xf] %v4670
        %4799 = vst [vmem:[%s310 + $0x40] sm:$0xf] %v4671
        %4800 = vst [vmem:[%s310 + $0x44] sm:$0xf] %v4672
        %4801 = vst [vmem:[%s310 + $0x48] sm:$0xf] %v4673
        %4802 = vst [vmem:[%s310 + $0x4c] sm:$0xf] %v4674
        %4803 = vst [vmem:[%s310 + $0x50] sm:$0xf] %v4675
        %4804 = vst [vmem:[%s310 + $0x54] sm:$0xf] %v4676
        %4805 = vst [vmem:[%s310 + $0x58] sm:$0xf] %v4677
        %4806 = vst [vmem:[%s310 + $0x5c] sm:$0xf] %v4678
        %4807 = vst [vmem:[%s310 + $0x60] sm:$0xf] %v4679
        %4808 = vst [vmem:[%s310 + $0x64] sm:$0xf] %v4680
        %4809 = vst [vmem:[%s310 + $0x68] sm:$0xf] %v4681
        %4810 = vst [vmem:[%s310 + $0x6c] sm:$0xf] %v4682
        %4811 = vst [vmem:[%s310 + $0x70] sm:$0xf] %v4683
        %4812 = vst [vmem:[%s310 + $0x74] sm:$0xf] %v4684
        %4813 = vst [vmem:[%s310 + $0x78] sm:$0xf] %v4685
        %4814 = vst [vmem:[%s310 + $0x7c] sm:$0xf] %v4686
        %4815 = vst [vmem:[%s310 + $0x80] sm:$0xf] %v4687
        %4816 = vst [vmem:[%s310 + $0x84] sm:$0xf] %v4688
        %4817 = vst [vmem:[%s310 + $0x88] sm:$0xf] %v4689
        %4818 = vst [vmem:[%s310 + $0x8c] sm:$0xf] %v4690
        %4819 = vst [vmem:[%s310 + $0x90] sm:$0xf] %v4691
        %4820 = vst [vmem:[%s310 + $0x94] sm:$0xf] %v4692
        %4821 = vst [vmem:[%s310 + $0x98] sm:$0xf] %v4693
        %4822 = vst [vmem:[%s310 + $0x9c] sm:$0xf] %v4694
        %4823 = vst [vmem:[%s310 + $0xa0] sm:$0xf] %v4695
        %4824 = vst [vmem:[%s310 + $0xa4] sm:$0xf] %v4696
        %4825 = vst [vmem:[%s310 + $0xa8] sm:$0xf] %v4697
        %4826 = vst [vmem:[%s310 + $0xac] sm:$0xf] %v4698
        %4827 = vst [vmem:[%s310 + $0xb0] sm:$0xf] %v4699
        %4828 = vst [vmem:[%s310 + $0xb4] sm:$0xf] %v4700
        %4829 = vst [vmem:[%s310 + $0xb8] sm:$0xf] %v4701
        %4830 = vst [vmem:[%s310 + $0xbc] sm:$0xf] %v4702
        %4831 = vst [vmem:[%s310 + $0xc0] sm:$0xf] %v4703
        %4832 = vst [vmem:[%s310 + $0xc4] sm:$0xf] %v4704
        %4833 = vst [vmem:[%s310 + $0xc8] sm:$0xf] %v4705
        %4834 = vst [vmem:[%s310 + $0xcc] sm:$0xf] %v4706
        %4835 = vst [vmem:[%s310 + $0xd0] sm:$0xf] %v4707
        %4836 = vst [vmem:[%s310 + $0xd4] sm:$0xf] %v4708
        %4837 = vst [vmem:[%s310 + $0xd8] sm:$0xf] %v4709
        %4838 = vst [vmem:[%s310 + $0xdc] sm:$0xf] %v4710
        %4839 = vst [vmem:[%s310 + $0xe0] sm:$0xf] %v4711
        %4840 = vst [vmem:[%s310 + $0xe4] sm:$0xf] %v4712
        %4841 = vst [vmem:[%s310 + $0xe8] sm:$0xf] %v4713
        %4842 = vst [vmem:[%s310 + $0xec] sm:$0xf] %v4714
        %4843 = vst [vmem:[%s310 + $0xf0] sm:$0xf] %v4715
        %4844 = vst [vmem:[%s310 + $0xf4] sm:$0xf] %v4716
        %4845 = vst [vmem:[%s310 + $0xf8] sm:$0xf] %v4717
        %4846 = vst [vmem:[%s310 + $0xfc] sm:$0xf] %v4718
        %s4847 = sand.u32 %s198, 1
        %s4848 = scalar_lea.sflag [#allocation5], %s4847
        %s4849 = sand.u32 %s198, 1
        %s4850 = smul.addr %s4849, 256
        %s4851 = scalar_lea.vmem [#allocation6], %s4850
        // Predicated region
        $region69: #{tpu_custom_call.1} parent=47 // pred_check
          %p4852 = pneg %p208
        $region70: #{tpu_custom_call.1} parent=47 // pred_check_branch
          %4854 = sbr.rel (%p4852) target = $region72
        $region71: #{tpu_custom_call.1} parent=47 // pred_region
          %s4855 = smul.u32 16, %s29
          %s4857 = ssub.s32 4096, 4096
          %4858 = vsyncadd %s4848, %s4857
          %s4859 = smul.addr %s4855, 4
          %s4860 = smul.addr %s28, 128
          %s4861 = sadd.s32 %s4859, %s4860
          %s4862 = smul.addr %s4861, 64
          %s4863 = scalar_lea.hbm %s7, %s4862
          %s4864 = sshll.u32 %s4851, 4
          %s4865 = int_to_ptr.vmem [resolvable:$true] %s4864
          %4870 = dma.vmem_to_hbm [thread:$0]  %s4865, 4096, %s4863, %s4848, 64, 64, 4
        $region72: #{tpu_custom_call.1} parent=47 // pred_fallthru
          _
      $region48: #{tpu_custom_call.1} parent=5 // pred_fallthru
        _
      %p4871 = scmp.le.s32.totalorder 2, %s19
      // Predicated region
      $region73: #{tpu_custom_call.1} parent=5 // pred_check
        %p4872 = pneg %p4871
      $region74: #{tpu_custom_call.1} parent=5 // pred_check_branch
        %4874 = sbr.rel (%p4872) target = $region76
      $region75: #{tpu_custom_call.1} parent=5 // pred_region
        %s4875 = ssub.s32 %s19, 2
        // Predicated region
        $region77: #{tpu_custom_call.1} parent=75 // pred_check
          %p4876 = pneg %p214
        $region78: #{tpu_custom_call.1} parent=75 // pred_check_branch
          %4878 = sbr.rel (%p4876) target = $region80
        $region79: #{tpu_custom_call.1} parent=75 // pred_region
          %s4879 = sand.u32 %s199, 1
          %s4880 = scalar_lea.sflag [#allocation5], %s4879
          %s4881 = sand.u32 %s199, 1
          %s4882 = smul.addr %s4881, 256
          %s4883 = scalar_lea.vmem [#allocation6], %s4882
          %4884 = dma.done %s4880, 4096
        $region80: #{tpu_custom_call.1} parent=75 // pred_fallthru
          _
      $region76: #{tpu_custom_call.1} parent=5 // pred_fallthru
        _
    $region6: #{tpu_custom_call.1} parent=1 // loop_footer
      %s23 = sadd.s32 1, %s19
    $region7: #{tpu_custom_call.1} parent=1 // loop_footer_branch
      %18 = sbr.rel target = $region3
    $region8: #{tpu_custom_call.1} parent=1 // loop_exit
      _
    %4885 = vsyncpa [#allocation4], 1
    %s4886 = scalar_lea.sflag [#allocation4], 1
    %4887 = vsyncpa %s4886, 1
    %4888 = vsyncpa [#allocation5], 1
    %s4889 = scalar_lea.sflag [#allocation5], 1
    %4890 = vsyncpa %s4889, 1

</llo_original>
